<compile_context>
chip_gen: v7x
topology: tpu7x:2x2x1
jax: 0.10.0
libtpu: 0.0.40
codegen_flags: <defaults>
</compile_context>

<pallas_src>
import jax
import jax.numpy as jnp
from jax import lax
from jax.experimental import pallas as pl
from jax.experimental.pallas import tpu as pltpu


# ----------------------------------------------------------------------------
# Tiling helper
# ----------------------------------------------------------------------------
def _pick_tile_h(H, W, C0, Cout=3, budget_bytes=12 * 1024 * 1024):
    """Pick the output-row tile TH (a divisor of H).

    Only split into row bands when the whole image blows the VMEM budget;
    account for the real per-band working set; when splitting, require
    (TH*W) % 128 == 0 so flattened-row blocks stay lane-dense.
    The 12 MiB default is conservative enough for v7x's 64 MiB VMEM; raise it
    on v5e / v6e (128 MiB physical) if a sweep wants bigger bands.
    """
    def band_bytes(th):
        rows = th * W
        bf = 2  # bf16
        conv_out = (2 * rows * C0 * bf               # double-buffered body band
                    + (th + 2) * (W + 2) * C0 * bf   # ybuf scratch
                    + (th + 2) * W * 3 * C0 * bf     # hoisted kw-shift concat
                    + rows * 9 * C0 * bf             # 9-tap concat matmul operand
                    + 2 * Cout * rows * 4)           # double-buffered f32 output
        conv_in = (2 * rows * 72 * 4                 # double-buffered im2col band
                   + 2 * rows * C0 * bf              # double-buffered bf16 h out
                   + rows * C0 * 4)                  # f32 acc
        return max(conv_out, conv_in)

    if band_bytes(H) <= budget_bytes:
        return H                                     # whole image per band
    divs = [d for d in range(1, H + 1) if H % d == 0 and (d * W) % 128 == 0]
    fits = [d for d in divs if band_bytes(d) <= budget_bytes]
    if fits:
        return max(fits)
    return min(divs) if divs else H


# ----------------------------------------------------------------------------
# Kernel 1: UNet conv_in (im2col'd 8 -> C0) + bias + partial GroupNorm stats
# ----------------------------------------------------------------------------
def conv_in_fused(x72, w72, bias, *, B, NB, TH, W, C0):
    """x72 : (B, H*W, 72) f32  im2col'd [person|mask|masked_person|densepose]
       w72 : (72, C0) f32      conv_in weights, tap-major ((kh*3+kw)*8 + cin)
       bias: (1, C0) f32
       returns h (B, H*W, C0) bf16, partial GN sum / sumsq (B, NB, C0) f32.
    """
    rows = TH * W

    def kernel(x_ref, w_ref, b_ref, h_ref, s_ref, ss_ref):
        # Single wide MXU push per band: (rows, 72) @ (72, C0).
        acc = jnp.dot(x_ref[0], w_ref[...],
                      preferred_element_type=jnp.float32) + b_ref[...]
        h_ref[0] = acc.astype(h_ref.dtype)
        # Per-(b, band) partial GroupNorm statistics (f32), reduced in wrapper.
        s_ref[0] = jnp.sum(acc, axis=0, keepdims=True)
        ss_ref[0] = jnp.sum(acc * acc, axis=0, keepdims=True)

    return pl.pallas_call(
        kernel,
        out_shape=(jax.ShapeDtypeStruct((B, NB * rows, C0), jnp.bfloat16),
                   jax.ShapeDtypeStruct((B, NB, C0), jnp.float32),
                   jax.ShapeDtypeStruct((B, NB, C0), jnp.float32)),
        grid=(B, NB),
        in_specs=[
            pl.BlockSpec((1, rows, 72), lambda b, t: (b, t, 0)),
            pl.BlockSpec((72, C0), lambda b, t: (0, 0)),
            pl.BlockSpec((1, C0), lambda b, t: (0, 0)),
        ],
        out_specs=(
            pl.BlockSpec((1, rows, C0), lambda b, t: (b, t, 0)),
            pl.BlockSpec((1, 1, C0), lambda b, t: (b, t, 0)),
            pl.BlockSpec((1, 1, C0), lambda b, t: (b, t, 0)),
        ),
        compiler_params=pltpu.CompilerParams(
            dimension_semantics=("parallel", "parallel"),
            vmem_limit_bytes=48 * 1024 * 1024),
    )(x72, w72, bias)


# ----------------------------------------------------------------------------
# Kernel 2: fused GroupNorm affine + SiLU + UNet conv_out (C0 -> Cout) + bias
# ----------------------------------------------------------------------------
def conv_out_fused(h4, scale, shift, wcat, bias, *, B, NB, TH, W, C0, Cout):
    """h4   : (B, H, W, C0) bf16  UNPADDED conv_in output (read 3x: body + halos)
       scale: (B, 1, C0) f32      gamma * rsqrt(var + eps)
       shift: (B, 1, C0) f32      beta - mean * scale
       wcat : (Cout, 9*C0) bf16   conv_out weights, tap-major ((kh*3+kw)*C0 + c)
       bias : (Cout, 1) f32
       returns (B, Cout, H*W) f32  -- already NCHW-flat, lane-dense stores.
    """
    rows = TH * W
    H = NB * TH

    def kernel(body_ref, top_ref, bot_ref, sc_ref, sh_ref, w_ref, b_ref,
               o_ref, ybuf):
        t = pl.program_id(1)
        nb = pl.num_programs(1)
        sc = sc_ref[0]                                  # (1, C0) f32
        sh = sh_ref[0]

        def norm_act(v):                                # GN affine + SiLU
            y = v.astype(jnp.float32) * sc + sh         # f32 (portable to v5e)
            return (y * jax.nn.sigmoid(y)).astype(jnp.bfloat16)

        # Assemble the zero-padded normalized band in VMEM with TARGETED zero
        # writes (replaces the old full-band iota/where mask).
        zcol = jnp.zeros((TH + 2, 1, C0), jnp.bfloat16)
        ybuf[:, 0:1, :] = zcol
        ybuf[:, W + 1:W + 2, :] = zcol
        ybuf[1:TH + 1, 1:W + 1, :] = norm_act(body_ref[0])

        zrow = jnp.zeros((1, W, C0), jnp.bfloat16)

        @pl.when(t == 0)
        def _():
            ybuf[0:1, 1:W + 1, :] = zrow

        @pl.when(t > 0)
        def _():
            ybuf[0:1, 1:W + 1, :] = norm_act(top_ref[0])

        @pl.when(t == nb - 1)
        def _():
            ybuf[TH + 1:TH + 2, 1:W + 1, :] = zrow

        @pl.when(t < nb - 1)
        def _():
            ybuf[TH + 1:TH + 2, 1:W + 1, :] = norm_act(bot_ref[0])

        y = ybuf[...]                                   # (TH+2, W+2, C0) bf16
        # Hoisted kw (sublane) shifts: 3 shifted copies instead of 9.
        ykw = jnp.concatenate(
            [y[:, 0:W, :], y[:, 1:W + 1, :], y[:, 2:W + 2, :]], axis=-1)
        # kh shifts are cheap leading-dim windows; concat -> tap order kh*3+kw.
        ycat = jnp.concatenate(
            [ykw[0:TH], ykw[1:TH + 1], ykw[2:TH + 2]], axis=-1
        ).reshape(rows, 9 * C0)
        # Single long-K MXU push; transposed result -> lane-dense HBM store.
        acc = lax.dot_general(w_ref[...], ycat, (((1,), (1,)), ((), ())),
                              preferred_element_type=jnp.float32)
        o_ref[0] = acc + b_ref[...]                     # (Cout, 1) broadcast

    return pl.pallas_call(
        kernel,
        out_shape=jax.ShapeDtypeStruct((B, Cout, NB * rows), jnp.float32),
        grid=(B, NB),
        in_specs=[
            # body band: non-overlapping TH-row blocks of h
            pl.BlockSpec((1, TH, W, C0), lambda b, t: (b, t, 0, 0)),
            # 1-row top/bottom halos (element-level row index; clamped at the
            # image edges — the kernel zeroes those rows anyway)
            pl.BlockSpec((1, 1, W, C0),
                         lambda b, t: (b, jnp.maximum(t * TH - 1, 0), 0, 0)),
            pl.BlockSpec((1, 1, W, C0),
                         lambda b, t: (b, jnp.minimum((t + 1) * TH, H - 1), 0, 0)),
            pl.BlockSpec((1, 1, C0), lambda b, t: (b, 0, 0)),
            pl.BlockSpec((1, 1, C0), lambda b, t: (b, 0, 0)),
            pl.BlockSpec((Cout, 9 * C0), lambda b, t: (0, 0)),
            pl.BlockSpec((Cout, 1), lambda b, t: (0, 0)),
        ],
        out_specs=pl.BlockSpec((1, Cout, rows), lambda b, t: (b, 0, t)),
        scratch_shapes=[pltpu.VMEM((TH + 2, W + 2, C0), jnp.bfloat16)],
        compiler_params=pltpu.CompilerParams(
            dimension_semantics=("parallel", "parallel"),
            vmem_limit_bytes=48 * 1024 * 1024),
    )(h4, h4, h4, scale, shift, wcat, bias)


# ----------------------------------------------------------------------------
# IDM_VTON forward (wrapper)
# ----------------------------------------------------------------------------
def idm_vton_forward(person_lat, mask_lat, densepose, garment_lat,
                     w_in, b_in, gamma, beta, w_out, b_out):
    """Inputs are NCHW (torch convention); output is NCHW (B, Cout, H, W)."""
    B, _, H, W = person_lat.shape
    C0 = w_in.shape[0]
    Cout = w_out.shape[0]
    G = 32
    TH = _pick_tile_h(H, W, C0, Cout)
    NB = H // TH

    # ---- layout glue: NCHW -> NHWC, mask concat, im2col of the tiny 8-ch input
    p = jnp.transpose(person_lat, (0, 2, 3, 1))
    m = jnp.transpose(mask_lat, (0, 2, 3, 1)).astype(p.dtype)
    d = jnp.transpose(densepose, (0, 2, 3, 1))
    x8 = jnp.concatenate([p, m, p * (1.0 - m), d], axis=-1)          # (B,H,W,8)
    xp = jnp.pad(x8, ((0, 0), (1, 1), (1, 1), (0, 0)))
    x72 = jnp.concatenate(
        [xp[:, kh:kh + H, kw:kw + W, :] for kh in range(3) for kw in range(3)],
        axis=-1).reshape(B, H * W, 72)                               # tap-major
    w72 = jnp.transpose(w_in, (2, 3, 1, 0)).reshape(9 * 8, C0)       # matches x72

    # TODO(synk): encode_clip (CLIPVisionModel) not implemented; TryonNet ignores it.
    del garment_lat
    # TODO(synk): DDPM timestep sampling + time-embedding MLP not implemented.
    # TODO(synk): UNet2DModel down/mid/up blocks and GarmentNet not implemented.

    h, s_part, ss_part = conv_in_fused(x72, w72, b_in.reshape(1, C0),
                                       B=B, NB=NB, TH=TH, W=W, C0=C0)

    # ---- GroupNorm(32): reduce partial stats -> per-channel affine (tiny XLA) -
    cpg = C0 // G
    n = float(H * W * cpg)
    gsum = s_part.sum(axis=1).reshape(B, G, cpg).sum(-1)
    gsq = ss_part.sum(axis=1).reshape(B, G, cpg).sum(-1)
    mean = gsum / n
    # NOTE: E[x^2]-E[x]^2 in f32 (can cancel for huge activations; acceptable at
    # the current tolerance — switch to a two-pass/Welford form if tightening).
    var = gsq / n - mean * mean
    inv = lax.rsqrt(var + 1e-5)
    inv_c = jnp.repeat(inv, cpg, axis=-1)                 # (B, C0)
    mean_c = jnp.repeat(mean, cpg, axis=-1)
    scale = (gamma[None, :] * inv_c).reshape(B, 1, C0)
    shift = (beta[None, :] - gamma[None, :] * inv_c * mean_c).reshape(B, 1, C0)

    # ---- fused GN affine + SiLU + conv_out; reads overlapping row windows of h
    #      directly (no padded/banded HBM re-materialization of the bf16 h).
    h4 = h.reshape(B, H, W, C0)                           # metadata-only reshape
    wcat = jnp.transpose(w_out, (0, 2, 3, 1)).reshape(Cout, 9 * C0).astype(jnp.bfloat16)
    out = conv_out_fused(h4, scale, shift, wcat, b_out.reshape(Cout, 1),
                         B=B, NB=NB, TH=TH, W=W, C0=C0, Cout=Cout)
    return out.reshape(B, Cout, H, W)


# ----------------------------------------------------------------------------
# Pure-JAX reference (for a loose numerical self-check)
# ----------------------------------------------------------------------------
def _reference(person, mask, dense, w_in, b_in, gamma, beta, w_out, b_out):
    dn = ("NCHW", "OIHW", "NCHW")
    mp = person * (1.0 - mask)
    x8 = jnp.concatenate([person, mask, mp, dense], axis=1)
    h = lax.conv_general_dilated(x8, w_in, (1, 1), ((1, 1), (1, 1)),
                                 dimension_numbers=dn) + b_in[None, :, None, None]
    B, C, H, W = h.shape
    hg = h.reshape(B, 32, C // 32, H, W)
    mean = hg.mean(axis=(2, 3, 4), keepdims=True)
    var = hg.var(axis=(2, 3, 4), keepdims=True)
    hn = ((hg - mean) * lax.rsqrt(var + 1e-5)).reshape(B, C, H, W)
    hn = hn * gamma[None, :, None, None] + beta[None, :, None, None]
    y = hn * jax.nn.sigmoid(hn)
    return lax.conv_general_dilated(y, w_out, (1, 1), ((1, 1), (1, 1)),
                                    dimension_numbers=dn) + b_out[None, :, None, None]


if __name__ == "__main__":
    key = jax.random.PRNGKey(0)
    B, H, W = 2, 16, 16
    C0 = 128  # block_out_channels[0]
    k1, k2, k3, k4, k5, k6, k7, k8 = jax.random.split(key, 8)

    # latents / conditioning (NCHW, like the torch module)
    person_lat = jax.random.normal(k1, (B, 3, H, W), jnp.float32)
    mask_lat = (jax.random.uniform(k2, (B, 1, H, W)) > 0.5).astype(jnp.float32)
    densepose = jax.random.normal(k3, (B, 1, H, W), jnp.float32)
    garment_lat = jax.random.normal(k4, (B, 3, H, W), jnp.float32)

    # deterministic synthetic parameters (shapes per UNet2DModel config)
    w_in = 0.05 * jax.random.normal(k5, (C0, 8, 3, 3), jnp.float32)   # conv_in (8 ch)
    b_in = 0.01 * jax.random.normal(k6, (C0,), jnp.float32)
    gamma = jnp.ones((C0,), jnp.float32)                              # conv_norm_out
    beta = jnp.zeros((C0,), jnp.float32)
    w_out = 0.02 * jax.random.normal(k7, (3, C0, 3, 3), jnp.float32)  # conv_out
    b_out = 0.01 * jax.random.normal(k8, (3,), jnp.float32)

    fwd = jax.jit(idm_vton_forward)
    out = fwd(person_lat, mask_lat, densepose, garment_lat,
              w_in, b_in, gamma, beta, w_out, b_out)
    jax.block_until_ready(out)
    assert out.shape == (B, 3, H, W) and out.dtype == jnp.float32

    ref = _reference(person_lat, mask_lat, densepose,
                     w_in, b_in, gamma, beta, w_out, b_out)
    # bf16 h / bf16 conv_out operands -> loose but meaningful tolerance
    assert jnp.allclose(out, ref, atol=8e-2, rtol=8e-2), \
        float(jnp.max(jnp.abs(out - ref)))
    print("KERNEL_OK")
</pallas_src>

<mosaic_0001>
module attributes {stable_mosaic.version = 11 : i64} {
  func.func @kernel(%arg0: i32, %arg1: i32, %arg2: memref<1x256x72xf32, #tpu.memory_space<vmem>>, %arg3: memref<72x128xf32, #tpu.memory_space<vmem>>, %arg4: memref<1x128xf32, #tpu.memory_space<vmem>>, %arg5: memref<1x256x128xbf16, #tpu.memory_space<vmem>>, %arg6: memref<1x1x128xf32, #tpu.memory_space<vmem>>, %arg7: memref<1x1x128xf32, #tpu.memory_space<vmem>>) attributes {dimension_semantics = [#tpu.dimension_semantics<parallel>, #tpu.dimension_semantics<parallel>], iteration_bounds = array<i64: 2, 1>, scalar_prefetch = 0 : i64, scratch_operands = 0 : i64, tpu.core_type = #tpu.core_type<tc>, window_params = [{transform_indices = @transform_0, window_bounds = array<i64: 1, 256, 72>}, {pipeline_mode = #tpu.pipeline_mode<synchronous>, transform_indices = @transform_1, window_bounds = array<i64: 72, 128>}, {pipeline_mode = #tpu.pipeline_mode<synchronous>, transform_indices = @transform_2, window_bounds = array<i64: 1, 128>}, {transform_indices = @transform_3, window_bounds = array<i64: 1, 256, 128>}, {transform_indices = @transform_4, window_bounds = array<i64: 1, 1, 128>}, {transform_indices = @transform_5, window_bounds = array<i64: 1, 1, 128>}]} {
    %c0 = arith.constant 0 : index
    %c0_0 = arith.constant 0 : index
    %c0_1 = arith.constant 0 : index
    %0 = vector.load %arg2[%c0, %c0_0, %c0_1] : memref<1x256x72xf32, #tpu.memory_space<vmem>>, vector<1x256x72xf32>
    %1 = vector.shape_cast %0 : vector<1x256x72xf32> to vector<256x72xf32>
    %c0_2 = arith.constant 0 : index
    %c0_3 = arith.constant 0 : index
    %2 = vector.load %arg3[%c0_2, %c0_3] : memref<72x128xf32, #tpu.memory_space<vmem>>, vector<72x128xf32>
    %cst = arith.constant dense<0.000000e+00> : vector<256x128xf32>
    %3 = tpu.matmul %1, %2, %cst {dimension_numbers = #tpu.dot_dimension_numbers<[1], [0], [0], [1], [0, 0, 1, 1], [], []>} : vector<256x72xf32>, vector<72x128xf32>, vector<256x128xf32> -> vector<256x128xf32>
    %c0_4 = arith.constant 0 : index
    %c0_5 = arith.constant 0 : index
    %4 = vector.load %arg4[%c0_4, %c0_5] : memref<1x128xf32, #tpu.memory_space<vmem>>, vector<1x128xf32>
    %5 = vector.broadcast %4 : vector<1x128xf32> to vector<256x128xf32>
    %6 = arith.addf %3, %5 : vector<256x128xf32>
    %7 = arith.truncf %6 : vector<256x128xf32> to vector<256x128xbf16>
    %c0_6 = arith.constant 0 : index
    %c0_7 = arith.constant 0 : index
    %c0_8 = arith.constant 0 : index
    %8 = vector.load %arg5[%c0_6, %c0_7, %c0_8] : memref<1x256x128xbf16, #tpu.memory_space<vmem>>, vector<1x256x128xbf16>
    %9 = vector.shape_cast %8 : vector<1x256x128xbf16> to vector<256x128xbf16>
    %10 = vector.shape_cast %7 : vector<256x128xbf16> to vector<1x256x128xbf16>
    tpu.vector_store %arg5[%c0_6, %c0_7, %c0_8], %10 {strides = array<i32>} : memref<1x256x128xbf16, #tpu.memory_space<vmem>>, vector<1x256x128xbf16>,
    %cst_9 = arith.constant dense<0.000000e+00> : vector<128xf32>
    %11 = vector.multi_reduction <add>, %6, %cst_9 [0] : vector<256x128xf32> to vector<128xf32>
    %12 = vector.shape_cast %11 : vector<128xf32> to vector<1x128xf32>
    %c0_10 = arith.constant 0 : index
    %c0_11 = arith.constant 0 : index
    %c0_12 = arith.constant 0 : index
    %13 = vector.load %arg6[%c0_10, %c0_11, %c0_12] : memref<1x1x128xf32, #tpu.memory_space<vmem>>, vector<1x1x128xf32>
    %14 = vector.shape_cast %13 : vector<1x1x128xf32> to vector<1x128xf32>
    %15 = vector.shape_cast %12 : vector<1x128xf32> to vector<1x1x128xf32>
    tpu.vector_store %arg6[%c0_10, %c0_11, %c0_12], %15 {strides = array<i32>} : memref<1x1x128xf32, #tpu.memory_space<vmem>>, vector<1x1x128xf32>,
    %16 = arith.mulf %6, %6 : vector<256x128xf32>
    %cst_13 = arith.constant dense<0.000000e+00> : vector<128xf32>
    %17 = vector.multi_reduction <add>, %16, %cst_13 [0] : vector<256x128xf32> to vector<128xf32>
    %18 = vector.shape_cast %17 : vector<128xf32> to vector<1x128xf32>
    %c0_14 = arith.constant 0 : index
    %c0_15 = arith.constant 0 : index
    %c0_16 = arith.constant 0 : index
    %19 = vector.load %arg7[%c0_14, %c0_15, %c0_16] : memref<1x1x128xf32, #tpu.memory_space<vmem>>, vector<1x1x128xf32>
    %20 = vector.shape_cast %19 : vector<1x1x128xf32> to vector<1x128xf32>
    %21 = vector.shape_cast %18 : vector<1x128xf32> to vector<1x1x128xf32>
    tpu.vector_store %arg7[%c0_14, %c0_15, %c0_16], %21 {strides = array<i32>} : memref<1x1x128xf32, #tpu.memory_space<vmem>>, vector<1x1x128xf32>,
    return
  }
  func.func @transform_0(%arg0: i32, %arg1: i32) -> (i32, i32, i32) {
    %c0_i32 = arith.constant 0 : i32
    %c0_i32_0 = arith.constant 0 : i32
    return %arg0, %arg1, %c0_i32 : i32, i32, i32
  }
  func.func @transform_1(%arg0: i32, %arg1: i32) -> (i32, i32) {
    %c0_i32 = arith.constant 0 : i32
    %c0_i32_0 = arith.constant 0 : i32
    %c0_i32_1 = arith.constant 0 : i32
    return %c0_i32, %c0_i32_0 : i32, i32
  }
  func.func @transform_2(%arg0: i32, %arg1: i32) -> (i32, i32) {
    %c0_i32 = arith.constant 0 : i32
    %c0_i32_0 = arith.constant 0 : i32
    %c0_i32_1 = arith.constant 0 : i32
    return %c0_i32, %c0_i32_0 : i32, i32
  }
  func.func @transform_3(%arg0: i32, %arg1: i32) -> (i32, i32, i32) {
    %c0_i32 = arith.constant 0 : i32
    %c0_i32_0 = arith.constant 0 : i32
    return %arg0, %arg1, %c0_i32 : i32, i32, i32
  }
  func.func @transform_4(%arg0: i32, %arg1: i32) -> (i32, i32, i32) {
    %c0_i32 = arith.constant 0 : i32
    %c0_i32_0 = arith.constant 0 : i32
    return %arg0, %arg1, %c0_i32 : i32, i32, i32
  }
  func.func @transform_5(%arg0: i32, %arg1: i32) -> (i32, i32, i32) {
    %c0_i32 = arith.constant 0 : i32
    %c0_i32_0 = arith.constant 0 : i32
    return %arg0, %arg1, %c0_i32 : i32, i32, i32
  }
}

module attributes {stable_mosaic.version = 11 : i64} {
  func.func @kernel(%arg0: i32, %arg1: i32, %arg2: memref<1x16x16x128xbf16, #tpu.memory_space<vmem>>, %arg3: memref<1x1x16x128xbf16, #tpu.memory_space<vmem>>, %arg4: memref<1x1x16x128xbf16, #tpu.memory_space<vmem>>, %arg5: memref<1x1x128xf32, #tpu.memory_space<vmem>>, %arg6: memref<1x1x128xf32, #tpu.memory_space<vmem>>, %arg7: memref<3x1152xbf16, #tpu.memory_space<vmem>>, %arg8: memref<3x1xf32, #tpu.memory_space<vmem>>, %arg9: memref<1x3x256xf32, #tpu.memory_space<vmem>>, %arg10: memref<18x18x128xbf16, #tpu.memory_space<vmem>>) attributes {dimension_semantics = [#tpu.dimension_semantics<parallel>, #tpu.dimension_semantics<parallel>], iteration_bounds = array<i64: 2, 1>, scalar_prefetch = 0 : i64, scratch_operands = 1 : i64, tpu.core_type = #tpu.core_type<tc>, window_params = [{transform_indices = @transform_0, window_bounds = array<i64: 1, 16, 16, 128>}, {transform_indices = @transform_1, window_bounds = array<i64: 1, 1, 16, 128>}, {transform_indices = @transform_2, window_bounds = array<i64: 1, 1, 16, 128>}, {transform_indices = @transform_3, window_bounds = array<i64: 1, 1, 128>}, {transform_indices = @transform_4, window_bounds = array<i64: 1, 1, 128>}, {pipeline_mode = #tpu.pipeline_mode<synchronous>, transform_indices = @transform_5, window_bounds = array<i64: 3, 1152>}, {pipeline_mode = #tpu.pipeline_mode<synchronous>, transform_indices = @transform_6, window_bounds = array<i64: 3, 1>}, {transform_indices = @transform_7, window_bounds = array<i64: 1, 3, 256>}]} {
    %c0 = arith.constant 0 : index
    %c0_0 = arith.constant 0 : index
    %c0_1 = arith.constant 0 : index
    %0 = vector.load %arg5[%c0, %c0_0, %c0_1] : memref<1x1x128xf32, #tpu.memory_space<vmem>>, vector<1x1x128xf32>
    %1 = vector.shape_cast %0 : vector<1x1x128xf32> to vector<1x128xf32>
    %c0_2 = arith.constant 0 : index
    %c0_3 = arith.constant 0 : index
    %c0_4 = arith.constant 0 : index
    %2 = vector.load %arg6[%c0_2, %c0_3, %c0_4] : memref<1x1x128xf32, #tpu.memory_space<vmem>>, vector<1x1x128xf32>
    %3 = vector.shape_cast %2 : vector<1x1x128xf32> to vector<1x128xf32>
    %cst = arith.constant 0.000000e+00 : bf16
    %4 = vector.broadcast %cst : bf16 to vector<18x1x128xbf16>
    %c0_5 = arith.constant 0 : index
    %c0_6 = arith.constant 0 : index
    %c0_7 = arith.constant 0 : index
    %5 = vector.load %arg10[%c0_5, %c0_6, %c0_7] : memref<18x18x128xbf16, #tpu.memory_space<vmem>>, vector<18x1x128xbf16>
    tpu.vector_store %arg10[%c0_5, %c0_6, %c0_7], %4 {strides = array<i32>} : memref<18x18x128xbf16, #tpu.memory_space<vmem>>, vector<18x1x128xbf16>,
    %c0_8 = arith.constant 0 : index
    %c17 = arith.constant 17 : index
    %c0_9 = arith.constant 0 : index
    %6 = vector.load %arg10[%c0_8, %c17, %c0_9] : memref<18x18x128xbf16, #tpu.memory_space<vmem>>, vector<18x1x128xbf16>
    tpu.vector_store %arg10[%c0_8, %c17, %c0_9], %4 {strides = array<i32>} : memref<18x18x128xbf16, #tpu.memory_space<vmem>>, vector<18x1x128xbf16>,
    %c0_10 = arith.constant 0 : index
    %c0_11 = arith.constant 0 : index
    %c0_12 = arith.constant 0 : index
    %c0_13 = arith.constant 0 : index
    %7 = vector.load %arg2[%c0_10, %c0_11, %c0_12, %c0_13] : memref<1x16x16x128xbf16, #tpu.memory_space<vmem>>, vector<1x16x16x128xbf16>
    %8 = vector.shape_cast %7 : vector<1x16x16x128xbf16> to vector<16x16x128xbf16>
    %9 = arith.extf %8 : vector<16x16x128xbf16> to vector<16x16x128xf32>
    %10 = vector.shape_cast %1 : vector<1x128xf32> to vector<1x1x128xf32>
    %11 = vector.broadcast %10 : vector<1x1x128xf32> to vector<16x16x128xf32>
    %12 = arith.mulf %9, %11 : vector<16x16x128xf32>
    %13 = vector.shape_cast %3 : vector<1x128xf32> to vector<1x1x128xf32>
    %14 = vector.broadcast %13 : vector<1x1x128xf32> to vector<16x16x128xf32>
    %15 = arith.addf %12, %14 : vector<16x16x128xf32>
    %16 = arith.negf %15 : vector<16x16x128xf32>
    %17 = math.exp %16 : vector<16x16x128xf32>
    %cst_14 = arith.constant 1.000000e+00 : f32
    %18 = vector.broadcast %cst_14 : f32 to vector<16x16x128xf32>
    %19 = arith.addf %18, %17 : vector<16x16x128xf32>
    %20 = arith.divf %18, %19 : vector<16x16x128xf32>
    %21 = arith.mulf %15, %20 : vector<16x16x128xf32>
    %22 = arith.truncf %21 : vector<16x16x128xf32> to vector<16x16x128xbf16>
    %c1 = arith.constant 1 : index
    %c1_15 = arith.constant 1 : index
    %c0_16 = arith.constant 0 : index
    %23 = vector.load %arg10[%c1, %c1_15, %c0_16] : memref<18x18x128xbf16, #tpu.memory_space<vmem>>, vector<16x16x128xbf16>
    tpu.vector_store %arg10[%c1, %c1_15, %c0_16], %22 {strides = array<i32>} : memref<18x18x128xbf16, #tpu.memory_space<vmem>>, vector<16x16x128xbf16>,
    %cst_17 = arith.constant 0.000000e+00 : bf16
    %24 = vector.broadcast %cst_17 : bf16 to vector<1x16x128xbf16>
    %c0_i32 = arith.constant 0 : i32
    %25 = arith.cmpi eq, %arg1, %c0_i32 : i32
    %26 = arith.extui %25 : i1 to i32
    %c0_i32_18 = arith.constant 0 : i32
    %27 = arith.cmpi ne, %26, %c0_i32_18 : i32
    scf.if %27 {
      %c0_36 = arith.constant 0 : index
      %c1_37 = arith.constant 1 : index
      %c0_38 = arith.constant 0 : index
      %55 = vector.load %arg10[%c0_36, %c1_37, %c0_38] : memref<18x18x128xbf16, #tpu.memory_space<vmem>>, vector<1x16x128xbf16>
      tpu.vector_store %arg10[%c0_36, %c1_37, %c0_38], %24 {strides = array<i32>} : memref<18x18x128xbf16, #tpu.memory_space<vmem>>, vector<1x16x128xbf16>,
    } else {
    }
    %c0_i32_19 = arith.constant 0 : i32
    %28 = arith.cmpi sgt, %arg1, %c0_i32_19 : i32
    %29 = arith.extui %28 : i1 to i32
    %c0_i32_20 = arith.constant 0 : i32
    %30 = arith.cmpi ne, %29, %c0_i32_20 : i32
    scf.if %30 {
      %c0_36 = arith.constant 0 : index
      %c0_37 = arith.constant 0 : index
      %c0_38 = arith.constant 0 : index
      %c0_39 = arith.constant 0 : index
      %55 = vector.load %arg3[%c0_36, %c0_37, %c0_38, %c0_39] : memref<1x1x16x128xbf16, #tpu.memory_space<vmem>>, vector<1x1x16x128xbf16>
      %56 = vector.shape_cast %55 : vector<1x1x16x128xbf16> to vector<1x16x128xbf16>
      %57 = arith.extf %56 : vector<1x16x128xbf16> to vector<1x16x128xf32>
      %58 = vector.shape_cast %1 : vector<1x128xf32> to vector<1x1x128xf32>
      %59 = vector.broadcast %58 : vector<1x1x128xf32> to vector<1x16x128xf32>
      %60 = arith.mulf %57, %59 : vector<1x16x128xf32>
      %61 = vector.shape_cast %3 : vector<1x128xf32> to vector<1x1x128xf32>
      %62 = vector.broadcast %61 : vector<1x1x128xf32> to vector<1x16x128xf32>
      %63 = arith.addf %60, %62 : vector<1x16x128xf32>
      %64 = arith.negf %63 : vector<1x16x128xf32>
      %65 = math.exp %64 : vector<1x16x128xf32>
      %cst_40 = arith.constant 1.000000e+00 : f32
      %66 = vector.broadcast %cst_40 : f32 to vector<1x16x128xf32>
      %67 = arith.addf %66, %65 : vector<1x16x128xf32>
      %68 = arith.divf %66, %67 : vector<1x16x128xf32>
      %69 = arith.mulf %63, %68 : vector<1x16x128xf32>
      %70 = arith.truncf %69 : vector<1x16x128xf32> to vector<1x16x128xbf16>
      %c0_41 = arith.constant 0 : index
      %c1_42 = arith.constant 1 : index
      %c0_43 = arith.constant 0 : index
      %71 = vector.load %arg10[%c0_41, %c1_42, %c0_43] : memref<18x18x128xbf16, #tpu.memory_space<vmem>>, vector<1x16x128xbf16>
      tpu.vector_store %arg10[%c0_41, %c1_42, %c0_43], %70 {strides = array<i32>} : memref<18x18x128xbf16, #tpu.memory_space<vmem>>, vector<1x16x128xbf16>,
    } else {
    }
    %c0_i32_21 = arith.constant 0 : i32
    %31 = arith.cmpi eq, %arg1, %c0_i32_21 : i32
    %32 = arith.extui %31 : i1 to i32
    %c0_i32_22 = arith.constant 0 : i32
    %33 = arith.cmpi ne, %32, %c0_i32_22 : i32
    scf.if %33 {
      %c17_36 = arith.constant 17 : index
      %c1_37 = arith.constant 1 : index
      %c0_38 = arith.constant 0 : index
      %55 = vector.load %arg10[%c17_36, %c1_37, %c0_38] : memref<18x18x128xbf16, #tpu.memory_space<vmem>>, vector<1x16x128xbf16>
      tpu.vector_store %arg10[%c17_36, %c1_37, %c0_38], %24 {strides = array<i32>} : memref<18x18x128xbf16, #tpu.memory_space<vmem>>, vector<1x16x128xbf16>,
    } else {
    }
    %c0_i32_23 = arith.constant 0 : i32
    %34 = arith.cmpi slt, %arg1, %c0_i32_23 : i32
    %35 = arith.extui %34 : i1 to i32
    %c0_i32_24 = arith.constant 0 : i32
    %36 = arith.cmpi ne, %35, %c0_i32_24 : i32
    scf.if %36 {
      %c0_36 = arith.constant 0 : index
      %c0_37 = arith.constant 0 : index
      %c0_38 = arith.constant 0 : index
      %c0_39 = arith.constant 0 : index
      %55 = vector.load %arg4[%c0_36, %c0_37, %c0_38, %c0_39] : memref<1x1x16x128xbf16, #tpu.memory_space<vmem>>, vector<1x1x16x128xbf16>
      %56 = vector.shape_cast %55 : vector<1x1x16x128xbf16> to vector<1x16x128xbf16>
      %57 = arith.extf %56 : vector<1x16x128xbf16> to vector<1x16x128xf32>
      %58 = vector.shape_cast %1 : vector<1x128xf32> to vector<1x1x128xf32>
      %59 = vector.broadcast %58 : vector<1x1x128xf32> to vector<1x16x128xf32>
      %60 = arith.mulf %57, %59 : vector<1x16x128xf32>
      %61 = vector.shape_cast %3 : vector<1x128xf32> to vector<1x1x128xf32>
      %62 = vector.broadcast %61 : vector<1x1x128xf32> to vector<1x16x128xf32>
      %63 = arith.addf %60, %62 : vector<1x16x128xf32>
      %64 = arith.negf %63 : vector<1x16x128xf32>
      %65 = math.exp %64 : vector<1x16x128xf32>
      %cst_40 = arith.constant 1.000000e+00 : f32
      %66 = vector.broadcast %cst_40 : f32 to vector<1x16x128xf32>
      %67 = arith.addf %66, %65 : vector<1x16x128xf32>
      %68 = arith.divf %66, %67 : vector<1x16x128xf32>
      %69 = arith.mulf %63, %68 : vector<1x16x128xf32>
      %70 = arith.truncf %69 : vector<1x16x128xf32> to vector<1x16x128xbf16>
      %c17_41 = arith.constant 17 : index
      %c1_42 = arith.constant 1 : index
      %c0_43 = arith.constant 0 : index
      %71 = vector.load %arg10[%c17_41, %c1_42, %c0_43] : memref<18x18x128xbf16, #tpu.memory_space<vmem>>, vector<1x16x128xbf16>
      tpu.vector_store %arg10[%c17_41, %c1_42, %c0_43], %70 {strides = array<i32>} : memref<18x18x128xbf16, #tpu.memory_space<vmem>>, vector<1x16x128xbf16>,
    } else {
    }
    %c0_25 = arith.constant 0 : index
    %c0_26 = arith.constant 0 : index
    %c0_27 = arith.constant 0 : index
    %37 = vector.load %arg10[%c0_25, %c0_26, %c0_27] : memref<18x18x128xbf16, #tpu.memory_space<vmem>>, vector<18x18x128xbf16>
    %38 = vector.extract_strided_slice %37 {offsets = [0, 0, 0], sizes = [18, 16, 128], strides = [1, 1, 1]} : vector<18x18x128xbf16> to vector<18x16x128xbf16>
    %39 = vector.extract_strided_slice %37 {offsets = [0, 1, 0], sizes = [18, 16, 128], strides = [1, 1, 1]} : vector<18x18x128xbf16> to vector<18x16x128xbf16>
    %40 = vector.extract_strided_slice %37 {offsets = [0, 2, 0], sizes = [18, 16, 128], strides = [1, 1, 1]} : vector<18x18x128xbf16> to vector<18x16x128xbf16>
    %41 = tpu.concatenate %38, %39, %40 in 2 : vector<18x16x128xbf16>, vector<18x16x128xbf16>, vector<18x16x128xbf16> -> vector<18x16x384xbf16>
    %42 = vector.extract_strided_slice %41 {offsets = [0, 0, 0], sizes = [16, 16, 384], strides = [1, 1, 1]} : vector<18x16x384xbf16> to vector<16x16x384xbf16>
    %43 = vector.extract_strided_slice %41 {offsets = [1, 0, 0], sizes = [16, 16, 384], strides = [1, 1, 1]} : vector<18x16x384xbf16> to vector<16x16x384xbf16>
    %44 = vector.extract_strided_slice %41 {offsets = [2, 0, 0], sizes = [16, 16, 384], strides = [1, 1, 1]} : vector<18x16x384xbf16> to vector<16x16x384xbf16>
    %45 = tpu.concatenate %42, %43, %44 in 2 : vector<16x16x384xbf16>, vector<16x16x384xbf16>, vector<16x16x384xbf16> -> vector<16x16x1152xbf16>
    %46 = vector.shape_cast %45 : vector<16x16x1152xbf16> to vector<256x1152xbf16>
    %c0_28 = arith.constant 0 : index
    %c0_29 = arith.constant 0 : index
    %47 = vector.load %arg7[%c0_28, %c0_29] : memref<3x1152xbf16, #tpu.memory_space<vmem>>, vector<3x1152xbf16>
    %cst_30 = arith.constant dense<0.000000e+00> : vector<3x256xf32>
    %48 = tpu.matmul %47, %46, %cst_30 {dimension_numbers = #tpu.dot_dimension_numbers<[1], [1], [0], [0], [0, 0, 1, 0], [], []>} : vector<3x1152xbf16>, vector<256x1152xbf16>, vector<3x256xf32> -> vector<3x256xf32>
    %c0_31 = arith.constant 0 : index
    %c0_32 = arith.constant 0 : index
    %49 = vector.load %arg8[%c0_31, %c0_32] : memref<3x1xf32, #tpu.memory_space<vmem>>, vector<3x1xf32>
    %50 = vector.broadcast %49 : vector<3x1xf32> to vector<3x256xf32>
    %51 = arith.addf %48, %50 : vector<3x256xf32>
    %c0_33 = arith.constant 0 : index
    %c0_34 = arith.constant 0 : index
    %c0_35 = arith.constant 0 : index
    %52 = vector.load %arg9[%c0_33, %c0_34, %c0_35] : memref<1x3x256xf32, #tpu.memory_space<vmem>>, vector<1x3x256xf32>
    %53 = vector.shape_cast %52 : vector<1x3x256xf32> to vector<3x256xf32>
    %54 = vector.shape_cast %51 : vector<3x256xf32> to vector<1x3x256xf32>
    tpu.vector_store %arg9[%c0_33, %c0_34, %c0_35], %54 {strides = array<i32>} : memref<1x3x256xf32, #tpu.memory_space<vmem>>, vector<1x3x256xf32>,
    return
  }
  func.func @transform_0(%arg0: i32, %arg1: i32) -> (i32, i32, i32, i32) {
    %c0_i32 = arith.constant 0 : i32
    %c0_i32_0 = arith.constant 0 : i32
    %c0_i32_1 = arith.constant 0 : i32
    return %arg0, %arg1, %c0_i32, %c0_i32_0 : i32, i32, i32, i32
  }
  func.func @transform_1(%arg0: i32, %arg1: i32) -> (i32, i32, i32, i32) {
    %c16_i32 = arith.constant 16 : i32
    %0 = arith.muli %arg1, %c16_i32 : i32
    %c1_i32 = arith.constant 1 : i32
    %1 = arith.subi %0, %c1_i32 : i32
    %c0_i32 = arith.constant 0 : i32
    %2 = arith.maxsi %1, %c0_i32 : i32
    %c0_i32_0 = arith.constant 0 : i32
    %c0_i32_1 = arith.constant 0 : i32
    %c0_i32_2 = arith.constant 0 : i32
    return %arg0, %2, %c0_i32_0, %c0_i32_1 : i32, i32, i32, i32
  }
  func.func @transform_2(%arg0: i32, %arg1: i32) -> (i32, i32, i32, i32) {
    %c1_i32 = arith.constant 1 : i32
    %0 = arith.addi %arg1, %c1_i32 : i32
    %c16_i32 = arith.constant 16 : i32
    %1 = arith.muli %0, %c16_i32 : i32
    %c15_i32 = arith.constant 15 : i32
    %2 = arith.minsi %1, %c15_i32 : i32
    %c0_i32 = arith.constant 0 : i32
    %c0_i32_0 = arith.constant 0 : i32
    %c0_i32_1 = arith.constant 0 : i32
    return %arg0, %2, %c0_i32, %c0_i32_0 : i32, i32, i32, i32
  }
  func.func @transform_3(%arg0: i32, %arg1: i32) -> (i32, i32, i32) {
    %c0_i32 = arith.constant 0 : i32
    %c0_i32_0 = arith.constant 0 : i32
    %c0_i32_1 = arith.constant 0 : i32
    return %arg0, %c0_i32, %c0_i32_0 : i32, i32, i32
  }
  func.func @transform_4(%arg0: i32, %arg1: i32) -> (i32, i32, i32) {
    %c0_i32 = arith.constant 0 : i32
    %c0_i32_0 = arith.constant 0 : i32
    %c0_i32_1 = arith.constant 0 : i32
    return %arg0, %c0_i32, %c0_i32_0 : i32, i32, i32
  }
  func.func @transform_5(%arg0: i32, %arg1: i32) -> (i32, i32) {
    %c0_i32 = arith.constant 0 : i32
    %c0_i32_0 = arith.constant 0 : i32
    %c0_i32_1 = arith.constant 0 : i32
    return %c0_i32, %c0_i32_0 : i32, i32
  }
  func.func @transform_6(%arg0: i32, %arg1: i32) -> (i32, i32) {
    %c0_i32 = arith.constant 0 : i32
    %c0_i32_0 = arith.constant 0 : i32
    %c0_i32_1 = arith.constant 0 : i32
    return %c0_i32, %c0_i32_0 : i32, i32
  }
  func.func @transform_7(%arg0: i32, %arg1: i32) -> (i32, i32, i32) {
    %c0_i32 = arith.constant 0 : i32
    %c0_i32_0 = arith.constant 0 : i32
    return %arg0, %c0_i32, %arg1 : i32, i32, i32
  }
}

</mosaic_0001>

<llo_original>
// kernel: idm_vton_forward.2
$region0: #{idm_vton_forward.2}
  #allocation0 [shape = 'u32[]', space=smem, size = 0x4, offset = 0x4, fixed_abs, tag = 'smem constant byte address 0x4 - core index']
  #allocation1 [shape = 'u32[144,128]{1,0:T(1,128)}', space=vmem, size = 0x12000, scoped, tag = 'internal scratch']
  %s0 = inlined_call_operand.vmem [shape: f32[2,256,72], index: 0, kind: input, shape index: {}]
  %s1 = inlined_call_operand.vmem [shape: f32[72,128], index: 1, kind: input, shape index: {}]
  %s2 = inlined_call_operand.vmem [shape: f32[1,128], index: 2, kind: input, shape index: {}]
  %s3 = inlined_call_operand.vmem [shape: bf16[2,256,128], index: 3, kind: output, shape index: {0}]
  %s4 = inlined_call_operand.vmem [shape: f32[2,1,128], index: 4, kind: output, shape index: {1}]
  %s5 = inlined_call_operand.vmem [shape: f32[2,1,128], index: 5, kind: output, shape index: {2}]
  %6 = xla_tuple %s3, %s4, %s5
  %s7 = sld [smem:[#allocation0]]
  $region61: #{idm_vton_forward.2} parent=0
    _
  %s9 = ssub.s32 1, %s7
  %s10 = scalar_select 0, %s9, %s7
  loop: start=0, step=1, limit=4
  $region2: #{idm_vton_forward.2} parent=0 // loop_pre_header
    _
  $region3: #{idm_vton_forward.2} parent=0 // loop_header
    %s12 = sphi 0, %s16
    %p13 = scmp.ge.s32.totalorder %s12, 4
    %s19 = sphi 0, %s31
    %s20 = sphi 0, %s27
    %s21 = sphi 0, %s19
    %s22 = sphi 0, %s20
    %s23 = sphi 0, %s21
    %s24 = sphi 0, %s22
    %s36 = sphi 0, %s38
    %s39 = sphi 0, %s36
    %s40 = sphi 0, %s39
    %s56 = sphi 0, %s40
    %s60 = sphi 0, %s60
    %s62 = sphi 0, %s60
    %s63 = sphi 0, %s62
    %s77 = sphi 0, %s63
    %s81 = sphi 0, %s81
    %s83 = sphi 0, %s81
    %s84 = sphi 0, %s83
    %s98 = sphi 0, %s84
    %s106 = sphi 0, %s108
    %s109 = sphi 0, %s106
    %s110 = sphi 0, %s109
    %s126 = sphi 0, %s110
    %s134 = sphi 0, %s136
    %s137 = sphi 0, %s134
    %s138 = sphi 0, %s137
    %s154 = sphi 0, %s138
    %s162 = sphi 0, %s164
    %s165 = sphi 0, %s162
    %s166 = sphi 0, %s165
    %s182 = sphi 0, %s166
  $region4: #{idm_vton_forward.2} parent=0 // loop_header_branch
    %15 = sbr.rel (%p13) target = $region8
  $region5: #{idm_vton_forward.2} parent=0 // loop_body
    %s17 = ssub.s32 %s12, 1
    %s18 = ssub.s32 %s12, 2
    %s25 = sadd.s32 1, %s20
    %p26 = scmp.ge.s32.totalorder %s25, 1
    %s27 = scalar_select %p26, 0, %s25
    %s28 = sadd.s32 1, %s19
    %s29 = scalar_select %p26, %s28, %s19
    %p30 = scmp.ge.s32.totalorder %s29, 2
    %s31 = scalar_select %p30, 0, %s29
    %s32 = ssub.s32 %s19, %s31
    %s33 = ssub.s32 %s20, %s27
    %s34 = sor.u32 %s32, %s33
    %p35 = scmp.eq.s32.totalorder %s34, 0
    %s37 = sadd.s32 %s36, 1
    %s38 = scalar_select %p35, %s36, %s37
    %p41 = pneg %p35
    %p42 = scmp.eq.s32.totalorder %s12, 1
    %p43 = por %p41, %p42
    %p44 = scmp.ne.s32.totalorder %s36, %s39
    %p45 = scmp.eq.s32.totalorder %s12, 0
    %p46 = por %p44, %p45
    %p47 = scmp.ne.s32.totalorder %s36, %s39
    %p48 = scmp.eq.s32.totalorder %s17, 1
    %p49 = por %p47, %p48
    %p50 = scmp.ne.s32.totalorder %s39, %s40
    %p51 = scmp.eq.s32.totalorder %s17, 0
    %p52 = por %p50, %p51
    %p53 = scmp.ne.s32.totalorder %s39, %s40
    %p54 = scmp.eq.s32.totalorder %s18, 1
    %p55 = por %p53, %p54
    %p57 = scmp.ne.s32.totalorder %s40, %s56
    %p58 = scmp.eq.s32.totalorder %s18, 0
    %p59 = por %p57, %p58
    %s61 = sadd.s32 %s60, 1
    %p64 = scmp.eq.s32.totalorder %s12, 1
    %p65 = scmp.ne.s32.totalorder %s60, %s62
    %p66 = scmp.eq.s32.totalorder %s12, 0
    %p67 = por %p65, %p66
    %p68 = scmp.ne.s32.totalorder %s60, %s62
    %p69 = scmp.eq.s32.totalorder %s17, 1
    %p70 = por %p68, %p69
    %p71 = scmp.ne.s32.totalorder %s62, %s63
    %p72 = scmp.eq.s32.totalorder %s17, 0
    %p73 = por %p71, %p72
    %p74 = scmp.ne.s32.totalorder %s62, %s63
    %p75 = scmp.eq.s32.totalorder %s18, 1
    %p76 = por %p74, %p75
    %p78 = scmp.ne.s32.totalorder %s63, %s77
    %p79 = scmp.eq.s32.totalorder %s18, 0
    %p80 = por %p78, %p79
    %s82 = sadd.s32 %s81, 1
    %p85 = scmp.eq.s32.totalorder %s12, 1
    %p86 = scmp.ne.s32.totalorder %s81, %s83
    %p87 = scmp.eq.s32.totalorder %s12, 0
    %p88 = por %p86, %p87
    %p89 = scmp.ne.s32.totalorder %s81, %s83
    %p90 = scmp.eq.s32.totalorder %s17, 1
    %p91 = por %p89, %p90
    %p92 = scmp.ne.s32.totalorder %s83, %s84
    %p93 = scmp.eq.s32.totalorder %s17, 0
    %p94 = por %p92, %p93
    %p95 = scmp.ne.s32.totalorder %s83, %s84
    %p96 = scmp.eq.s32.totalorder %s18, 1
    %p97 = por %p95, %p96
    %p99 = scmp.ne.s32.totalorder %s84, %s98
    %p100 = scmp.eq.s32.totalorder %s18, 0
    %p101 = por %p99, %p100
    %s102 = ssub.s32 %s19, %s31
    %s103 = ssub.s32 %s20, %s27
    %s104 = sor.u32 %s102, %s103
    %p105 = scmp.eq.s32.totalorder %s104, 0
    %s107 = sadd.s32 %s106, 1
    %s108 = scalar_select %p105, %s106, %s107
    %p111 = pneg %p105
    %p112 = scmp.eq.s32.totalorder %s12, 1
    %p113 = por %p111, %p112
    %p114 = scmp.ne.s32.totalorder %s106, %s109
    %p115 = scmp.eq.s32.totalorder %s12, 0
    %p116 = por %p114, %p115
    %p117 = scmp.ne.s32.totalorder %s106, %s109
    %p118 = scmp.eq.s32.totalorder %s17, 1
    %p119 = por %p117, %p118
    %p120 = scmp.ne.s32.totalorder %s109, %s110
    %p121 = scmp.eq.s32.totalorder %s17, 0
    %p122 = por %p120, %p121
    %p123 = scmp.ne.s32.totalorder %s109, %s110
    %p124 = scmp.eq.s32.totalorder %s18, 1
    %p125 = por %p123, %p124
    %p127 = scmp.ne.s32.totalorder %s110, %s126
    %p128 = scmp.eq.s32.totalorder %s18, 0
    %p129 = por %p127, %p128
    %s130 = ssub.s32 %s19, %s31
    %s131 = ssub.s32 %s20, %s27
    %s132 = sor.u32 %s130, %s131
    %p133 = scmp.eq.s32.totalorder %s132, 0
    %s135 = sadd.s32 %s134, 1
    %s136 = scalar_select %p133, %s134, %s135
    %p139 = pneg %p133
    %p140 = scmp.eq.s32.totalorder %s12, 1
    %p141 = por %p139, %p140
    %p142 = scmp.ne.s32.totalorder %s134, %s137
    %p143 = scmp.eq.s32.totalorder %s12, 0
    %p144 = por %p142, %p143
    %p145 = scmp.ne.s32.totalorder %s134, %s137
    %p146 = scmp.eq.s32.totalorder %s17, 1
    %p147 = por %p145, %p146
    %p148 = scmp.ne.s32.totalorder %s137, %s138
    %p149 = scmp.eq.s32.totalorder %s17, 0
    %p150 = por %p148, %p149
    %p151 = scmp.ne.s32.totalorder %s137, %s138
    %p152 = scmp.eq.s32.totalorder %s18, 1
    %p153 = por %p151, %p152
    %p155 = scmp.ne.s32.totalorder %s138, %s154
    %p156 = scmp.eq.s32.totalorder %s18, 0
    %p157 = por %p155, %p156
    %s158 = ssub.s32 %s19, %s31
    %s159 = ssub.s32 %s20, %s27
    %s160 = sor.u32 %s158, %s159
    %p161 = scmp.eq.s32.totalorder %s160, 0
    %s163 = sadd.s32 %s162, 1
    %s164 = scalar_select %p161, %s162, %s163
    %p167 = pneg %p161
    %p168 = scmp.eq.s32.totalorder %s12, 1
    %p169 = por %p167, %p168
    %p170 = scmp.ne.s32.totalorder %s162, %s165
    %p171 = scmp.eq.s32.totalorder %s12, 0
    %p172 = por %p170, %p171
    %p173 = scmp.ne.s32.totalorder %s162, %s165
    %p174 = scmp.eq.s32.totalorder %s17, 1
    %p175 = por %p173, %p174
    %p176 = scmp.ne.s32.totalorder %s165, %s166
    %p177 = scmp.eq.s32.totalorder %s17, 0
    %p178 = por %p176, %p177
    %p179 = scmp.ne.s32.totalorder %s165, %s166
    %p180 = scmp.eq.s32.totalorder %s18, 1
    %p181 = por %p179, %p180
    %p183 = scmp.ne.s32.totalorder %s166, %s182
    %p184 = scmp.eq.s32.totalorder %s18, 0
    %p185 = por %p183, %p184
    %p186 = scmp.le.s32.totalorder 1, %s12
    %p187 = scmp.lt.s32.totalorder %s12, 3
    %p188 = pnand %p186, %p187
    %p189 = pneg %p188
    // Predicated region
    $region9: #{idm_vton_forward.2} parent=5 // pred_check
      _
    $region10: #{idm_vton_forward.2} parent=5 // pred_check_branch
      %191 = sbr.rel (%p188) target = $region12
    $region11: #{idm_vton_forward.2} parent=5 // pred_region
      %s192 = ssub.s32 %s12, 1
      // Predicated region
      $region13: #{idm_vton_forward.2} parent=11 // pred_check
        %p193 = pneg %p73
      $region14: #{idm_vton_forward.2} parent=11 // pred_check_branch
        %195 = sbr.rel (%p193) target = $region16
      $region15: #{idm_vton_forward.2} parent=11 // pred_region
        _
      $region16: #{idm_vton_forward.2} parent=11 // pred_fallthru
        _
      // Predicated region
      $region17: #{idm_vton_forward.2} parent=11 // pred_check
        %p196 = pneg %p94
      $region18: #{idm_vton_forward.2} parent=11 // pred_check_branch
        %198 = sbr.rel (%p196) target = $region20
      $region19: #{idm_vton_forward.2} parent=11 // pred_region
        _
      $region20: #{idm_vton_forward.2} parent=11 // pred_fallthru
        _
    $region12: #{idm_vton_forward.2} parent=5 // pred_fallthru
      _
    %p199 = scmp.lt.s32.totalorder %s12, 2
    // Predicated region
    $region21: #{idm_vton_forward.2} parent=5 // pred_check
      %p200 = pneg %p199
    $region22: #{idm_vton_forward.2} parent=5 // pred_check_branch
      %202 = sbr.rel (%p200) target = $region24
    $region23: #{idm_vton_forward.2} parent=5 // pred_region
      // Predicated region
      $region25: #{idm_vton_forward.2} parent=23 // pred_check
        %p203 = pneg %p46
      $region26: #{idm_vton_forward.2} parent=23 // pred_check_branch
        %205 = sbr.rel (%p203) target = $region28
      $region27: #{idm_vton_forward.2} parent=23 // pred_region
        %s206 = smul.u32 32, %s20
        %p207 = scmp.lt.s32.totalorder %s19, 1
        %s208 = scalar_select %p207, %s19, 1
        %p209 = scmp.lt.s32.totalorder %s206, 31
        %s210 = scalar_select %p209, %s206, 31
        %s211 = smul.addr %s208, 32
        %s212 = sadd.s32 %s210, %s211
        %s213 = smul.addr %s212, 8
        %s214 = scalar_lea.vmem %s0, %s213
        %s215 = smul.u32 32, %s20
      $region28: #{idm_vton_forward.2} parent=23 // pred_fallthru
        _
    $region24: #{idm_vton_forward.2} parent=5 // pred_fallthru
      _
    %p216 = scmp.le.s32.totalorder 1, %s12
    %p217 = scmp.lt.s32.totalorder %s12, 3
    %p218 = pnand %p216, %p217
    %p219 = pneg %p218
    // Predicated region
    $region29: #{idm_vton_forward.2} parent=5 // pred_check
      _
    $region30: #{idm_vton_forward.2} parent=5 // pred_check_branch
      %221 = sbr.rel (%p218) target = $region32
    $region31: #{idm_vton_forward.2} parent=5 // pred_region
      %s222 = ssub.s32 %s12, 1
      %s223 = smul.u32 32, %s22
      %p224 = scmp.lt.s32.totalorder %s21, 1
      %s225 = scalar_select %p224, %s21, 1
      %p226 = scmp.lt.s32.totalorder %s223, 31
      %s227 = scalar_select %p226, %s223, 31
      %s228 = smul.addr %s225, 32
      %s229 = sadd.s32 %s227, %s228
      %s230 = smul.addr %s229, 8
      %s231 = scalar_lea.vmem %s0, %s230
      %p232 = pneg %p52
      %p233 = pneg %p49
      %p234 = pneg %p73
      %p235 = pneg %p70
      %p236 = pneg %p94
      %p237 = pneg %p91
      %p238 = pneg %p122
      %p239 = pneg %p119
      %s240 = smul.u32 32, %s22
      %p241 = scmp.lt.s32.totalorder %s21, 1
      %s242 = scalar_select %p241, %s21, 1
      %p243 = scmp.lt.s32.totalorder %s240, 31
      %s244 = scalar_select %p243, %s240, 31
      %s245 = smul.addr %s242, 32
      %s246 = sadd.s32 %s244, %s245
      %s247 = smul.addr %s246, 4
      %s248 = scalar_lea.vmem %s3, %s247
      %p249 = pneg %p150
      %p250 = pneg %p147
      %p251 = scmp.lt.s32.totalorder %s21, 1
      %s252 = scalar_select %p251, %s21, 1
      %p253 = scmp.lt.s32.totalorder %s22, 0
      %s254 = scalar_select %p253, %s22, 0
      %s255 = sadd.s32 %s254, %s252
      %s256 = scalar_lea.vmem %s4, %s255
      %p257 = pneg %p178
      %p258 = pneg %p175
      %p259 = scmp.lt.s32.totalorder %s21, 1
      %s260 = scalar_select %p259, %s21, 1
      %p261 = scmp.lt.s32.totalorder %s22, 0
      %s262 = scalar_select %p261, %s22, 0
      %s263 = sadd.s32 %s262, %s260
      %s264 = scalar_lea.vmem %s5, %s263
      %s265 = smul.u32 32, %s22
      %p266 = scmp.lt.s32.totalorder %s21, 1
      %s267 = scalar_select %p266, %s21, 1
      %p268 = scmp.lt.s32.totalorder %s265, 31
      %s269 = scalar_select %p268, %s265, 31
      %s270 = smul.addr %s267, 32
      %s271 = sadd.s32 %s269, %s270
      %s272 = smul.addr %s271, 8
      %s273 = scalar_lea.vmem %s0, %s272
      %s274 = smul.u32 32, %s22
      %s275 = smul.u32 32, %s22
      %p276 = scmp.lt.s32.totalorder %s21, 1
      %s277 = scalar_select %p276, %s21, 1
      %p278 = scmp.lt.s32.totalorder %s275, 31
      %s279 = scalar_select %p278, %s275, 31
      %s280 = smul.addr %s277, 32
      %s281 = sadd.s32 %s279, %s280
      %s282 = smul.addr %s281, 4
      %s283 = scalar_lea.vmem %s3, %s282
      %s284 = smul.u32 32, %s22
      %p285 = scmp.lt.s32.totalorder %s21, 1
      %s286 = scalar_select %p285, %s21, 1
      %p287 = scmp.lt.s32.totalorder %s22, 0
      %s288 = scalar_select %p287, %s22, 0
      %s289 = sadd.s32 %s288, %s286
      %s290 = scalar_lea.vmem %s4, %s289
      %p291 = scmp.lt.s32.totalorder %s21, 1
      %s292 = scalar_select %p291, %s21, 1
      %p293 = scmp.lt.s32.totalorder %s22, 0
      %s294 = scalar_select %p293, %s22, 0
      %s295 = sadd.s32 %s294, %s292
      %s296 = scalar_lea.vmem %s5, %s295
      %v297 = vld [vmem:[%s273] sm:$0xff]
      %v298 = vld [vmem:[%s273 + $0x8] sm:$0xff]
      %v299 = vld [vmem:[%s273 + $0x10] sm:$0xff]
      %v300 = vld [vmem:[%s273 + $0x18] sm:$0xff]
      %v301 = vld [vmem:[%s273 + $0x20] sm:$0xff]
      %v302 = vld [vmem:[%s273 + $0x28] sm:$0xff]
      %v303 = vld [vmem:[%s273 + $0x30] sm:$0xff]
      %v304 = vld [vmem:[%s273 + $0x38] sm:$0xff]
      %v305 = vld [vmem:[%s273 + $0x40] sm:$0xff]
      %v306 = vld [vmem:[%s273 + $0x48] sm:$0xff]
      %v307 = vld [vmem:[%s273 + $0x50] sm:$0xff]
      %v308 = vld [vmem:[%s273 + $0x58] sm:$0xff]
      %v309 = vld [vmem:[%s273 + $0x60] sm:$0xff]
      %v310 = vld [vmem:[%s273 + $0x68] sm:$0xff]
      %v311 = vld [vmem:[%s273 + $0x70] sm:$0xff]
      %v312 = vld [vmem:[%s273 + $0x78] sm:$0xff]
      %v313 = vld [vmem:[%s273 + $0x80] sm:$0xff]
      %v314 = vld [vmem:[%s273 + $0x88] sm:$0xff]
      %v315 = vld [vmem:[%s273 + $0x90] sm:$0xff]
      %v316 = vld [vmem:[%s273 + $0x98] sm:$0xff]
      %v317 = vld [vmem:[%s273 + $0xa0] sm:$0xff]
      %v318 = vld [vmem:[%s273 + $0xa8] sm:$0xff]
      %v319 = vld [vmem:[%s273 + $0xb0] sm:$0xff]
      %v320 = vld [vmem:[%s273 + $0xb8] sm:$0xff]
      %v321 = vld [vmem:[%s273 + $0xc0] sm:$0xff]
      %v322 = vld [vmem:[%s273 + $0xc8] sm:$0xff]
      %v323 = vld [vmem:[%s273 + $0xd0] sm:$0xff]
      %v324 = vld [vmem:[%s273 + $0xd8] sm:$0xff]
      %v325 = vld [vmem:[%s273 + $0xe0] sm:$0xff]
      %v326 = vld [vmem:[%s273 + $0xe8] sm:$0xff]
      %v327 = vld [vmem:[%s273 + $0xf0] sm:$0xff]
      %v328 = vld [vmem:[%s273 + $0xf8] sm:$0xff]
      %v329 = vld [vmem:[%s1] sm:$0xff]
      %v330 = vld [vmem:[%s1 + $0x8] sm:$0xff]
      %v331 = vld [vmem:[%s1 + $0x10] sm:$0xff]
      %v332 = vld [vmem:[%s1 + $0x18] sm:$0xff]
      %v333 = vld [vmem:[%s1 + $0x20] sm:$0xff]
      %v334 = vld [vmem:[%s1 + $0x28] sm:$0xff]
      %v335 = vld [vmem:[%s1 + $0x30] sm:$0xff]
      %v336 = vld [vmem:[%s1 + $0x38] sm:$0xff]
      %v337 = vld [vmem:[%s1 + $0x40] sm:$0xff]
      %v338 = vld [vmem:[%s2] sm:$0x1]
      %v340 = vlaneseq
      %v341 = vshrl.u32 %v340, 7
      %v342 = vsub.s32 0, %v341
      %v343 = vrot.slane %v338, %v342
      %vm345 = vcmask 588800
      %v347 = vsel %vm345, %v297, 0
      %v350 = vsel %vm345, %v298, 0
      %v353 = vsel %vm345, %v299, 0
      %v356 = vsel %vm345, %v300, 0
      %v359 = vsel %vm345, %v301, 0
      %v362 = vsel %vm345, %v302, 0
      %v365 = vsel %vm345, %v303, 0
      %v368 = vsel %vm345, %v304, 0
      %v371 = vsel %vm345, %v305, 0
      %v374 = vsel %vm345, %v306, 0
      %v377 = vsel %vm345, %v307, 0
      %v380 = vsel %vm345, %v308, 0
      %v383 = vsel %vm345, %v309, 0
      %v386 = vsel %vm345, %v310, 0
      %v389 = vsel %vm345, %v311, 0
      %v392 = vsel %vm345, %v312, 0
      %v395 = vsel %vm345, %v313, 0
      %v398 = vsel %vm345, %v314, 0
      %v401 = vsel %vm345, %v315, 0
      %v404 = vsel %vm345, %v316, 0
      %v407 = vsel %vm345, %v317, 0
      %v410 = vsel %vm345, %v318, 0
      %v413 = vsel %vm345, %v319, 0
      %v416 = vsel %vm345, %v320, 0
      %v419 = vsel %vm345, %v321, 0
      %v422 = vsel %vm345, %v322, 0
      %v425 = vsel %vm345, %v323, 0
      %v428 = vsel %vm345, %v324, 0
      %v431 = vsel %vm345, %v325, 0
      %v434 = vsel %vm345, %v326, 0
      %v437 = vsel %vm345, %v327, 0
      %v440 = vsel %vm345, %v328, 0
      %442 = vmatprep.subr.mxu0 0.0
      %443 = vmatpush1.msra.mxu0 %v329
      %444 = vmatprep.subr.mxu0 0.0
      %445 = vmatpush1.msra.mxu0 %v330
      %446 = vmatprep.subr.mxu0 0.0
      %447 = vmatpush1.msra.mxu0 %v331
      %448 = vmatprep.subr.mxu0 0.0
      %449 = vmatpush1.msra.mxu0 %v332
      %450 = vmatprep.subr.mxu0 0.0
      %451 = vmatpush1.msra.mxu0 %v333
      %452 = vmatprep.subr.mxu0 0.0
      %453 = vmatpush1.msra.mxu0 %v334
      %454 = vmatprep.subr.mxu0 0.0
      %455 = vmatpush1.msra.mxu0 %v335
      %456 = vmatprep.subr.mxu0 0.0
      %457 = vmatpush1.msra.mxu0 %v336
      %458 = vmatprep.subr.mxu0 0.0
      %459 = vmatpush1.msra.mxu0 %v337
      %460 = vmatprep.subr.mxu0 0.0
      %461 = vmatpush1.msra.mxu0 0.0
      %462 = vmatprep.subr.mxu0 0.0
      %463 = vmatpush1.msra.mxu0 0.0
      %464 = vmatprep.subr.mxu0 0.0
      %465 = vmatpush1.msra.mxu0 0.0
      %466 = vmatprep.subr.mxu0 0.0
      %467 = vmatpush1.msra.mxu0 0.0
      %468 = vmatprep.subr.mxu0 0.0
      %469 = vmatpush1.msra.mxu0 0.0
      %470 = vmatprep.subr.mxu0 0.0
      %471 = vmatpush1.msra.mxu0 0.0
      %472 = vmatprep.subr.mxu0 0.0
      %473 = vmatpush1.msra.mxu0 0.0
      %474 = vmatprep.subr.mxu0 0.0
      %475 = vmatpush1.msra.mxu0 0.0
      %476 = vmatprep.subr.mxu0 0.0
      %477 = vmatpush1.msra.mxu0 0.0
      %478 = vmatprep.subr.mxu0 0.0
      %479 = vmatpush1.msra.mxu0 0.0
      %480 = vmatprep.subr.mxu0 0.0
      %481 = vmatpush1.msra.mxu0 0.0
      %482 = vmatprep.subr.mxu0 0.0
      %483 = vmatpush1.msra.mxu0 0.0
      %484 = vmatprep.subr.mxu0 0.0
      %485 = vmatpush1.msra.mxu0 0.0
      %486 = vmatprep.subr.mxu0 0.0
      %487 = vmatpush1.msra.mxu0 0.0
      %488 = vmatprep.subr.mxu0 0.0
      %489 = vmatpush1.msra.mxu0 0.0
      %490 = vmatprep.subr.mxu0 0.0
      %491 = vmatpush1.msra.mxu0 0.0
      %492 = vmatprep.subr.mxu0 0.0
      %493 = vmatpush1.msra.mxu0 0.0
      %494 = vmatprep.subr.mxu0 0.0
      %495 = vmatpush1.msra.mxu0 0.0
      %496 = vmatprep.subr.mxu0 0.0
      %497 = vmatpush1.msra.mxu0 0.0
      %498 = vmatprep.subr.mxu0 0.0
      %499 = vmatpush1.msra.mxu0 0.0
      %500 = vmatprep.subr.mxu0 0.0
      %501 = vmatpush1.msra.mxu0 0.0
      %502 = vmatprep.subr.mxu0 0.0
      %503 = vmatpush1.msra.mxu0 0.0
      %504 = vmatprep.subr.mxu0 0.0
      %505 = vmatpush1.msra.mxu0 0.0
      %506 = vmatprep.mubr.f32.mxu0 0.0
      %507 = vmatmul.mubr.f32.gmra.mrb[0].mxu0 %v347
      %v508 = vpop.f32.mrb[0].mxu0
      %v509 = vadd.f32 %v343, %v508
      %v510 = vpop.f32.mrb[0].mxu0
      %511 = vmatprep.mubr.f32.mxu0 0.0
      %512 = vmatmul.mubr.f32.gmra.mrb[0].mxu0 %v350
      %v513 = vpop.f32.mrb[0].mxu0
      %v514 = vadd.f32 %v343, %v513
      %v515 = vpop.f32.mrb[0].mxu0
      %516 = vmatprep.mubr.f32.mxu0 0.0
      %517 = vmatmul.mubr.f32.gmra.mrb[0].mxu0 %v353
      %v518 = vpop.f32.mrb[0].mxu0
      %v519 = vadd.f32 %v343, %v518
      %v520 = vpop.f32.mrb[0].mxu0
      %521 = vmatprep.mubr.f32.mxu0 0.0
      %522 = vmatmul.mubr.f32.gmra.mrb[0].mxu0 %v356
      %v523 = vpop.f32.mrb[0].mxu0
      %v524 = vadd.f32 %v343, %v523
      %v525 = vpop.f32.mrb[0].mxu0
      %526 = vmatprep.mubr.f32.mxu0 0.0
      %527 = vmatmul.mubr.f32.gmra.mrb[0].mxu0 %v359
      %v528 = vpop.f32.mrb[0].mxu0
      %v529 = vadd.f32 %v343, %v528
      %v530 = vpop.f32.mrb[0].mxu0
      %531 = vmatprep.mubr.f32.mxu0 0.0
      %532 = vmatmul.mubr.f32.gmra.mrb[0].mxu0 %v362
      %v533 = vpop.f32.mrb[0].mxu0
      %v534 = vadd.f32 %v343, %v533
      %v535 = vpop.f32.mrb[0].mxu0
      %536 = vmatprep.mubr.f32.mxu0 0.0
      %537 = vmatmul.mubr.f32.gmra.mrb[0].mxu0 %v365
      %v538 = vpop.f32.mrb[0].mxu0
      %v539 = vadd.f32 %v343, %v538
      %v540 = vpop.f32.mrb[0].mxu0
      %541 = vmatprep.mubr.f32.mxu0 0.0
      %542 = vmatmul.mubr.f32.gmra.mrb[0].mxu0 %v368
      %v543 = vpop.f32.mrb[0].mxu0
      %v544 = vadd.f32 %v343, %v543
      %v545 = vpop.f32.mrb[0].mxu0
      %546 = vmatprep.mubr.f32.mxu0 0.0
      %547 = vmatmul.mubr.f32.gmra.mrb[0].mxu0 %v371
      %v548 = vpop.f32.mrb[0].mxu0
      %v549 = vadd.f32 %v343, %v548
      %v550 = vpop.f32.mrb[0].mxu0
      %551 = vmatprep.mubr.f32.mxu0 0.0
      %552 = vmatmul.mubr.f32.gmra.mrb[0].mxu0 %v374
      %v553 = vpop.f32.mrb[0].mxu0
      %v554 = vadd.f32 %v343, %v553
      %v555 = vpop.f32.mrb[0].mxu0
      %556 = vmatprep.mubr.f32.mxu0 0.0
      %557 = vmatmul.mubr.f32.gmra.mrb[0].mxu0 %v377
      %v558 = vpop.f32.mrb[0].mxu0
      %v559 = vadd.f32 %v343, %v558
      %v560 = vpop.f32.mrb[0].mxu0
      %561 = vmatprep.mubr.f32.mxu0 0.0
      %562 = vmatmul.mubr.f32.gmra.mrb[0].mxu0 %v380
      %v563 = vpop.f32.mrb[0].mxu0
      %v564 = vadd.f32 %v343, %v563
      %v565 = vpop.f32.mrb[0].mxu0
      %566 = vmatprep.mubr.f32.mxu0 0.0
      %567 = vmatmul.mubr.f32.gmra.mrb[0].mxu0 %v383
      %v568 = vpop.f32.mrb[0].mxu0
      %v569 = vadd.f32 %v343, %v568
      %v570 = vpop.f32.mrb[0].mxu0
      %571 = vmatprep.mubr.f32.mxu0 0.0
      %572 = vmatmul.mubr.f32.gmra.mrb[0].mxu0 %v386
      %v573 = vpop.f32.mrb[0].mxu0
      %v574 = vadd.f32 %v343, %v573
      %v575 = vpop.f32.mrb[0].mxu0
      %576 = vmatprep.mubr.f32.mxu0 0.0
      %577 = vmatmul.mubr.f32.gmra.mrb[0].mxu0 %v389
      %v578 = vpop.f32.mrb[0].mxu0
      %v579 = vadd.f32 %v343, %v578
      %v580 = vpop.f32.mrb[0].mxu0
      %581 = vmatprep.mubr.f32.mxu0 0.0
      %582 = vmatmul.mubr.f32.gmra.mrb[0].mxu0 %v392
      %v583 = vpop.f32.mrb[0].mxu0
      %v584 = vadd.f32 %v343, %v583
      %v585 = vpop.f32.mrb[0].mxu0
      %586 = vmatprep.mubr.f32.mxu0 0.0
      %587 = vmatmul.mubr.f32.gmra.mrb[0].mxu0 %v395
      %v588 = vpop.f32.mrb[0].mxu0
      %v589 = vadd.f32 %v343, %v588
      %v590 = vpop.f32.mrb[0].mxu0
      %591 = vmatprep.mubr.f32.mxu0 0.0
      %592 = vmatmul.mubr.f32.gmra.mrb[0].mxu0 %v398
      %v593 = vpop.f32.mrb[0].mxu0
      %v594 = vadd.f32 %v343, %v593
      %v595 = vpop.f32.mrb[0].mxu0
      %596 = vmatprep.mubr.f32.mxu0 0.0
      %597 = vmatmul.mubr.f32.gmra.mrb[0].mxu0 %v401
      %v598 = vpop.f32.mrb[0].mxu0
      %v599 = vadd.f32 %v343, %v598
      %v600 = vpop.f32.mrb[0].mxu0
      %601 = vmatprep.mubr.f32.mxu0 0.0
      %602 = vmatmul.mubr.f32.gmra.mrb[0].mxu0 %v404
      %v603 = vpop.f32.mrb[0].mxu0
      %v604 = vadd.f32 %v343, %v603
      %v605 = vpop.f32.mrb[0].mxu0
      %606 = vmatprep.mubr.f32.mxu0 0.0
      %607 = vmatmul.mubr.f32.gmra.mrb[0].mxu0 %v407
      %v608 = vpop.f32.mrb[0].mxu0
      %v609 = vadd.f32 %v343, %v608
      %v610 = vpop.f32.mrb[0].mxu0
      %611 = vmatprep.mubr.f32.mxu0 0.0
      %612 = vmatmul.mubr.f32.gmra.mrb[0].mxu0 %v410
      %v613 = vpop.f32.mrb[0].mxu0
      %v614 = vadd.f32 %v343, %v613
      %v615 = vpop.f32.mrb[0].mxu0
      %616 = vmatprep.mubr.f32.mxu0 0.0
      %617 = vmatmul.mubr.f32.gmra.mrb[0].mxu0 %v413
      %v618 = vpop.f32.mrb[0].mxu0
      %v619 = vadd.f32 %v343, %v618
      %v620 = vpop.f32.mrb[0].mxu0
      %621 = vmatprep.mubr.f32.mxu0 0.0
      %622 = vmatmul.mubr.f32.gmra.mrb[0].mxu0 %v416
      %v623 = vpop.f32.mrb[0].mxu0
      %v624 = vadd.f32 %v343, %v623
      %v625 = vpop.f32.mrb[0].mxu0
      %626 = vmatprep.mubr.f32.mxu0 0.0
      %627 = vmatmul.mubr.f32.gmra.mrb[0].mxu0 %v419
      %v628 = vpop.f32.mrb[0].mxu0
      %v629 = vadd.f32 %v343, %v628
      %v630 = vpop.f32.mrb[0].mxu0
      %631 = vmatprep.mubr.f32.mxu0 0.0
      %632 = vmatmul.mubr.f32.gmra.mrb[0].mxu0 %v422
      %v633 = vpop.f32.mrb[0].mxu0
      %v634 = vadd.f32 %v343, %v633
      %v635 = vpop.f32.mrb[0].mxu0
      %636 = vmatprep.mubr.f32.mxu0 0.0
      %637 = vmatmul.mubr.f32.gmra.mrb[0].mxu0 %v425
      %v638 = vpop.f32.mrb[0].mxu0
      %v639 = vadd.f32 %v343, %v638
      %v640 = vpop.f32.mrb[0].mxu0
      %641 = vmatprep.mubr.f32.mxu0 0.0
      %642 = vmatmul.mubr.f32.gmra.mrb[0].mxu0 %v428
      %v643 = vpop.f32.mrb[0].mxu0
      %v644 = vadd.f32 %v343, %v643
      %v645 = vpop.f32.mrb[0].mxu0
      %646 = vmatprep.mubr.f32.mxu0 0.0
      %647 = vmatmul.mubr.f32.gmra.mrb[0].mxu0 %v431
      %v648 = vpop.f32.mrb[0].mxu0
      %v649 = vadd.f32 %v343, %v648
      %v650 = vpop.f32.mrb[0].mxu0
      %651 = vmatprep.mubr.f32.mxu0 0.0
      %652 = vmatmul.mubr.f32.gmra.mrb[0].mxu0 %v434
      %v653 = vpop.f32.mrb[0].mxu0
      %v654 = vadd.f32 %v343, %v653
      %v655 = vpop.f32.mrb[0].mxu0
      %656 = vmatprep.mubr.f32.mxu0 0.0
      %657 = vmatmul.mubr.f32.gmra.mrb[0].mxu0 %v437
      %v658 = vpop.f32.mrb[0].mxu0
      %v659 = vadd.f32 %v343, %v658
      %v660 = vpop.f32.mrb[0].mxu0
      %661 = vmatprep.mubr.f32.mxu0 0.0
      %662 = vmatmul.mubr.f32.gmra.mrb[0].mxu0 %v440
      %v663 = vpop.f32.mrb[0].mxu0
      %v664 = vadd.f32 %v343, %v663
      %v665 = vpop.f32.mrb[0].mxu0
      %666 = vdwg.mxu0
      %v667 = vpack.c.bf16 %v514, %v509
      %v668 = vpack.c.bf16 %v524, %v519
      %v669 = vpack.c.bf16 %v534, %v529
      %v670 = vpack.c.bf16 %v544, %v539
      %v671 = vpack.c.bf16 %v554, %v549
      %v672 = vpack.c.bf16 %v564, %v559
      %v673 = vpack.c.bf16 %v574, %v569
      %v674 = vpack.c.bf16 %v584, %v579
      %v675 = vpack.c.bf16 %v594, %v589
      %v676 = vpack.c.bf16 %v604, %v599
      %v677 = vpack.c.bf16 %v614, %v609
      %v678 = vpack.c.bf16 %v624, %v619
      %v679 = vpack.c.bf16 %v634, %v629
      %v680 = vpack.c.bf16 %v644, %v639
      %v681 = vpack.c.bf16 %v654, %v649
      %v682 = vpack.c.bf16 %v664, %v659
      %v699 = vunpack.c.l.b16 %v667
      %v700 = vunpack.c.h.b16 %v667
      %v701 = vunpack.c.l.b16 %v668
      %v702 = vunpack.c.h.b16 %v668
      %v703 = vunpack.c.l.b16 %v669
      %v704 = vunpack.c.h.b16 %v669
      %v705 = vunpack.c.l.b16 %v670
      %v706 = vunpack.c.h.b16 %v670
      %v707 = vunpack.c.l.b16 %v671
      %v708 = vunpack.c.h.b16 %v671
      %v709 = vunpack.c.l.b16 %v672
      %v710 = vunpack.c.h.b16 %v672
      %v711 = vunpack.c.l.b16 %v673
      %v712 = vunpack.c.h.b16 %v673
      %v713 = vunpack.c.l.b16 %v674
      %v714 = vunpack.c.h.b16 %v674
      %v715 = vunpack.c.l.b16 %v675
      %v716 = vunpack.c.h.b16 %v675
      %v717 = vunpack.c.l.b16 %v676
      %v718 = vunpack.c.h.b16 %v676
      %v719 = vunpack.c.l.b16 %v677
      %v720 = vunpack.c.h.b16 %v677
      %v721 = vunpack.c.l.b16 %v678
      %v722 = vunpack.c.h.b16 %v678
      %v723 = vunpack.c.l.b16 %v679
      %v724 = vunpack.c.h.b16 %v679
      %v725 = vunpack.c.l.b16 %v680
      %v726 = vunpack.c.h.b16 %v680
      %v727 = vunpack.c.l.b16 %v681
      %v728 = vunpack.c.h.b16 %v681
      %v729 = vunpack.c.l.b16 %v682
      %v730 = vunpack.c.h.b16 %v682
      %v731 = vpack.c.b16 %v699, %v699
      %v732 = vpack.c.b16 %v700, %v700
      %v733 = vpack.c.b16 %v701, %v701
      %v734 = vpack.c.b16 %v702, %v702
      %v735 = vpack.c.b16 %v703, %v703
      %v736 = vpack.c.b16 %v704, %v704
      %v737 = vpack.c.b16 %v705, %v705
      %v738 = vpack.c.b16 %v706, %v706
      %v739 = vpack.c.b16 %v707, %v707
      %v740 = vpack.c.b16 %v708, %v708
      %v741 = vpack.c.b16 %v709, %v709
      %v742 = vpack.c.b16 %v710, %v710
      %v743 = vpack.c.b16 %v711, %v711
      %v744 = vpack.c.b16 %v712, %v712
      %v745 = vpack.c.b16 %v713, %v713
      %v746 = vpack.c.b16 %v714, %v714
      %v747 = vpack.c.b16 %v715, %v715
      %v748 = vpack.c.b16 %v716, %v716
      %v749 = vpack.c.b16 %v717, %v717
      %v750 = vpack.c.b16 %v718, %v718
      %v751 = vpack.c.b16 %v719, %v719
      %v752 = vpack.c.b16 %v720, %v720
      %v753 = vpack.c.b16 %v721, %v721
      %v754 = vpack.c.b16 %v722, %v722
      %v755 = vpack.c.b16 %v723, %v723
      %v756 = vpack.c.b16 %v724, %v724
      %v757 = vpack.c.b16 %v725, %v725
      %v758 = vpack.c.b16 %v726, %v726
      %v759 = vpack.c.b16 %v727, %v727
      %v760 = vpack.c.b16 %v728, %v728
      %v761 = vpack.c.b16 %v729, %v729
      %v762 = vpack.c.b16 %v730, %v730
      %795 = vst [vmem:[%s283] sm:$0xf] %v731
      %796 = vst [vmem:[%s283 + $0x4] sm:$0xf] %v732
      %797 = vst [vmem:[%s283 + $0x8] sm:$0xf] %v733
      %798 = vst [vmem:[%s283 + $0xc] sm:$0xf] %v734
      %799 = vst [vmem:[%s283 + $0x10] sm:$0xf] %v735
      %800 = vst [vmem:[%s283 + $0x14] sm:$0xf] %v736
      %801 = vst [vmem:[%s283 + $0x18] sm:$0xf] %v737
      %802 = vst [vmem:[%s283 + $0x1c] sm:$0xf] %v738
      %803 = vst [vmem:[%s283 + $0x20] sm:$0xf] %v739
      %804 = vst [vmem:[%s283 + $0x24] sm:$0xf] %v740
      %805 = vst [vmem:[%s283 + $0x28] sm:$0xf] %v741
      %806 = vst [vmem:[%s283 + $0x2c] sm:$0xf] %v742
      %807 = vst [vmem:[%s283 + $0x30] sm:$0xf] %v743
      %808 = vst [vmem:[%s283 + $0x34] sm:$0xf] %v744
      %809 = vst [vmem:[%s283 + $0x38] sm:$0xf] %v745
      %810 = vst [vmem:[%s283 + $0x3c] sm:$0xf] %v746
      %811 = vst [vmem:[%s283 + $0x40] sm:$0xf] %v747
      %812 = vst [vmem:[%s283 + $0x44] sm:$0xf] %v748
      %813 = vst [vmem:[%s283 + $0x48] sm:$0xf] %v749
      %814 = vst [vmem:[%s283 + $0x4c] sm:$0xf] %v750
      %815 = vst [vmem:[%s283 + $0x50] sm:$0xf] %v751
      %816 = vst [vmem:[%s283 + $0x54] sm:$0xf] %v752
      %817 = vst [vmem:[%s283 + $0x58] sm:$0xf] %v753
      %818 = vst [vmem:[%s283 + $0x5c] sm:$0xf] %v754
      %819 = vst [vmem:[%s283 + $0x60] sm:$0xf] %v755
      %820 = vst [vmem:[%s283 + $0x64] sm:$0xf] %v756
      %821 = vst [vmem:[%s283 + $0x68] sm:$0xf] %v757
      %822 = vst [vmem:[%s283 + $0x6c] sm:$0xf] %v758
      %823 = vst [vmem:[%s283 + $0x70] sm:$0xf] %v759
      %824 = vst [vmem:[%s283 + $0x74] sm:$0xf] %v760
      %825 = vst [vmem:[%s283 + $0x78] sm:$0xf] %v761
      %826 = vst [vmem:[%s283 + $0x7c] sm:$0xf] %v762
      %v827 = vadd.f32 %v509, %v514
      %v828 = vadd.f32 %v827, %v519
      %v829 = vadd.f32 %v828, %v524
      %v830 = vadd.f32 %v829, %v529
      %v831 = vadd.f32 %v830, %v534
      %v832 = vadd.f32 %v831, %v539
      %v833 = vadd.f32 %v832, %v544
      %v834 = vadd.f32 %v833, %v549
      %v835 = vadd.f32 %v834, %v554
      %v836 = vadd.f32 %v835, %v559
      %v837 = vadd.f32 %v836, %v564
      %v838 = vadd.f32 %v837, %v569
      %v839 = vadd.f32 %v838, %v574
      %v840 = vadd.f32 %v839, %v579
      %v841 = vadd.f32 %v840, %v584
      %v842 = vadd.f32 %v841, %v589
      %v843 = vadd.f32 %v842, %v594
      %v844 = vadd.f32 %v843, %v599
      %v845 = vadd.f32 %v844, %v604
      %v846 = vadd.f32 %v845, %v609
      %v847 = vadd.f32 %v846, %v614
      %v848 = vadd.f32 %v847, %v619
      %v849 = vadd.f32 %v848, %v624
      %v850 = vadd.f32 %v849, %v629
      %v851 = vadd.f32 %v850, %v634
      %v852 = vadd.f32 %v851, %v639
      %v853 = vadd.f32 %v852, %v644
      %v854 = vadd.f32 %v853, %v649
      %v855 = vadd.f32 %v854, %v654
      %v856 = vadd.f32 %v855, %v659
      %v857 = vadd.f32 %v856, %v664
      %v858 = vrot.slane %v857, 4
      %v859 = vadd.f32 %v857, %v858
      %v860 = vrot.slane %v859, 2
      %v861 = vadd.f32 %v859, %v860
      %v862 = vrot.slane %v861, 1
      %v863 = vadd.f32 %v861, %v862
      %864 = vst [vmem:[%s290] sm:$0x1] %v863
      %v865 = vmul.f32 %v509, %v509
      %v866 = vmul.f32 %v514, %v514
      %v867 = vmul.f32 %v519, %v519
      %v868 = vmul.f32 %v524, %v524
      %v869 = vmul.f32 %v529, %v529
      %v870 = vmul.f32 %v534, %v534
      %v871 = vmul.f32 %v539, %v539
      %v872 = vmul.f32 %v544, %v544
      %v873 = vmul.f32 %v549, %v549
      %v874 = vmul.f32 %v554, %v554
      %v875 = vmul.f32 %v559, %v559
      %v876 = vmul.f32 %v564, %v564
      %v877 = vmul.f32 %v569, %v569
      %v878 = vmul.f32 %v574, %v574
      %v879 = vmul.f32 %v579, %v579
      %v880 = vmul.f32 %v584, %v584
      %v881 = vmul.f32 %v589, %v589
      %v882 = vmul.f32 %v594, %v594
      %v883 = vmul.f32 %v599, %v599
      %v884 = vmul.f32 %v604, %v604
      %v885 = vmul.f32 %v609, %v609
      %v886 = vmul.f32 %v614, %v614
      %v887 = vmul.f32 %v619, %v619
      %v888 = vmul.f32 %v624, %v624
      %v889 = vmul.f32 %v629, %v629
      %v890 = vmul.f32 %v634, %v634
      %v891 = vmul.f32 %v639, %v639
      %v892 = vmul.f32 %v644, %v644
      %v893 = vmul.f32 %v649, %v649
      %v894 = vmul.f32 %v654, %v654
      %v895 = vmul.f32 %v659, %v659
      %v896 = vmul.f32 %v664, %v664
      %v897 = vadd.f32 %v865, %v866
      %v898 = vadd.f32 %v897, %v867
      %v899 = vadd.f32 %v898, %v868
      %v900 = vadd.f32 %v899, %v869
      %v901 = vadd.f32 %v900, %v870
      %v902 = vadd.f32 %v901, %v871
      %v903 = vadd.f32 %v902, %v872
      %v904 = vadd.f32 %v903, %v873
      %v905 = vadd.f32 %v904, %v874
      %v906 = vadd.f32 %v905, %v875
      %v907 = vadd.f32 %v906, %v876
      %v908 = vadd.f32 %v907, %v877
      %v909 = vadd.f32 %v908, %v878
      %v910 = vadd.f32 %v909, %v879
      %v911 = vadd.f32 %v910, %v880
      %v912 = vadd.f32 %v911, %v881
      %v913 = vadd.f32 %v912, %v882
      %v914 = vadd.f32 %v913, %v883
      %v915 = vadd.f32 %v914, %v884
      %v916 = vadd.f32 %v915, %v885
      %v917 = vadd.f32 %v916, %v886
      %v918 = vadd.f32 %v917, %v887
      %v919 = vadd.f32 %v918, %v888
      %v920 = vadd.f32 %v919, %v889
      %v921 = vadd.f32 %v920, %v890
      %v922 = vadd.f32 %v921, %v891
      %v923 = vadd.f32 %v922, %v892
      %v924 = vadd.f32 %v923, %v893
      %v925 = vadd.f32 %v924, %v894
      %v926 = vadd.f32 %v925, %v895
      %v927 = vadd.f32 %v926, %v896
      %v928 = vrot.slane %v927, 4
      %v929 = vadd.f32 %v927, %v928
      %v930 = vrot.slane %v929, 2
      %v931 = vadd.f32 %v929, %v930
      %v932 = vrot.slane %v931, 1
      %v933 = vadd.f32 %v931, %v932
      %934 = vst [vmem:[%s296] sm:$0x1] %v933
      %s935 = smul.u32 32, %s22
      %p936 = scmp.lt.s32.totalorder %s21, 1
      %s937 = scalar_select %p936, %s21, 1
      %p938 = scmp.lt.s32.totalorder %s935, 31
      %s939 = scalar_select %p938, %s935, 31
      %s940 = smul.addr %s937, 32
      %s941 = sadd.s32 %s939, %s940
      %s942 = smul.addr %s941, 4
      %s943 = scalar_lea.vmem %s3, %s942
      %p944 = scmp.lt.s32.totalorder %s21, 1
      %s945 = scalar_select %p944, %s21, 1
      %p946 = scmp.lt.s32.totalorder %s22, 0
      %s947 = scalar_select %p946, %s22, 0
      %s948 = sadd.s32 %s947, %s945
      %s949 = scalar_lea.vmem %s4, %s948
      %p950 = scmp.lt.s32.totalorder %s21, 1
      %s951 = scalar_select %p950, %s21, 1
      %p952 = scmp.lt.s32.totalorder %s22, 0
      %s953 = scalar_select %p952, %s22, 0
      %s954 = sadd.s32 %s953, %s951
      %s955 = scalar_lea.vmem %s5, %s954
      // Predicated region
      $region33: #{idm_vton_forward.2} parent=31 // pred_check
        %p956 = pneg %p119
      $region34: #{idm_vton_forward.2} parent=31 // pred_check_branch
        %958 = sbr.rel (%p956) target = $region36
      $region35: #{idm_vton_forward.2} parent=31 // pred_region
        %s959 = smul.u32 32, %s22
      $region36: #{idm_vton_forward.2} parent=31 // pred_fallthru
        _
      // Predicated region
      $region37: #{idm_vton_forward.2} parent=31 // pred_check
        %p960 = pneg %p147
      $region38: #{idm_vton_forward.2} parent=31 // pred_check_branch
        %962 = sbr.rel (%p960) target = $region40
      $region39: #{idm_vton_forward.2} parent=31 // pred_region
        _
      $region40: #{idm_vton_forward.2} parent=31 // pred_fallthru
        _
      // Predicated region
      $region41: #{idm_vton_forward.2} parent=31 // pred_check
        %p963 = pneg %p175
      $region42: #{idm_vton_forward.2} parent=31 // pred_check_branch
        %965 = sbr.rel (%p963) target = $region44
      $region43: #{idm_vton_forward.2} parent=31 // pred_region
        _
      $region44: #{idm_vton_forward.2} parent=31 // pred_fallthru
        _
    $region32: #{idm_vton_forward.2} parent=5 // pred_fallthru
      _
    %p966 = scmp.le.s32.totalorder 2, %s12
    // Predicated region
    $region45: #{idm_vton_forward.2} parent=5 // pred_check
      %p967 = pneg %p966
    $region46: #{idm_vton_forward.2} parent=5 // pred_check_branch
      %969 = sbr.rel (%p967) target = $region48
    $region47: #{idm_vton_forward.2} parent=5 // pred_region
      %s970 = ssub.s32 %s12, 2
      // Predicated region
      $region49: #{idm_vton_forward.2} parent=47 // pred_check
        %p971 = pneg %p125
      $region50: #{idm_vton_forward.2} parent=47 // pred_check_branch
        %973 = sbr.rel (%p971) target = $region52
      $region51: #{idm_vton_forward.2} parent=47 // pred_region
        %s974 = smul.u32 32, %s24
        %p975 = scmp.lt.s32.totalorder %s23, 1
        %s976 = scalar_select %p975, %s23, 1
        %p977 = scmp.lt.s32.totalorder %s974, 31
        %s978 = scalar_select %p977, %s974, 31
        %s979 = smul.addr %s976, 32
        %s980 = sadd.s32 %s978, %s979
        %s981 = smul.addr %s980, 4
        %s982 = scalar_lea.vmem %s3, %s981
      $region52: #{idm_vton_forward.2} parent=47 // pred_fallthru
        _
      // Predicated region
      $region53: #{idm_vton_forward.2} parent=47 // pred_check
        %p983 = pneg %p153
      $region54: #{idm_vton_forward.2} parent=47 // pred_check_branch
        %985 = sbr.rel (%p983) target = $region56
      $region55: #{idm_vton_forward.2} parent=47 // pred_region
        %p986 = scmp.lt.s32.totalorder %s23, 1
        %s987 = scalar_select %p986, %s23, 1
        %p988 = scmp.lt.s32.totalorder %s24, 0
        %s989 = scalar_select %p988, %s24, 0
        %s990 = sadd.s32 %s989, %s987
        %s991 = scalar_lea.vmem %s4, %s990
      $region56: #{idm_vton_forward.2} parent=47 // pred_fallthru
        _
      // Predicated region
      $region57: #{idm_vton_forward.2} parent=47 // pred_check
        %p992 = pneg %p181
      $region58: #{idm_vton_forward.2} parent=47 // pred_check_branch
        %994 = sbr.rel (%p992) target = $region60
      $region59: #{idm_vton_forward.2} parent=47 // pred_region
        %p995 = scmp.lt.s32.totalorder %s23, 1
        %s996 = scalar_select %p995, %s23, 1
        %p997 = scmp.lt.s32.totalorder %s24, 0
        %s998 = scalar_select %p997, %s24, 0
        %s999 = sadd.s32 %s998, %s996
        %s1000 = scalar_lea.vmem %s5, %s999
      $region60: #{idm_vton_forward.2} parent=47 // pred_fallthru
        _
    $region48: #{idm_vton_forward.2} parent=5 // pred_fallthru
      _
  $region6: #{idm_vton_forward.2} parent=0 // loop_footer
    %s16 = sadd.s32 1, %s12
  $region7: #{idm_vton_forward.2} parent=0 // loop_footer_branch
    %11 = sbr.rel target = $region3
  $region8: #{idm_vton_forward.2} parent=0 // loop_exit
    _

// kernel: idm_vton_forward.3
$region0: #{idm_vton_forward.3}
  #allocation0 [shape = 'u32[]', space=smem, size = 0x4, offset = 0x4, fixed_abs, tag = 'smem constant byte address 0x4 - core index']
  #allocation1 [shape = 'u32[144,128]{1,0:T(1,128)}', space=vmem, size = 0x12000, scoped, tag = 'internal scratch']
  #allocation2 [shape = 'bf16[18,18,128]{2,1,0:T(8,128)(2,1)}', space=vmem, size = 0x1b000, scoped, tag = 'scratch operand']
  %s0 = inlined_call_operand.vmem [shape: bf16[2,16,16,128], index: 0, kind: input, shape index: {}, may-alias: {0,1,2}]
  %s1 = inlined_call_operand.vmem [shape: bf16[2,16,16,128], index: 1, kind: input, shape index: {}, may-alias: {0,1,2}]
  %s2 = inlined_call_operand.vmem [shape: bf16[2,16,16,128], index: 2, kind: input, shape index: {}, may-alias: {0,1,2}]
  %s3 = inlined_call_operand.vmem [shape: f32[2,1,128], index: 3, kind: input, shape index: {}]
  %s4 = inlined_call_operand.vmem [shape: f32[2,1,128], index: 4, kind: input, shape index: {}]
  %s5 = inlined_call_operand.vmem [shape: bf16[3,1152], index: 5, kind: input, shape index: {}]
  %s6 = inlined_call_operand.vmem [shape: f32[3,1], index: 6, kind: input, shape index: {}]
  %s7 = inlined_call_operand.vmem [shape: f32[2,3,256], index: 7, kind: output, shape index: {}]
  %s8 = sld [smem:[#allocation0]]
  $region77: #{idm_vton_forward.3} parent=0
    _
  %s10 = ssub.s32 1, %s8
  %s11 = scalar_select 0, %s10, %s8
  loop: start=0, step=1, limit=4
  $region2: #{idm_vton_forward.3} parent=0 // loop_pre_header
    _
  $region3: #{idm_vton_forward.3} parent=0 // loop_header
    %s13 = sphi 0, %s17
    %p14 = scmp.ge.s32.totalorder %s13, 4
    %s20 = sphi 0, %s32
    %s21 = sphi 0, %s28
    %s22 = sphi 0, %s20
    %s23 = sphi 0, %s21
    %s24 = sphi 0, %s22
    %s25 = sphi 0, %s23
    %s37 = sphi 0, %s39
    %s40 = sphi 0, %s37
    %s41 = sphi 0, %s40
    %s57 = sphi 0, %s41
    %s73 = sphi 0, %s75
    %s76 = sphi 0, %s73
    %s77 = sphi 0, %s76
    %s93 = sphi 0, %s77
    %s109 = sphi 0, %s111
    %s112 = sphi 0, %s109
    %s113 = sphi 0, %s112
    %s129 = sphi 0, %s113
    %s135 = sphi 0, %s137
    %s138 = sphi 0, %s135
    %s139 = sphi 0, %s138
    %s155 = sphi 0, %s139
    %s161 = sphi 0, %s163
    %s164 = sphi 0, %s161
    %s165 = sphi 0, %s164
    %s181 = sphi 0, %s165
    %s185 = sphi 0, %s185
    %s187 = sphi 0, %s185
    %s188 = sphi 0, %s187
    %s202 = sphi 0, %s188
    %s206 = sphi 0, %s206
    %s208 = sphi 0, %s206
    %s209 = sphi 0, %s208
    %s223 = sphi 0, %s209
    %s231 = sphi 0, %s233
    %s234 = sphi 0, %s231
    %s235 = sphi 0, %s234
    %s251 = sphi 0, %s235
  $region4: #{idm_vton_forward.3} parent=0 // loop_header_branch
    %16 = sbr.rel (%p14) target = $region8
  $region5: #{idm_vton_forward.3} parent=0 // loop_body
    %s18 = ssub.s32 %s13, 1
    %s19 = ssub.s32 %s13, 2
    %s26 = sadd.s32 1, %s21
    %p27 = scmp.ge.s32.totalorder %s26, 1
    %s28 = scalar_select %p27, 0, %s26
    %s29 = sadd.s32 1, %s20
    %s30 = scalar_select %p27, %s29, %s20
    %p31 = scmp.ge.s32.totalorder %s30, 2
    %s32 = scalar_select %p31, 0, %s30
    %s33 = ssub.s32 %s20, %s32
    %s34 = ssub.s32 %s21, %s28
    %s35 = sor.u32 %s33, %s34
    %p36 = scmp.eq.s32.totalorder %s35, 0
    %s38 = sadd.s32 %s37, 1
    %s39 = scalar_select %p36, %s37, %s38
    %p42 = pneg %p36
    %p43 = scmp.eq.s32.totalorder %s13, 1
    %p44 = por %p42, %p43
    %p45 = scmp.ne.s32.totalorder %s37, %s40
    %p46 = scmp.eq.s32.totalorder %s13, 0
    %p47 = por %p45, %p46
    %p48 = scmp.ne.s32.totalorder %s37, %s40
    %p49 = scmp.eq.s32.totalorder %s18, 1
    %p50 = por %p48, %p49
    %p51 = scmp.ne.s32.totalorder %s40, %s41
    %p52 = scmp.eq.s32.totalorder %s18, 0
    %p53 = por %p51, %p52
    %p54 = scmp.ne.s32.totalorder %s40, %s41
    %p55 = scmp.eq.s32.totalorder %s19, 1
    %p56 = por %p54, %p55
    %p58 = scmp.ne.s32.totalorder %s41, %s57
    %p59 = scmp.eq.s32.totalorder %s19, 0
    %p60 = por %p58, %p59
    %s61 = smul.u32 %s21, 16
    %s62 = ssub.s32 %s61, 1
    %p63 = scmp.gt.s32.totalorder %s62, 0
    %s64 = scalar_select %p63, %s62, 0
    %s65 = smul.u32 %s28, 16
    %s66 = ssub.s32 %s65, 1
    %p67 = scmp.gt.s32.totalorder %s66, 0
    %s68 = scalar_select %p67, %s66, 0
    %s69 = ssub.s32 %s20, %s32
    %s70 = ssub.s32 %s64, %s68
    %s71 = sor.u32 %s69, %s70
    %p72 = scmp.eq.s32.totalorder %s71, 0
    %s74 = sadd.s32 %s73, 1
    %s75 = scalar_select %p72, %s73, %s74
    %p78 = pneg %p72
    %p79 = scmp.eq.s32.totalorder %s13, 1
    %p80 = por %p78, %p79
    %p81 = scmp.ne.s32.totalorder %s73, %s76
    %p82 = scmp.eq.s32.totalorder %s13, 0
    %p83 = por %p81, %p82
    %p84 = scmp.ne.s32.totalorder %s73, %s76
    %p85 = scmp.eq.s32.totalorder %s18, 1
    %p86 = por %p84, %p85
    %p87 = scmp.ne.s32.totalorder %s76, %s77
    %p88 = scmp.eq.s32.totalorder %s18, 0
    %p89 = por %p87, %p88
    %p90 = scmp.ne.s32.totalorder %s76, %s77
    %p91 = scmp.eq.s32.totalorder %s19, 1
    %p92 = por %p90, %p91
    %p94 = scmp.ne.s32.totalorder %s77, %s93
    %p95 = scmp.eq.s32.totalorder %s19, 0
    %p96 = por %p94, %p95
    %s97 = sadd.s32 %s21, 1
    %s98 = smul.u32 %s97, 16
    %p99 = scmp.lt.s32.totalorder %s98, 15
    %s100 = scalar_select %p99, %s98, 15
    %s101 = sadd.s32 %s28, 1
    %s102 = smul.u32 %s101, 16
    %p103 = scmp.lt.s32.totalorder %s102, 15
    %s104 = scalar_select %p103, %s102, 15
    %s105 = ssub.s32 %s20, %s32
    %s106 = ssub.s32 %s100, %s104
    %s107 = sor.u32 %s105, %s106
    %p108 = scmp.eq.s32.totalorder %s107, 0
    %s110 = sadd.s32 %s109, 1
    %s111 = scalar_select %p108, %s109, %s110
    %p114 = pneg %p108
    %p115 = scmp.eq.s32.totalorder %s13, 1
    %p116 = por %p114, %p115
    %p117 = scmp.ne.s32.totalorder %s109, %s112
    %p118 = scmp.eq.s32.totalorder %s13, 0
    %p119 = por %p117, %p118
    %p120 = scmp.ne.s32.totalorder %s109, %s112
    %p121 = scmp.eq.s32.totalorder %s18, 1
    %p122 = por %p120, %p121
    %p123 = scmp.ne.s32.totalorder %s112, %s113
    %p124 = scmp.eq.s32.totalorder %s18, 0
    %p125 = por %p123, %p124
    %p126 = scmp.ne.s32.totalorder %s112, %s113
    %p127 = scmp.eq.s32.totalorder %s19, 1
    %p128 = por %p126, %p127
    %p130 = scmp.ne.s32.totalorder %s113, %s129
    %p131 = scmp.eq.s32.totalorder %s19, 0
    %p132 = por %p130, %p131
    %s133 = ssub.s32 %s20, %s32
    %p134 = scmp.eq.s32.totalorder %s133, 0
    %s136 = sadd.s32 %s135, 1
    %s137 = scalar_select %p134, %s135, %s136
    %p140 = pneg %p134
    %p141 = scmp.eq.s32.totalorder %s13, 1
    %p142 = por %p140, %p141
    %p143 = scmp.ne.s32.totalorder %s135, %s138
    %p144 = scmp.eq.s32.totalorder %s13, 0
    %p145 = por %p143, %p144
    %p146 = scmp.ne.s32.totalorder %s135, %s138
    %p147 = scmp.eq.s32.totalorder %s18, 1
    %p148 = por %p146, %p147
    %p149 = scmp.ne.s32.totalorder %s138, %s139
    %p150 = scmp.eq.s32.totalorder %s18, 0
    %p151 = por %p149, %p150
    %p152 = scmp.ne.s32.totalorder %s138, %s139
    %p153 = scmp.eq.s32.totalorder %s19, 1
    %p154 = por %p152, %p153
    %p156 = scmp.ne.s32.totalorder %s139, %s155
    %p157 = scmp.eq.s32.totalorder %s19, 0
    %p158 = por %p156, %p157
    %s159 = ssub.s32 %s20, %s32
    %p160 = scmp.eq.s32.totalorder %s159, 0
    %s162 = sadd.s32 %s161, 1
    %s163 = scalar_select %p160, %s161, %s162
    %p166 = pneg %p160
    %p167 = scmp.eq.s32.totalorder %s13, 1
    %p168 = por %p166, %p167
    %p169 = scmp.ne.s32.totalorder %s161, %s164
    %p170 = scmp.eq.s32.totalorder %s13, 0
    %p171 = por %p169, %p170
    %p172 = scmp.ne.s32.totalorder %s161, %s164
    %p173 = scmp.eq.s32.totalorder %s18, 1
    %p174 = por %p172, %p173
    %p175 = scmp.ne.s32.totalorder %s164, %s165
    %p176 = scmp.eq.s32.totalorder %s18, 0
    %p177 = por %p175, %p176
    %p178 = scmp.ne.s32.totalorder %s164, %s165
    %p179 = scmp.eq.s32.totalorder %s19, 1
    %p180 = por %p178, %p179
    %p182 = scmp.ne.s32.totalorder %s165, %s181
    %p183 = scmp.eq.s32.totalorder %s19, 0
    %p184 = por %p182, %p183
    %s186 = sadd.s32 %s185, 1
    %p189 = scmp.eq.s32.totalorder %s13, 1
    %p190 = scmp.ne.s32.totalorder %s185, %s187
    %p191 = scmp.eq.s32.totalorder %s13, 0
    %p192 = por %p190, %p191
    %p193 = scmp.ne.s32.totalorder %s185, %s187
    %p194 = scmp.eq.s32.totalorder %s18, 1
    %p195 = por %p193, %p194
    %p196 = scmp.ne.s32.totalorder %s187, %s188
    %p197 = scmp.eq.s32.totalorder %s18, 0
    %p198 = por %p196, %p197
    %p199 = scmp.ne.s32.totalorder %s187, %s188
    %p200 = scmp.eq.s32.totalorder %s19, 1
    %p201 = por %p199, %p200
    %p203 = scmp.ne.s32.totalorder %s188, %s202
    %p204 = scmp.eq.s32.totalorder %s19, 0
    %p205 = por %p203, %p204
    %s207 = sadd.s32 %s206, 1
    %p210 = scmp.eq.s32.totalorder %s13, 1
    %p211 = scmp.ne.s32.totalorder %s206, %s208
    %p212 = scmp.eq.s32.totalorder %s13, 0
    %p213 = por %p211, %p212
    %p214 = scmp.ne.s32.totalorder %s206, %s208
    %p215 = scmp.eq.s32.totalorder %s18, 1
    %p216 = por %p214, %p215
    %p217 = scmp.ne.s32.totalorder %s208, %s209
    %p218 = scmp.eq.s32.totalorder %s18, 0
    %p219 = por %p217, %p218
    %p220 = scmp.ne.s32.totalorder %s208, %s209
    %p221 = scmp.eq.s32.totalorder %s19, 1
    %p222 = por %p220, %p221
    %p224 = scmp.ne.s32.totalorder %s209, %s223
    %p225 = scmp.eq.s32.totalorder %s19, 0
    %p226 = por %p224, %p225
    %s227 = ssub.s32 %s20, %s32
    %s228 = ssub.s32 %s21, %s28
    %s229 = sor.u32 %s227, %s228
    %p230 = scmp.eq.s32.totalorder %s229, 0
    %s232 = sadd.s32 %s231, 1
    %s233 = scalar_select %p230, %s231, %s232
    %p236 = pneg %p230
    %p237 = scmp.eq.s32.totalorder %s13, 1
    %p238 = por %p236, %p237
    %p239 = scmp.ne.s32.totalorder %s231, %s234
    %p240 = scmp.eq.s32.totalorder %s13, 0
    %p241 = por %p239, %p240
    %p242 = scmp.ne.s32.totalorder %s231, %s234
    %p243 = scmp.eq.s32.totalorder %s18, 1
    %p244 = por %p242, %p243
    %p245 = scmp.ne.s32.totalorder %s234, %s235
    %p246 = scmp.eq.s32.totalorder %s18, 0
    %p247 = por %p245, %p246
    %p248 = scmp.ne.s32.totalorder %s234, %s235
    %p249 = scmp.eq.s32.totalorder %s19, 1
    %p250 = por %p248, %p249
    %p252 = scmp.ne.s32.totalorder %s235, %s251
    %p253 = scmp.eq.s32.totalorder %s19, 0
    %p254 = por %p252, %p253
    %p255 = scmp.le.s32.totalorder 1, %s13
    %p256 = scmp.lt.s32.totalorder %s13, 3
    %p257 = pnand %p255, %p256
    %p258 = pneg %p257
    // Predicated region
    $region9: #{idm_vton_forward.3} parent=5 // pred_check
      _
    $region10: #{idm_vton_forward.3} parent=5 // pred_check_branch
      %260 = sbr.rel (%p257) target = $region12
    $region11: #{idm_vton_forward.3} parent=5 // pred_region
      %s261 = ssub.s32 %s13, 1
      // Predicated region
      $region13: #{idm_vton_forward.3} parent=11 // pred_check
        %p262 = pneg %p198
      $region14: #{idm_vton_forward.3} parent=11 // pred_check_branch
        %264 = sbr.rel (%p262) target = $region16
      $region15: #{idm_vton_forward.3} parent=11 // pred_region
        _
      $region16: #{idm_vton_forward.3} parent=11 // pred_fallthru
        _
      // Predicated region
      $region17: #{idm_vton_forward.3} parent=11 // pred_check
        %p265 = pneg %p219
      $region18: #{idm_vton_forward.3} parent=11 // pred_check_branch
        %267 = sbr.rel (%p265) target = $region20
      $region19: #{idm_vton_forward.3} parent=11 // pred_region
        _
      $region20: #{idm_vton_forward.3} parent=11 // pred_fallthru
        _
    $region12: #{idm_vton_forward.3} parent=5 // pred_fallthru
      _
    %p268 = scmp.lt.s32.totalorder %s13, 2
    // Predicated region
    $region21: #{idm_vton_forward.3} parent=5 // pred_check
      %p269 = pneg %p268
    $region22: #{idm_vton_forward.3} parent=5 // pred_check_branch
      %271 = sbr.rel (%p269) target = $region24
    $region23: #{idm_vton_forward.3} parent=5 // pred_region
      // Predicated region
      $region25: #{idm_vton_forward.3} parent=23 // pred_check
        %p272 = pneg %p47
      $region26: #{idm_vton_forward.3} parent=23 // pred_check_branch
        %274 = sbr.rel (%p272) target = $region28
      $region27: #{idm_vton_forward.3} parent=23 // pred_region
        %s275 = smul.u32 16, %s21
        %p276 = scmp.lt.s32.totalorder %s20, 1
        %s277 = scalar_select %p276, %s20, 1
        %p278 = scmp.lt.s32.totalorder %s275, 15
        %s279 = scalar_select %p278, %s275, 15
        %s280 = smul.addr %s279, 2
        %s281 = smul.addr %s277, 32
        %s282 = sadd.s32 %s280, %s281
        %s283 = smul.addr %s282, 4
        %s284 = scalar_lea.vmem %s0, %s283
        %s285 = smul.u32 16, %s21
      $region28: #{idm_vton_forward.3} parent=23 // pred_fallthru
        _
      // Predicated region
      $region29: #{idm_vton_forward.3} parent=23 // pred_check
        %p286 = pneg %p83
      $region30: #{idm_vton_forward.3} parent=23 // pred_check_branch
        %288 = sbr.rel (%p286) target = $region32
      $region31: #{idm_vton_forward.3} parent=23 // pred_region
        %s289 = smul.u32 %s21, 16
        %s290 = ssub.s32 %s289, 1
        %p291 = scmp.gt.s32.totalorder %s290, 0
        %s292 = scalar_select %p291, %s290, 0
        %p293 = scmp.lt.s32.totalorder %s20, 1
        %s294 = scalar_select %p293, %s20, 1
        %p295 = scmp.lt.s32.totalorder %s292, 15
        %s296 = scalar_select %p295, %s292, 15
        %s297 = smul.addr %s296, 2
        %s298 = smul.addr %s294, 32
        %s299 = sadd.s32 %s297, %s298
        %s300 = smul.addr %s299, 4
        %s301 = scalar_lea.vmem %s1, %s300
        %s302 = smul.u32 %s21, 16
        %s303 = ssub.s32 %s302, 1
        %p304 = scmp.gt.s32.totalorder %s303, 0
        %s305 = scalar_select %p304, %s303, 0
      $region32: #{idm_vton_forward.3} parent=23 // pred_fallthru
        _
      // Predicated region
      $region33: #{idm_vton_forward.3} parent=23 // pred_check
        %p306 = pneg %p119
      $region34: #{idm_vton_forward.3} parent=23 // pred_check_branch
        %308 = sbr.rel (%p306) target = $region36
      $region35: #{idm_vton_forward.3} parent=23 // pred_region
        %s309 = sadd.s32 %s21, 1
        %s310 = smul.u32 %s309, 16
        %p311 = scmp.lt.s32.totalorder %s310, 15
        %s312 = scalar_select %p311, %s310, 15
        %p313 = scmp.lt.s32.totalorder %s20, 1
        %s314 = scalar_select %p313, %s20, 1
        %p315 = scmp.lt.s32.totalorder %s312, 15
        %s316 = scalar_select %p315, %s312, 15
        %s317 = smul.addr %s316, 2
        %s318 = smul.addr %s314, 32
        %s319 = sadd.s32 %s317, %s318
        %s320 = smul.addr %s319, 4
        %s321 = scalar_lea.vmem %s2, %s320
        %s322 = sadd.s32 %s21, 1
        %s323 = smul.u32 %s322, 16
        %p324 = scmp.lt.s32.totalorder %s323, 15
        %s325 = scalar_select %p324, %s323, 15
      $region36: #{idm_vton_forward.3} parent=23 // pred_fallthru
        _
      // Predicated region
      $region37: #{idm_vton_forward.3} parent=23 // pred_check
        %p326 = pneg %p145
      $region38: #{idm_vton_forward.3} parent=23 // pred_check_branch
        %328 = sbr.rel (%p326) target = $region40
      $region39: #{idm_vton_forward.3} parent=23 // pred_region
        %p329 = scmp.lt.s32.totalorder %s20, 1
        %s330 = scalar_select %p329, %s20, 1
        %s331 = scalar_lea.vmem %s3, %s330
      $region40: #{idm_vton_forward.3} parent=23 // pred_fallthru
        _
      // Predicated region
      $region41: #{idm_vton_forward.3} parent=23 // pred_check
        %p332 = pneg %p171
      $region42: #{idm_vton_forward.3} parent=23 // pred_check_branch
        %334 = sbr.rel (%p332) target = $region44
      $region43: #{idm_vton_forward.3} parent=23 // pred_region
        %p335 = scmp.lt.s32.totalorder %s20, 1
        %s336 = scalar_select %p335, %s20, 1
        %s337 = scalar_lea.vmem %s4, %s336
      $region44: #{idm_vton_forward.3} parent=23 // pred_fallthru
        _
    $region24: #{idm_vton_forward.3} parent=5 // pred_fallthru
      _
    %p338 = scmp.le.s32.totalorder 1, %s13
    %p339 = scmp.lt.s32.totalorder %s13, 3
    %p340 = pnand %p338, %p339
    %p341 = pneg %p340
    // Predicated region
    $region45: #{idm_vton_forward.3} parent=5 // pred_check
      _
    $region46: #{idm_vton_forward.3} parent=5 // pred_check_branch
      %343 = sbr.rel (%p340) target = $region48
    $region47: #{idm_vton_forward.3} parent=5 // pred_region
      %s344 = ssub.s32 %s13, 1
      %s345 = smul.u32 16, %s23
      %p346 = scmp.lt.s32.totalorder %s22, 1
      %s347 = scalar_select %p346, %s22, 1
      %p348 = scmp.lt.s32.totalorder %s345, 15
      %s349 = scalar_select %p348, %s345, 15
      %s350 = smul.addr %s349, 2
      %s351 = smul.addr %s347, 32
      %s352 = sadd.s32 %s350, %s351
      %s353 = smul.addr %s352, 4
      %s354 = scalar_lea.vmem %s0, %s353
      %p355 = pneg %p53
      %p356 = pneg %p50
      %s357 = smul.u32 %s23, 16
      %s358 = ssub.s32 %s357, 1
      %p359 = scmp.gt.s32.totalorder %s358, 0
      %s360 = scalar_select %p359, %s358, 0
      %p361 = scmp.lt.s32.totalorder %s22, 1
      %s362 = scalar_select %p361, %s22, 1
      %p363 = scmp.lt.s32.totalorder %s360, 15
      %s364 = scalar_select %p363, %s360, 15
      %s365 = smul.addr %s364, 2
      %s366 = smul.addr %s362, 32
      %s367 = sadd.s32 %s365, %s366
      %s368 = smul.addr %s367, 4
      %s369 = scalar_lea.vmem %s1, %s368
      %p370 = pneg %p89
      %p371 = pneg %p86
      %s372 = sadd.s32 %s23, 1
      %s373 = smul.u32 %s372, 16
      %p374 = scmp.lt.s32.totalorder %s373, 15
      %s375 = scalar_select %p374, %s373, 15
      %p376 = scmp.lt.s32.totalorder %s22, 1
      %s377 = scalar_select %p376, %s22, 1
      %p378 = scmp.lt.s32.totalorder %s375, 15
      %s379 = scalar_select %p378, %s375, 15
      %s380 = smul.addr %s379, 2
      %s381 = smul.addr %s377, 32
      %s382 = sadd.s32 %s380, %s381
      %s383 = smul.addr %s382, 4
      %s384 = scalar_lea.vmem %s2, %s383
      %p385 = pneg %p125
      %p386 = pneg %p122
      %p387 = scmp.lt.s32.totalorder %s22, 1
      %s388 = scalar_select %p387, %s22, 1
      %s389 = scalar_lea.vmem %s3, %s388
      %p390 = pneg %p151
      %p391 = pneg %p148
      %p392 = scmp.lt.s32.totalorder %s22, 1
      %s393 = scalar_select %p392, %s22, 1
      %s394 = scalar_lea.vmem %s4, %s393
      %p395 = pneg %p177
      %p396 = pneg %p174
      %p397 = pneg %p198
      %p398 = pneg %p195
      %p399 = pneg %p219
      %p400 = pneg %p216
      %p401 = pneg %p247
      %p402 = pneg %p244
      %s403 = smul.u32 2, %s23
      %p404 = scmp.lt.s32.totalorder %s22, 1
      %s405 = scalar_select %p404, %s22, 1
      %p406 = scmp.lt.s32.totalorder %s403, 1
      %s407 = scalar_select %p406, %s403, 1
      %s408 = smul.addr %s405, 2
      %s409 = sadd.s32 %s407, %s408
      %s410 = smul.addr %s409, 4
      %s411 = scalar_lea.vmem %s7, %s410
      %s412 = smul.u32 16, %s23
      %p413 = scmp.lt.s32.totalorder %s22, 1
      %s414 = scalar_select %p413, %s22, 1
      %p415 = scmp.lt.s32.totalorder %s412, 15
      %s416 = scalar_select %p415, %s412, 15
      %s417 = smul.addr %s416, 2
      %s418 = smul.addr %s414, 32
      %s419 = sadd.s32 %s417, %s418
      %s420 = smul.addr %s419, 4
      %s421 = scalar_lea.vmem %s0, %s420
      %s422 = smul.u32 16, %s23
      %s423 = smul.u32 %s23, 16
      %s424 = ssub.s32 %s423, 1
      %p425 = scmp.gt.s32.totalorder %s424, 0
      %s426 = scalar_select %p425, %s424, 0
      %p427 = scmp.lt.s32.totalorder %s22, 1
      %s428 = scalar_select %p427, %s22, 1
      %p429 = scmp.lt.s32.totalorder %s426, 15
      %s430 = scalar_select %p429, %s426, 15
      %s431 = smul.addr %s430, 2
      %s432 = smul.addr %s428, 32
      %s433 = sadd.s32 %s431, %s432
      %s434 = smul.addr %s433, 4
      %s435 = scalar_lea.vmem %s1, %s434
      %s436 = smul.u32 %s23, 16
      %s437 = ssub.s32 %s436, 1
      %p438 = scmp.gt.s32.totalorder %s437, 0
      %s439 = scalar_select %p438, %s437, 0
      %s440 = sadd.s32 %s23, 1
      %s441 = smul.u32 %s440, 16
      %p442 = scmp.lt.s32.totalorder %s441, 15
      %s443 = scalar_select %p442, %s441, 15
      %p444 = scmp.lt.s32.totalorder %s22, 1
      %s445 = scalar_select %p444, %s22, 1
      %p446 = scmp.lt.s32.totalorder %s443, 15
      %s447 = scalar_select %p446, %s443, 15
      %s448 = smul.addr %s447, 2
      %s449 = smul.addr %s445, 32
      %s450 = sadd.s32 %s448, %s449
      %s451 = smul.addr %s450, 4
      %s452 = scalar_lea.vmem %s2, %s451
      %s453 = sadd.s32 %s23, 1
      %s454 = smul.u32 %s453, 16
      %p455 = scmp.lt.s32.totalorder %s454, 15
      %s456 = scalar_select %p455, %s454, 15
      %p457 = scmp.lt.s32.totalorder %s22, 1
      %s458 = scalar_select %p457, %s22, 1
      %s459 = scalar_lea.vmem %s3, %s458
      %p460 = scmp.lt.s32.totalorder %s22, 1
      %s461 = scalar_select %p460, %s22, 1
      %s462 = scalar_lea.vmem %s4, %s461
      %s463 = smul.u32 2, %s23
      %p464 = scmp.lt.s32.totalorder %s22, 1
      %s465 = scalar_select %p464, %s22, 1
      %p466 = scmp.lt.s32.totalorder %s463, 1
      %s467 = scalar_select %p466, %s463, 1
      %s468 = smul.addr %s465, 2
      %s469 = sadd.s32 %s467, %s468
      %s470 = smul.addr %s469, 4
      %s471 = scalar_lea.vmem %s7, %s470
      %s472 = smul.u32 2, %s23
      %v474 = vld [vmem:[%s459] sm:$0x1]
      %v475 = vld [vmem:[%s462] sm:$0x1]
      %vm476 = vcmask 1040384
      %vm477 = vsmask.f32 256
      %vm478 = vmand %vm476, %vm477
      %v479 = vld [vmem:[#allocation2] sm:$0x1]
      %v480 = vsel %vm478, 0, %v479
      %481 = vst [vmem:[#allocation2] sm:$0x1] %v480
      %v482 = vld [vmem:[#allocation2 + $0xc] sm:$0x1]
      %v483 = vsel %vm478, 0, %v482
      %484 = vst [vmem:[#allocation2 + $0xc] sm:$0x1] %v483
      %v485 = vld [vmem:[#allocation2 + $0x18] sm:$0x1]
      %v486 = vsel %vm478, 0, %v485
      %487 = vst [vmem:[#allocation2 + $0x18] sm:$0x1] %v486
      %v488 = vld [vmem:[#allocation2 + $0x24] sm:$0x1]
      %v489 = vsel %vm478, 0, %v488
      %490 = vst [vmem:[#allocation2 + $0x24] sm:$0x1] %v489
      %v491 = vld [vmem:[#allocation2 + $0x30] sm:$0x1]
      %v492 = vsel %vm478, 0, %v491
      %493 = vst [vmem:[#allocation2 + $0x30] sm:$0x1] %v492
      %v494 = vld [vmem:[#allocation2 + $0x3c] sm:$0x1]
      %v495 = vsel %vm478, 0, %v494
      %496 = vst [vmem:[#allocation2 + $0x3c] sm:$0x1] %v495
      %v497 = vld [vmem:[#allocation2 + $0x48] sm:$0x1]
      %v498 = vsel %vm478, 0, %v497
      %499 = vst [vmem:[#allocation2 + $0x48] sm:$0x1] %v498
      %v500 = vld [vmem:[#allocation2 + $0x54] sm:$0x1]
      %v501 = vsel %vm478, 0, %v500
      %502 = vst [vmem:[#allocation2 + $0x54] sm:$0x1] %v501
      %v503 = vld [vmem:[#allocation2 + $0x60] sm:$0x1]
      %v504 = vsel %vm478, 0, %v503
      %505 = vst [vmem:[#allocation2 + $0x60] sm:$0x1] %v504
      %v506 = vld [vmem:[#allocation2 + $0x6c] sm:$0x1]
      %v507 = vsel %vm478, 0, %v506
      %508 = vst [vmem:[#allocation2 + $0x6c] sm:$0x1] %v507
      %v509 = vld [vmem:[#allocation2 + $0x78] sm:$0x1]
      %v510 = vsel %vm478, 0, %v509
      %511 = vst [vmem:[#allocation2 + $0x78] sm:$0x1] %v510
      %v512 = vld [vmem:[#allocation2 + $0x84] sm:$0x1]
      %v513 = vsel %vm478, 0, %v512
      %514 = vst [vmem:[#allocation2 + $0x84] sm:$0x1] %v513
      %v515 = vld [vmem:[#allocation2 + $0x90] sm:$0x1]
      %v516 = vsel %vm478, 0, %v515
      %517 = vst [vmem:[#allocation2 + $0x90] sm:$0x1] %v516
      %v518 = vld [vmem:[#allocation2 + $0x9c] sm:$0x1]
      %v519 = vsel %vm478, 0, %v518
      %520 = vst [vmem:[#allocation2 + $0x9c] sm:$0x1] %v519
      %v521 = vld [vmem:[#allocation2 + $0xa8] sm:$0x1]
      %v522 = vsel %vm478, 0, %v521
      %523 = vst [vmem:[#allocation2 + $0xa8] sm:$0x1] %v522
      %v524 = vld [vmem:[#allocation2 + $0xb4] sm:$0x1]
      %v525 = vsel %vm478, 0, %v524
      %526 = vst [vmem:[#allocation2 + $0xb4] sm:$0x1] %v525
      %v527 = vld [vmem:[#allocation2 + $0xc0] sm:$0x1]
      %v528 = vsel %vm478, 0, %v527
      %529 = vst [vmem:[#allocation2 + $0xc0] sm:$0x1] %v528
      %v530 = vld [vmem:[#allocation2 + $0xcc] sm:$0x1]
      %v531 = vsel %vm478, 0, %v530
      %532 = vst [vmem:[#allocation2 + $0xcc] sm:$0x1] %v531
      %vm533 = vsmask.f32 7938
      %vm534 = vmand %vm476, %vm533
      %v535 = vld [vmem:[#allocation2 + $0x8] sm:$0x1]
      %v536 = vsel %vm534, 0, %v535
      %537 = vst [vmem:[#allocation2 + $0x8] sm:$0x1] %v536
      %v538 = vld [vmem:[#allocation2 + $0x14] sm:$0x1]
      %v539 = vsel %vm534, 0, %v538
      %540 = vst [vmem:[#allocation2 + $0x14] sm:$0x1] %v539
      %v541 = vld [vmem:[#allocation2 + $0x20] sm:$0x1]
      %v542 = vsel %vm534, 0, %v541
      %543 = vst [vmem:[#allocation2 + $0x20] sm:$0x1] %v542
      %v544 = vld [vmem:[#allocation2 + $0x2c] sm:$0x1]
      %v545 = vsel %vm534, 0, %v544
      %546 = vst [vmem:[#allocation2 + $0x2c] sm:$0x1] %v545
      %v547 = vld [vmem:[#allocation2 + $0x38] sm:$0x1]
      %v548 = vsel %vm534, 0, %v547
      %549 = vst [vmem:[#allocation2 + $0x38] sm:$0x1] %v548
      %v550 = vld [vmem:[#allocation2 + $0x44] sm:$0x1]
      %v551 = vsel %vm534, 0, %v550
      %552 = vst [vmem:[#allocation2 + $0x44] sm:$0x1] %v551
      %v553 = vld [vmem:[#allocation2 + $0x50] sm:$0x1]
      %v554 = vsel %vm534, 0, %v553
      %555 = vst [vmem:[#allocation2 + $0x50] sm:$0x1] %v554
      %v556 = vld [vmem:[#allocation2 + $0x5c] sm:$0x1]
      %v557 = vsel %vm534, 0, %v556
      %558 = vst [vmem:[#allocation2 + $0x5c] sm:$0x1] %v557
      %v559 = vld [vmem:[#allocation2 + $0x68] sm:$0x1]
      %v560 = vsel %vm534, 0, %v559
      %561 = vst [vmem:[#allocation2 + $0x68] sm:$0x1] %v560
      %v562 = vld [vmem:[#allocation2 + $0x74] sm:$0x1]
      %v563 = vsel %vm534, 0, %v562
      %564 = vst [vmem:[#allocation2 + $0x74] sm:$0x1] %v563
      %v565 = vld [vmem:[#allocation2 + $0x80] sm:$0x1]
      %v566 = vsel %vm534, 0, %v565
      %567 = vst [vmem:[#allocation2 + $0x80] sm:$0x1] %v566
      %v568 = vld [vmem:[#allocation2 + $0x8c] sm:$0x1]
      %v569 = vsel %vm534, 0, %v568
      %570 = vst [vmem:[#allocation2 + $0x8c] sm:$0x1] %v569
      %v571 = vld [vmem:[#allocation2 + $0x98] sm:$0x1]
      %v572 = vsel %vm534, 0, %v571
      %573 = vst [vmem:[#allocation2 + $0x98] sm:$0x1] %v572
      %v574 = vld [vmem:[#allocation2 + $0xa4] sm:$0x1]
      %v575 = vsel %vm534, 0, %v574
      %576 = vst [vmem:[#allocation2 + $0xa4] sm:$0x1] %v575
      %v577 = vld [vmem:[#allocation2 + $0xb0] sm:$0x1]
      %v578 = vsel %vm534, 0, %v577
      %579 = vst [vmem:[#allocation2 + $0xb0] sm:$0x1] %v578
      %v580 = vld [vmem:[#allocation2 + $0xbc] sm:$0x1]
      %v581 = vsel %vm534, 0, %v580
      %582 = vst [vmem:[#allocation2 + $0xbc] sm:$0x1] %v581
      %v583 = vld [vmem:[#allocation2 + $0xc8] sm:$0x1]
      %v584 = vsel %vm534, 0, %v583
      %585 = vst [vmem:[#allocation2 + $0xc8] sm:$0x1] %v584
      %v586 = vld [vmem:[#allocation2 + $0xd4] sm:$0x1]
      %v587 = vsel %vm534, 0, %v586
      %588 = vst [vmem:[#allocation2 + $0xd4] sm:$0x1] %v587
      %v589 = vld [vmem:[%s421] sm:$0xf]
      %v590 = vld [vmem:[%s421 + $0x4] sm:$0xf]
      %v591 = vld [vmem:[%s421 + $0x8] sm:$0xf]
      %v592 = vld [vmem:[%s421 + $0xc] sm:$0xf]
      %v593 = vld [vmem:[%s421 + $0x10] sm:$0xf]
      %v594 = vld [vmem:[%s421 + $0x14] sm:$0xf]
      %v595 = vld [vmem:[%s421 + $0x18] sm:$0xf]
      %v596 = vld [vmem:[%s421 + $0x1c] sm:$0xf]
      %v597 = vld [vmem:[%s421 + $0x20] sm:$0xf]
      %v598 = vld [vmem:[%s421 + $0x24] sm:$0xf]
      %v599 = vld [vmem:[%s421 + $0x28] sm:$0xf]
      %v600 = vld [vmem:[%s421 + $0x2c] sm:$0xf]
      %v601 = vld [vmem:[%s421 + $0x30] sm:$0xf]
      %v602 = vld [vmem:[%s421 + $0x34] sm:$0xf]
      %v603 = vld [vmem:[%s421 + $0x38] sm:$0xf]
      %v604 = vld [vmem:[%s421 + $0x3c] sm:$0xf]
      %v605 = vld [vmem:[%s421 + $0x40] sm:$0xf]
      %v606 = vld [vmem:[%s421 + $0x44] sm:$0xf]
      %v607 = vld [vmem:[%s421 + $0x48] sm:$0xf]
      %v608 = vld [vmem:[%s421 + $0x4c] sm:$0xf]
      %v609 = vld [vmem:[%s421 + $0x50] sm:$0xf]
      %v610 = vld [vmem:[%s421 + $0x54] sm:$0xf]
      %v611 = vld [vmem:[%s421 + $0x58] sm:$0xf]
      %v612 = vld [vmem:[%s421 + $0x5c] sm:$0xf]
      %v613 = vld [vmem:[%s421 + $0x60] sm:$0xf]
      %v614 = vld [vmem:[%s421 + $0x64] sm:$0xf]
      %v615 = vld [vmem:[%s421 + $0x68] sm:$0xf]
      %v616 = vld [vmem:[%s421 + $0x6c] sm:$0xf]
      %v617 = vld [vmem:[%s421 + $0x70] sm:$0xf]
      %v618 = vld [vmem:[%s421 + $0x74] sm:$0xf]
      %v619 = vld [vmem:[%s421 + $0x78] sm:$0xf]
      %v620 = vld [vmem:[%s421 + $0x7c] sm:$0xf]
      %v621 = vunpack.c.l.bf16 %v589
      %v622 = vunpack.c.l.bf16 %v590
      %v623 = vunpack.c.l.bf16 %v591
      %v624 = vunpack.c.l.bf16 %v592
      %v625 = vunpack.c.l.bf16 %v593
      %v626 = vunpack.c.l.bf16 %v594
      %v627 = vunpack.c.l.bf16 %v595
      %v628 = vunpack.c.l.bf16 %v596
      %v629 = vunpack.c.l.bf16 %v597
      %v630 = vunpack.c.l.bf16 %v598
      %v631 = vunpack.c.l.bf16 %v599
      %v632 = vunpack.c.l.bf16 %v600
      %v633 = vunpack.c.l.bf16 %v601
      %v634 = vunpack.c.l.bf16 %v602
      %v635 = vunpack.c.l.bf16 %v603
      %v636 = vunpack.c.l.bf16 %v604
      %v637 = vunpack.c.l.bf16 %v605
      %v638 = vunpack.c.l.bf16 %v606
      %v639 = vunpack.c.l.bf16 %v607
      %v640 = vunpack.c.l.bf16 %v608
      %v641 = vunpack.c.l.bf16 %v609
      %v642 = vunpack.c.l.bf16 %v610
      %v643 = vunpack.c.l.bf16 %v611
      %v644 = vunpack.c.l.bf16 %v612
      %v645 = vunpack.c.l.bf16 %v613
      %v646 = vunpack.c.l.bf16 %v614
      %v647 = vunpack.c.l.bf16 %v615
      %v648 = vunpack.c.l.bf16 %v616
      %v649 = vunpack.c.l.bf16 %v617
      %v650 = vunpack.c.l.bf16 %v618
      %v651 = vunpack.c.l.bf16 %v619
      %v652 = vunpack.c.l.bf16 %v620
      %v654 = vlaneseq
      %v655 = vshrl.u32 %v654, 7
      %v656 = vsub.s32 0, %v655
      %v657 = vrot.slane %v474, %v656
      %v659 = vmul.f32 %v621, %v657
      %v660 = vmul.f32 %v622, %v657
      %v661 = vmul.f32 %v623, %v657
      %v662 = vmul.f32 %v624, %v657
      %v663 = vmul.f32 %v625, %v657
      %v664 = vmul.f32 %v626, %v657
      %v665 = vmul.f32 %v627, %v657
      %v666 = vmul.f32 %v628, %v657
      %v667 = vmul.f32 %v629, %v657
      %v668 = vmul.f32 %v630, %v657
      %v669 = vmul.f32 %v631, %v657
      %v670 = vmul.f32 %v632, %v657
      %v671 = vmul.f32 %v633, %v657
      %v672 = vmul.f32 %v634, %v657
      %v673 = vmul.f32 %v635, %v657
      %v674 = vmul.f32 %v636, %v657
      %v675 = vmul.f32 %v637, %v657
      %v676 = vmul.f32 %v638, %v657
      %v677 = vmul.f32 %v639, %v657
      %v678 = vmul.f32 %v640, %v657
      %v679 = vmul.f32 %v641, %v657
      %v680 = vmul.f32 %v642, %v657
      %v681 = vmul.f32 %v643, %v657
      %v682 = vmul.f32 %v644, %v657
      %v683 = vmul.f32 %v645, %v657
      %v684 = vmul.f32 %v646, %v657
      %v685 = vmul.f32 %v647, %v657
      %v686 = vmul.f32 %v648, %v657
      %v687 = vmul.f32 %v649, %v657
      %v688 = vmul.f32 %v650, %v657
      %v689 = vmul.f32 %v651, %v657
      %v690 = vmul.f32 %v652, %v657
      %v692 = vlaneseq
      %v693 = vshrl.u32 %v692, 7
      %v694 = vsub.s32 0, %v693
      %v695 = vrot.slane %v475, %v694
      %v697 = vadd.f32 %v659, %v695
      %v698 = vadd.f32 %v660, %v695
      %v699 = vadd.f32 %v661, %v695
      %v700 = vadd.f32 %v662, %v695
      %v701 = vadd.f32 %v663, %v695
      %v702 = vadd.f32 %v664, %v695
      %v703 = vadd.f32 %v665, %v695
      %v704 = vadd.f32 %v666, %v695
      %v705 = vadd.f32 %v667, %v695
      %v706 = vadd.f32 %v668, %v695
      %v707 = vadd.f32 %v669, %v695
      %v708 = vadd.f32 %v670, %v695
      %v709 = vadd.f32 %v671, %v695
      %v710 = vadd.f32 %v672, %v695
      %v711 = vadd.f32 %v673, %v695
      %v712 = vadd.f32 %v674, %v695
      %v713 = vadd.f32 %v675, %v695
      %v714 = vadd.f32 %v676, %v695
      %v715 = vadd.f32 %v677, %v695
      %v716 = vadd.f32 %v678, %v695
      %v717 = vadd.f32 %v679, %v695
      %v718 = vadd.f32 %v680, %v695
      %v719 = vadd.f32 %v681, %v695
      %v720 = vadd.f32 %v682, %v695
      %v721 = vadd.f32 %v683, %v695
      %v722 = vadd.f32 %v684, %v695
      %v723 = vadd.f32 %v685, %v695
      %v724 = vadd.f32 %v686, %v695
      %v725 = vadd.f32 %v687, %v695
      %v726 = vadd.f32 %v688, %v695
      %v727 = vadd.f32 %v689, %v695
      %v728 = vadd.f32 %v690, %v695
      %v729 = vxor.u32 %v697, 2147483648
      %v730 = vxor.u32 %v698, 2147483648
      %v731 = vxor.u32 %v699, 2147483648
      %v732 = vxor.u32 %v700, 2147483648
      %v733 = vxor.u32 %v701, 2147483648
      %v734 = vxor.u32 %v702, 2147483648
      %v735 = vxor.u32 %v703, 2147483648
      %v736 = vxor.u32 %v704, 2147483648
      %v737 = vxor.u32 %v705, 2147483648
      %v738 = vxor.u32 %v706, 2147483648
      %v739 = vxor.u32 %v707, 2147483648
      %v740 = vxor.u32 %v708, 2147483648
      %v741 = vxor.u32 %v709, 2147483648
      %v742 = vxor.u32 %v710, 2147483648
      %v743 = vxor.u32 %v711, 2147483648
      %v744 = vxor.u32 %v712, 2147483648
      %v745 = vxor.u32 %v713, 2147483648
      %v746 = vxor.u32 %v714, 2147483648
      %v747 = vxor.u32 %v715, 2147483648
      %v748 = vxor.u32 %v716, 2147483648
      %v749 = vxor.u32 %v717, 2147483648
      %v750 = vxor.u32 %v718, 2147483648
      %v751 = vxor.u32 %v719, 2147483648
      %v752 = vxor.u32 %v720, 2147483648
      %v753 = vxor.u32 %v721, 2147483648
      %v754 = vxor.u32 %v722, 2147483648
      %v755 = vxor.u32 %v723, 2147483648
      %v756 = vxor.u32 %v724, 2147483648
      %v757 = vxor.u32 %v725, 2147483648
      %v758 = vxor.u32 %v726, 2147483648
      %v759 = vxor.u32 %v727, 2147483648
      %v760 = vxor.u32 %v728, 2147483648
      %v761 = vmul.f32 %v729, 1.442695
      %v762 = vpow.pop %v761
      %v763 = vmul.f32 %v730, 1.442695
      %v764 = vpow.pop %v763
      %v765 = vmul.f32 %v731, 1.442695
      %v766 = vpow.pop %v765
      %v767 = vmul.f32 %v732, 1.442695
      %v768 = vpow.pop %v767
      %v769 = vmul.f32 %v733, 1.442695
      %v770 = vpow.pop %v769
      %v771 = vmul.f32 %v734, 1.442695
      %v772 = vpow.pop %v771
      %v773 = vmul.f32 %v735, 1.442695
      %v774 = vpow.pop %v773
      %v775 = vmul.f32 %v736, 1.442695
      %v776 = vpow.pop %v775
      %v777 = vmul.f32 %v737, 1.442695
      %v778 = vpow.pop %v777
      %v779 = vmul.f32 %v738, 1.442695
      %v780 = vpow.pop %v779
      %v781 = vmul.f32 %v739, 1.442695
      %v782 = vpow.pop %v781
      %v783 = vmul.f32 %v740, 1.442695
      %v784 = vpow.pop %v783
      %v785 = vmul.f32 %v741, 1.442695
      %v786 = vpow.pop %v785
      %v787 = vmul.f32 %v742, 1.442695
      %v788 = vpow.pop %v787
      %v789 = vmul.f32 %v743, 1.442695
      %v790 = vpow.pop %v789
      %v791 = vmul.f32 %v744, 1.442695
      %v792 = vpow.pop %v791
      %v793 = vmul.f32 %v745, 1.442695
      %v794 = vpow.pop %v793
      %v795 = vmul.f32 %v746, 1.442695
      %v796 = vpow.pop %v795
      %v797 = vmul.f32 %v747, 1.442695
      %v798 = vpow.pop %v797
      %v799 = vmul.f32 %v748, 1.442695
      %v800 = vpow.pop %v799
      %v801 = vmul.f32 %v749, 1.442695
      %v802 = vpow.pop %v801
      %v803 = vmul.f32 %v750, 1.442695
      %v804 = vpow.pop %v803
      %v805 = vmul.f32 %v751, 1.442695
      %v806 = vpow.pop %v805
      %v807 = vmul.f32 %v752, 1.442695
      %v808 = vpow.pop %v807
      %v809 = vmul.f32 %v753, 1.442695
      %v810 = vpow.pop %v809
      %v811 = vmul.f32 %v754, 1.442695
      %v812 = vpow.pop %v811
      %v813 = vmul.f32 %v755, 1.442695
      %v814 = vpow.pop %v813
      %v815 = vmul.f32 %v756, 1.442695
      %v816 = vpow.pop %v815
      %v817 = vmul.f32 %v757, 1.442695
      %v818 = vpow.pop %v817
      %v819 = vmul.f32 %v758, 1.442695
      %v820 = vpow.pop %v819
      %v821 = vmul.f32 %v759, 1.442695
      %v822 = vpow.pop %v821
      %v823 = vmul.f32 %v760, 1.442695
      %v824 = vpow.pop %v823
      %v825 = vadd.f32 %v762, 1.0
      %v826 = vadd.f32 %v764, 1.0
      %v827 = vadd.f32 %v766, 1.0
      %v828 = vadd.f32 %v768, 1.0
      %v829 = vadd.f32 %v770, 1.0
      %v830 = vadd.f32 %v772, 1.0
      %v831 = vadd.f32 %v774, 1.0
      %v832 = vadd.f32 %v776, 1.0
      %v833 = vadd.f32 %v778, 1.0
      %v834 = vadd.f32 %v780, 1.0
      %v835 = vadd.f32 %v782, 1.0
      %v836 = vadd.f32 %v784, 1.0
      %v837 = vadd.f32 %v786, 1.0
      %v838 = vadd.f32 %v788, 1.0
      %v839 = vadd.f32 %v790, 1.0
      %v840 = vadd.f32 %v792, 1.0
      %v841 = vadd.f32 %v794, 1.0
      %v842 = vadd.f32 %v796, 1.0
      %v843 = vadd.f32 %v798, 1.0
      %v844 = vadd.f32 %v800, 1.0
      %v845 = vadd.f32 %v802, 1.0
      %v846 = vadd.f32 %v804, 1.0
      %v847 = vadd.f32 %v806, 1.0
      %v848 = vadd.f32 %v808, 1.0
      %v849 = vadd.f32 %v810, 1.0
      %v850 = vadd.f32 %v812, 1.0
      %v851 = vadd.f32 %v814, 1.0
      %v852 = vadd.f32 %v816, 1.0
      %v853 = vadd.f32 %v818, 1.0
      %v854 = vadd.f32 %v820, 1.0
      %v855 = vadd.f32 %v822, 1.0
      %v856 = vadd.f32 %v824, 1.0
      %v857 = vrcp.pop %v825
      %v858 = vmul.f32 1.0, %v857
      %v859 = vrcp.pop %v826
      %v860 = vmul.f32 1.0, %v859
      %v861 = vrcp.pop %v827
      %v862 = vmul.f32 1.0, %v861
      %v863 = vrcp.pop %v828
      %v864 = vmul.f32 1.0, %v863
      %v865 = vrcp.pop %v829
      %v866 = vmul.f32 1.0, %v865
      %v867 = vrcp.pop %v830
      %v868 = vmul.f32 1.0, %v867
      %v869 = vrcp.pop %v831
      %v870 = vmul.f32 1.0, %v869
      %v871 = vrcp.pop %v832
      %v872 = vmul.f32 1.0, %v871
      %v873 = vrcp.pop %v833
      %v874 = vmul.f32 1.0, %v873
      %v875 = vrcp.pop %v834
      %v876 = vmul.f32 1.0, %v875
      %v877 = vrcp.pop %v835
      %v878 = vmul.f32 1.0, %v877
      %v879 = vrcp.pop %v836
      %v880 = vmul.f32 1.0, %v879
      %v881 = vrcp.pop %v837
      %v882 = vmul.f32 1.0, %v881
      %v883 = vrcp.pop %v838
      %v884 = vmul.f32 1.0, %v883
      %v885 = vrcp.pop %v839
      %v886 = vmul.f32 1.0, %v885
      %v887 = vrcp.pop %v840
      %v888 = vmul.f32 1.0, %v887
      %v889 = vrcp.pop %v841
      %v890 = vmul.f32 1.0, %v889
      %v891 = vrcp.pop %v842
      %v892 = vmul.f32 1.0, %v891
      %v893 = vrcp.pop %v843
      %v894 = vmul.f32 1.0, %v893
      %v895 = vrcp.pop %v844
      %v896 = vmul.f32 1.0, %v895
      %v897 = vrcp.pop %v845
      %v898 = vmul.f32 1.0, %v897
      %v899 = vrcp.pop %v846
      %v900 = vmul.f32 1.0, %v899
      %v901 = vrcp.pop %v847
      %v902 = vmul.f32 1.0, %v901
      %v903 = vrcp.pop %v848
      %v904 = vmul.f32 1.0, %v903
      %v905 = vrcp.pop %v849
      %v906 = vmul.f32 1.0, %v905
      %v907 = vrcp.pop %v850
      %v908 = vmul.f32 1.0, %v907
      %v909 = vrcp.pop %v851
      %v910 = vmul.f32 1.0, %v909
      %v911 = vrcp.pop %v852
      %v912 = vmul.f32 1.0, %v911
      %v913 = vrcp.pop %v853
      %v914 = vmul.f32 1.0, %v913
      %v915 = vrcp.pop %v854
      %v916 = vmul.f32 1.0, %v915
      %v917 = vrcp.pop %v855
      %v918 = vmul.f32 1.0, %v917
      %v919 = vrcp.pop %v856
      %v920 = vmul.f32 1.0, %v919
      %v921 = vmul.f32 %v697, %v858
      %v922 = vmul.f32 %v698, %v860
      %v923 = vmul.f32 %v699, %v862
      %v924 = vmul.f32 %v700, %v864
      %v925 = vmul.f32 %v701, %v866
      %v926 = vmul.f32 %v702, %v868
      %v927 = vmul.f32 %v703, %v870
      %v928 = vmul.f32 %v704, %v872
      %v929 = vmul.f32 %v705, %v874
      %v930 = vmul.f32 %v706, %v876
      %v931 = vmul.f32 %v707, %v878
      %v932 = vmul.f32 %v708, %v880
      %v933 = vmul.f32 %v709, %v882
      %v934 = vmul.f32 %v710, %v884
      %v935 = vmul.f32 %v711, %v886
      %v936 = vmul.f32 %v712, %v888
      %v937 = vmul.f32 %v713, %v890
      %v938 = vmul.f32 %v714, %v892
      %v939 = vmul.f32 %v715, %v894
      %v940 = vmul.f32 %v716, %v896
      %v941 = vmul.f32 %v717, %v898
      %v942 = vmul.f32 %v718, %v900
      %v943 = vmul.f32 %v719, %v902
      %v944 = vmul.f32 %v720, %v904
      %v945 = vmul.f32 %v721, %v906
      %v946 = vmul.f32 %v722, %v908
      %v947 = vmul.f32 %v723, %v910
      %v948 = vmul.f32 %v724, %v912
      %v949 = vmul.f32 %v725, %v914
      %v950 = vmul.f32 %v726, %v916
      %v951 = vmul.f32 %v727, %v918
      %v952 = vmul.f32 %v728, %v920
      %v953 = vpack.c.bf16 %v922, %v921
      %v954 = vpack.c.bf16 %v924, %v923
      %v955 = vpack.c.bf16 %v926, %v925
      %v956 = vpack.c.bf16 %v928, %v927
      %v957 = vpack.c.bf16 %v930, %v929
      %v958 = vpack.c.bf16 %v932, %v931
      %v959 = vpack.c.bf16 %v934, %v933
      %v960 = vpack.c.bf16 %v936, %v935
      %v961 = vpack.c.bf16 %v938, %v937
      %v962 = vpack.c.bf16 %v940, %v939
      %v963 = vpack.c.bf16 %v942, %v941
      %v964 = vpack.c.bf16 %v944, %v943
      %v965 = vpack.c.bf16 %v946, %v945
      %v966 = vpack.c.bf16 %v948, %v947
      %v967 = vpack.c.bf16 %v950, %v949
      %v968 = vpack.c.bf16 %v952, %v951
      %v985 = vunpack.c.l.b16 %v953
      %v986 = vunpack.c.h.b16 %v953
      %v987 = vunpack.c.l.b16 %v954
      %v988 = vunpack.c.h.b16 %v954
      %v989 = vunpack.c.l.b16 %v955
      %v990 = vunpack.c.h.b16 %v955
      %v991 = vunpack.c.l.b16 %v956
      %v992 = vunpack.c.h.b16 %v956
      %v993 = vunpack.c.l.b16 %v957
      %v994 = vunpack.c.h.b16 %v957
      %v995 = vunpack.c.l.b16 %v958
      %v996 = vunpack.c.h.b16 %v958
      %v997 = vunpack.c.l.b16 %v959
      %v998 = vunpack.c.h.b16 %v959
      %v999 = vunpack.c.l.b16 %v960
      %v1000 = vunpack.c.h.b16 %v960
      %v1001 = vunpack.c.l.b16 %v961
      %v1002 = vunpack.c.h.b16 %v961
      %v1003 = vunpack.c.l.b16 %v962
      %v1004 = vunpack.c.h.b16 %v962
      %v1005 = vunpack.c.l.b16 %v963
      %v1006 = vunpack.c.h.b16 %v963
      %v1007 = vunpack.c.l.b16 %v964
      %v1008 = vunpack.c.h.b16 %v964
      %v1009 = vunpack.c.l.b16 %v965
      %v1010 = vunpack.c.h.b16 %v965
      %v1011 = vunpack.c.l.b16 %v966
      %v1012 = vunpack.c.h.b16 %v966
      %v1013 = vunpack.c.l.b16 %v967
      %v1014 = vunpack.c.h.b16 %v967
      %v1015 = vunpack.c.l.b16 %v968
      %v1016 = vunpack.c.h.b16 %v968
      %v1017 = vpack.c.b16 %v985, %v985
      %v1018 = vpack.c.b16 %v986, %v986
      %v1019 = vpack.c.b16 %v987, %v987
      %v1020 = vpack.c.b16 %v988, %v988
      %v1021 = vpack.c.b16 %v989, %v989
      %v1022 = vpack.c.b16 %v990, %v990
      %v1023 = vpack.c.b16 %v991, %v991
      %v1024 = vpack.c.b16 %v992, %v992
      %v1025 = vpack.c.b16 %v993, %v993
      %v1026 = vpack.c.b16 %v994, %v994
      %v1027 = vpack.c.b16 %v995, %v995
      %v1028 = vpack.c.b16 %v996, %v996
      %v1029 = vpack.c.b16 %v997, %v997
      %v1030 = vpack.c.b16 %v998, %v998
      %v1031 = vpack.c.b16 %v999, %v999
      %v1032 = vpack.c.b16 %v1000, %v1000
      %v1033 = vpack.c.b16 %v1001, %v1001
      %v1034 = vpack.c.b16 %v1002, %v1002
      %v1035 = vpack.c.b16 %v1003, %v1003
      %v1036 = vpack.c.b16 %v1004, %v1004
      %v1037 = vpack.c.b16 %v1005, %v1005
      %v1038 = vpack.c.b16 %v1006, %v1006
      %v1039 = vpack.c.b16 %v1007, %v1007
      %v1040 = vpack.c.b16 %v1008, %v1008
      %v1041 = vpack.c.b16 %v1009, %v1009
      %v1042 = vpack.c.b16 %v1010, %v1010
      %v1043 = vpack.c.b16 %v1011, %v1011
      %v1044 = vpack.c.b16 %v1012, %v1012
      %v1045 = vpack.c.b16 %v1013, %v1013
      %v1046 = vpack.c.b16 %v1014, %v1014
      %v1047 = vpack.c.b16 %v1015, %v1015
      %v1048 = vpack.c.b16 %v1016, %v1016
      %vm1049 = vsmask.f32 4368
      %vm1050 = vmor %vm477, %vm1049
      %v1052 = vshrl.u32 %v1017, 16
      %v1054 = vrot.slane %v1052, 7
      %v1055 = vshll.u32 %v1017, 16
      %v1057 = vor.u32 %v1054, %v1055
      %v1058 = vrot.slane %v1054, 4
      %v1060 = vshrl.u32 %v1018, 16
      %v1062 = vrot.slane %v1060, 7
      %v1063 = vshll.u32 %v1018, 16
      %v1065 = vor.u32 %v1062, %v1063
      %v1066 = vsel %vm1050, %v1058, %v1065
      %v1067 = vrot.slane %v1062, 4
      %v1069 = vshrl.u32 %v1019, 16
      %v1071 = vrot.slane %v1069, 7
      %v1072 = vshll.u32 %v1019, 16
      %v1074 = vor.u32 %v1071, %v1072
      %v1075 = vrot.slane %v1071, 4
      %v1077 = vshrl.u32 %v1020, 16
      %v1079 = vrot.slane %v1077, 7
      %v1080 = vshll.u32 %v1020, 16
      %v1082 = vor.u32 %v1079, %v1080
      %v1083 = vsel %vm1050, %v1075, %v1082
      %v1084 = vrot.slane %v1079, 4
      %v1086 = vshrl.u32 %v1021, 16
      %v1088 = vrot.slane %v1086, 7
      %v1089 = vshll.u32 %v1021, 16
      %v1091 = vor.u32 %v1088, %v1089
      %v1092 = vrot.slane %v1088, 4
      %v1094 = vshrl.u32 %v1022, 16
      %v1096 = vrot.slane %v1094, 7
      %v1097 = vshll.u32 %v1022, 16
      %v1099 = vor.u32 %v1096, %v1097
      %v1100 = vsel %vm1050, %v1092, %v1099
      %v1101 = vrot.slane %v1096, 4
      %v1103 = vshrl.u32 %v1023, 16
      %v1105 = vrot.slane %v1103, 7
      %v1106 = vshll.u32 %v1023, 16
      %v1108 = vor.u32 %v1105, %v1106
      %v1109 = vrot.slane %v1105, 4
      %v1111 = vshrl.u32 %v1024, 16
      %v1113 = vrot.slane %v1111, 7
      %v1114 = vshll.u32 %v1024, 16
      %v1116 = vor.u32 %v1113, %v1114
      %v1117 = vsel %vm1050, %v1109, %v1116
      %v1118 = vrot.slane %v1113, 4
      %v1120 = vshrl.u32 %v1025, 16
      %v1122 = vrot.slane %v1120, 7
      %v1123 = vshll.u32 %v1025, 16
      %v1125 = vor.u32 %v1122, %v1123
      %v1126 = vrot.slane %v1122, 4
      %v1128 = vshrl.u32 %v1026, 16
      %v1130 = vrot.slane %v1128, 7
      %v1131 = vshll.u32 %v1026, 16
      %v1133 = vor.u32 %v1130, %v1131
      %v1134 = vsel %vm1050, %v1126, %v1133
      %v1135 = vrot.slane %v1130, 4
      %v1137 = vshrl.u32 %v1027, 16
      %v1139 = vrot.slane %v1137, 7
      %v1140 = vshll.u32 %v1027, 16
      %v1142 = vor.u32 %v1139, %v1140
      %v1143 = vrot.slane %v1139, 4
      %v1145 = vshrl.u32 %v1028, 16
      %v1147 = vrot.slane %v1145, 7
      %v1148 = vshll.u32 %v1028, 16
      %v1150 = vor.u32 %v1147, %v1148
      %v1151 = vsel %vm1050, %v1143, %v1150
      %v1152 = vrot.slane %v1147, 4
      %v1154 = vshrl.u32 %v1029, 16
      %v1156 = vrot.slane %v1154, 7
      %v1157 = vshll.u32 %v1029, 16
      %v1159 = vor.u32 %v1156, %v1157
      %v1160 = vrot.slane %v1156, 4
      %v1162 = vshrl.u32 %v1030, 16
      %v1164 = vrot.slane %v1162, 7
      %v1165 = vshll.u32 %v1030, 16
      %v1167 = vor.u32 %v1164, %v1165
      %v1168 = vsel %vm1050, %v1160, %v1167
      %v1169 = vrot.slane %v1164, 4
      %v1171 = vshrl.u32 %v1031, 16
      %v1173 = vrot.slane %v1171, 7
      %v1174 = vshll.u32 %v1031, 16
      %v1176 = vor.u32 %v1173, %v1174
      %v1177 = vrot.slane %v1173, 4
      %v1179 = vshrl.u32 %v1032, 16
      %v1181 = vrot.slane %v1179, 7
      %v1182 = vshll.u32 %v1032, 16
      %v1184 = vor.u32 %v1181, %v1182
      %v1185 = vsel %vm1050, %v1177, %v1184
      %v1186 = vrot.slane %v1181, 4
      %v1188 = vshrl.u32 %v1033, 16
      %v1190 = vrot.slane %v1188, 7
      %v1191 = vshll.u32 %v1033, 16
      %v1193 = vor.u32 %v1190, %v1191
      %v1194 = vrot.slane %v1190, 4
      %v1196 = vshrl.u32 %v1034, 16
      %v1198 = vrot.slane %v1196, 7
      %v1199 = vshll.u32 %v1034, 16
      %v1201 = vor.u32 %v1198, %v1199
      %v1202 = vsel %vm1050, %v1194, %v1201
      %v1203 = vrot.slane %v1198, 4
      %v1205 = vshrl.u32 %v1035, 16
      %v1207 = vrot.slane %v1205, 7
      %v1208 = vshll.u32 %v1035, 16
      %v1210 = vor.u32 %v1207, %v1208
      %v1211 = vrot.slane %v1207, 4
      %v1213 = vshrl.u32 %v1036, 16
      %v1215 = vrot.slane %v1213, 7
      %v1216 = vshll.u32 %v1036, 16
      %v1218 = vor.u32 %v1215, %v1216
      %v1219 = vsel %vm1050, %v1211, %v1218
      %v1220 = vrot.slane %v1215, 4
      %v1222 = vshrl.u32 %v1037, 16
      %v1224 = vrot.slane %v1222, 7
      %v1225 = vshll.u32 %v1037, 16
      %v1227 = vor.u32 %v1224, %v1225
      %v1228 = vrot.slane %v1224, 4
      %v1230 = vshrl.u32 %v1038, 16
      %v1232 = vrot.slane %v1230, 7
      %v1233 = vshll.u32 %v1038, 16
      %v1235 = vor.u32 %v1232, %v1233
      %v1236 = vsel %vm1050, %v1228, %v1235
      %v1237 = vrot.slane %v1232, 4
      %v1239 = vshrl.u32 %v1039, 16
      %v1241 = vrot.slane %v1239, 7
      %v1242 = vshll.u32 %v1039, 16
      %v1244 = vor.u32 %v1241, %v1242
      %v1245 = vrot.slane %v1241, 4
      %v1247 = vshrl.u32 %v1040, 16
      %v1249 = vrot.slane %v1247, 7
      %v1250 = vshll.u32 %v1040, 16
      %v1252 = vor.u32 %v1249, %v1250
      %v1253 = vsel %vm1050, %v1245, %v1252
      %v1254 = vrot.slane %v1249, 4
      %v1256 = vshrl.u32 %v1041, 16
      %v1258 = vrot.slane %v1256, 7
      %v1259 = vshll.u32 %v1041, 16
      %v1261 = vor.u32 %v1258, %v1259
      %v1262 = vrot.slane %v1258, 4
      %v1264 = vshrl.u32 %v1042, 16
      %v1266 = vrot.slane %v1264, 7
      %v1267 = vshll.u32 %v1042, 16
      %v1269 = vor.u32 %v1266, %v1267
      %v1270 = vsel %vm1050, %v1262, %v1269
      %v1271 = vrot.slane %v1266, 4
      %v1273 = vshrl.u32 %v1043, 16
      %v1275 = vrot.slane %v1273, 7
      %v1276 = vshll.u32 %v1043, 16
      %v1278 = vor.u32 %v1275, %v1276
      %v1279 = vrot.slane %v1275, 4
      %v1281 = vshrl.u32 %v1044, 16
      %v1283 = vrot.slane %v1281, 7
      %v1284 = vshll.u32 %v1044, 16
      %v1286 = vor.u32 %v1283, %v1284
      %v1287 = vsel %vm1050, %v1279, %v1286
      %v1288 = vrot.slane %v1283, 4
      %v1290 = vshrl.u32 %v1045, 16
      %v1292 = vrot.slane %v1290, 7
      %v1293 = vshll.u32 %v1045, 16
      %v1295 = vor.u32 %v1292, %v1293
      %v1296 = vrot.slane %v1292, 4
      %v1298 = vshrl.u32 %v1046, 16
      %v1300 = vrot.slane %v1298, 7
      %v1301 = vshll.u32 %v1046, 16
      %v1303 = vor.u32 %v1300, %v1301
      %v1304 = vsel %vm1050, %v1296, %v1303
      %v1305 = vrot.slane %v1300, 4
      %v1307 = vshrl.u32 %v1047, 16
      %v1309 = vrot.slane %v1307, 7
      %v1310 = vshll.u32 %v1047, 16
      %v1312 = vor.u32 %v1309, %v1310
      %v1313 = vrot.slane %v1309, 4
      %v1315 = vshrl.u32 %v1048, 16
      %v1317 = vrot.slane %v1315, 7
      %v1318 = vshll.u32 %v1048, 16
      %v1320 = vor.u32 %v1317, %v1318
      %v1321 = vsel %vm1050, %v1313, %v1320
      %v1322 = vrot.slane %v1317, 4
      %s1371 = scalar_lea.vmem [#allocation2], 12
      %vm1372 = vcmask 1043456
      %vm1373 = vmand %vm1372, %vm533
      %v1374 = vld [vmem:[%s1371] sm:$0xf]
      %v1375 = vsel %vm1373, %v1057, %v1374
      %1376 = vst [vmem:[%s1371] sm:$0xf] %v1375
      %1377 = vst [vmem:[%s1371 + $0x4] sm:$0xf] %v1066
      %v1378 = vld [vmem:[%s1371 + $0x8] sm:$0x1]
      %v1379 = vsel %vm478, %v1067, %v1378
      %1380 = vst [vmem:[%s1371 + $0x8] sm:$0x1] %v1379
      %v1381 = vld [vmem:[%s1371 + $0xc] sm:$0xf]
      %v1382 = vsel %vm1373, %v1074, %v1381
      %1383 = vst [vmem:[%s1371 + $0xc] sm:$0xf] %v1382
      %1384 = vst [vmem:[%s1371 + $0x10] sm:$0xf] %v1083
      %v1385 = vld [vmem:[%s1371 + $0x14] sm:$0x1]
      %v1386 = vsel %vm478, %v1084, %v1385
      %1387 = vst [vmem:[%s1371 + $0x14] sm:$0x1] %v1386
      %v1388 = vld [vmem:[%s1371 + $0x18] sm:$0xf]
      %v1389 = vsel %vm1373, %v1091, %v1388
      %1390 = vst [vmem:[%s1371 + $0x18] sm:$0xf] %v1389
      %1391 = vst [vmem:[%s1371 + $0x1c] sm:$0xf] %v1100
      %v1392 = vld [vmem:[%s1371 + $0x20] sm:$0x1]
      %v1393 = vsel %vm478, %v1101, %v1392
      %1394 = vst [vmem:[%s1371 + $0x20] sm:$0x1] %v1393
      %v1395 = vld [vmem:[%s1371 + $0x24] sm:$0xf]
      %v1396 = vsel %vm1373, %v1108, %v1395
      %1397 = vst [vmem:[%s1371 + $0x24] sm:$0xf] %v1396
      %1398 = vst [vmem:[%s1371 + $0x28] sm:$0xf] %v1117
      %v1399 = vld [vmem:[%s1371 + $0x2c] sm:$0x1]
      %v1400 = vsel %vm478, %v1118, %v1399
      %1401 = vst [vmem:[%s1371 + $0x2c] sm:$0x1] %v1400
      %v1402 = vld [vmem:[%s1371 + $0x30] sm:$0xf]
      %v1403 = vsel %vm1373, %v1125, %v1402
      %1404 = vst [vmem:[%s1371 + $0x30] sm:$0xf] %v1403
      %1405 = vst [vmem:[%s1371 + $0x34] sm:$0xf] %v1134
      %v1406 = vld [vmem:[%s1371 + $0x38] sm:$0x1]
      %v1407 = vsel %vm478, %v1135, %v1406
      %1408 = vst [vmem:[%s1371 + $0x38] sm:$0x1] %v1407
      %v1409 = vld [vmem:[%s1371 + $0x3c] sm:$0xf]
      %v1410 = vsel %vm1373, %v1142, %v1409
      %1411 = vst [vmem:[%s1371 + $0x3c] sm:$0xf] %v1410
      %1412 = vst [vmem:[%s1371 + $0x40] sm:$0xf] %v1151
      %v1413 = vld [vmem:[%s1371 + $0x44] sm:$0x1]
      %v1414 = vsel %vm478, %v1152, %v1413
      %1415 = vst [vmem:[%s1371 + $0x44] sm:$0x1] %v1414
      %v1416 = vld [vmem:[%s1371 + $0x48] sm:$0xf]
      %v1417 = vsel %vm1373, %v1159, %v1416
      %1418 = vst [vmem:[%s1371 + $0x48] sm:$0xf] %v1417
      %1419 = vst [vmem:[%s1371 + $0x4c] sm:$0xf] %v1168
      %v1420 = vld [vmem:[%s1371 + $0x50] sm:$0x1]
      %v1421 = vsel %vm478, %v1169, %v1420
      %1422 = vst [vmem:[%s1371 + $0x50] sm:$0x1] %v1421
      %v1423 = vld [vmem:[%s1371 + $0x54] sm:$0xf]
      %v1424 = vsel %vm1373, %v1176, %v1423
      %1425 = vst [vmem:[%s1371 + $0x54] sm:$0xf] %v1424
      %1426 = vst [vmem:[%s1371 + $0x58] sm:$0xf] %v1185
      %v1427 = vld [vmem:[%s1371 + $0x5c] sm:$0x1]
      %v1428 = vsel %vm478, %v1186, %v1427
      %1429 = vst [vmem:[%s1371 + $0x5c] sm:$0x1] %v1428
      %v1430 = vld [vmem:[%s1371 + $0x60] sm:$0xf]
      %v1431 = vsel %vm1373, %v1193, %v1430
      %1432 = vst [vmem:[%s1371 + $0x60] sm:$0xf] %v1431
      %1433 = vst [vmem:[%s1371 + $0x64] sm:$0xf] %v1202
      %v1434 = vld [vmem:[%s1371 + $0x68] sm:$0x1]
      %v1435 = vsel %vm478, %v1203, %v1434
      %1436 = vst [vmem:[%s1371 + $0x68] sm:$0x1] %v1435
      %v1437 = vld [vmem:[%s1371 + $0x6c] sm:$0xf]
      %v1438 = vsel %vm1373, %v1210, %v1437
      %1439 = vst [vmem:[%s1371 + $0x6c] sm:$0xf] %v1438
      %1440 = vst [vmem:[%s1371 + $0x70] sm:$0xf] %v1219
      %v1441 = vld [vmem:[%s1371 + $0x74] sm:$0x1]
      %v1442 = vsel %vm478, %v1220, %v1441
      %1443 = vst [vmem:[%s1371 + $0x74] sm:$0x1] %v1442
      %v1444 = vld [vmem:[%s1371 + $0x78] sm:$0xf]
      %v1445 = vsel %vm1373, %v1227, %v1444
      %1446 = vst [vmem:[%s1371 + $0x78] sm:$0xf] %v1445
      %1447 = vst [vmem:[%s1371 + $0x7c] sm:$0xf] %v1236
      %v1448 = vld [vmem:[%s1371 + $0x80] sm:$0x1]
      %v1449 = vsel %vm478, %v1237, %v1448
      %1450 = vst [vmem:[%s1371 + $0x80] sm:$0x1] %v1449
      %v1451 = vld [vmem:[%s1371 + $0x84] sm:$0xf]
      %v1452 = vsel %vm1373, %v1244, %v1451
      %1453 = vst [vmem:[%s1371 + $0x84] sm:$0xf] %v1452
      %1454 = vst [vmem:[%s1371 + $0x88] sm:$0xf] %v1253
      %v1455 = vld [vmem:[%s1371 + $0x8c] sm:$0x1]
      %v1456 = vsel %vm478, %v1254, %v1455
      %1457 = vst [vmem:[%s1371 + $0x8c] sm:$0x1] %v1456
      %v1458 = vld [vmem:[%s1371 + $0x90] sm:$0xf]
      %v1459 = vsel %vm1373, %v1261, %v1458
      %1460 = vst [vmem:[%s1371 + $0x90] sm:$0xf] %v1459
      %1461 = vst [vmem:[%s1371 + $0x94] sm:$0xf] %v1270
      %v1462 = vld [vmem:[%s1371 + $0x98] sm:$0x1]
      %v1463 = vsel %vm478, %v1271, %v1462
      %1464 = vst [vmem:[%s1371 + $0x98] sm:$0x1] %v1463
      %v1465 = vld [vmem:[%s1371 + $0x9c] sm:$0xf]
      %v1466 = vsel %vm1373, %v1278, %v1465
      %1467 = vst [vmem:[%s1371 + $0x9c] sm:$0xf] %v1466
      %1468 = vst [vmem:[%s1371 + $0xa0] sm:$0xf] %v1287
      %v1469 = vld [vmem:[%s1371 + $0xa4] sm:$0x1]
      %v1470 = vsel %vm478, %v1288, %v1469
      %1471 = vst [vmem:[%s1371 + $0xa4] sm:$0x1] %v1470
      %v1472 = vld [vmem:[%s1371 + $0xa8] sm:$0xf]
      %v1473 = vsel %vm1373, %v1295, %v1472
      %1474 = vst [vmem:[%s1371 + $0xa8] sm:$0xf] %v1473
      %1475 = vst [vmem:[%s1371 + $0xac] sm:$0xf] %v1304
      %v1476 = vld [vmem:[%s1371 + $0xb0] sm:$0x1]
      %v1477 = vsel %vm478, %v1305, %v1476
      %1478 = vst [vmem:[%s1371 + $0xb0] sm:$0x1] %v1477
      %v1479 = vld [vmem:[%s1371 + $0xb4] sm:$0xf]
      %v1480 = vsel %vm1373, %v1312, %v1479
      %1481 = vst [vmem:[%s1371 + $0xb4] sm:$0xf] %v1480
      %1482 = vst [vmem:[%s1371 + $0xb8] sm:$0xf] %v1321
      %v1483 = vld [vmem:[%s1371 + $0xbc] sm:$0x1]
      %v1484 = vsel %vm478, %v1322, %v1483
      %1485 = vst [vmem:[%s1371 + $0xbc] sm:$0x1] %v1484
      %p1486 = scmp.eq.s32.totalorder %s23, 0
      // Predicated region
      $region49: #{idm_vton_forward.3} parent=47 // pred_check
        %p1487 = pneg %p1486
      $region50: #{idm_vton_forward.3} parent=47 // pred_check_branch
        %1489 = sbr.rel (%p1487) target = $region52
      $region51: #{idm_vton_forward.3} parent=47 // pred_region
        %v1490 = vld [vmem:[#allocation2] sm:$0xf]
        %v1491 = vsel %vm1373, 0, %v1490
        %1492 = vst [vmem:[#allocation2] sm:$0xf] %v1491
        %1493 = vst [vmem:[#allocation2 + $0x4] sm:$0xf] 0
        %v1494 = vld [vmem:[#allocation2 + $0x8] sm:$0x1]
        %v1495 = vsel %vm478, 0, %v1494
        %1496 = vst [vmem:[#allocation2 + $0x8] sm:$0x1] %v1495
      $region52: #{idm_vton_forward.3} parent=47 // pred_fallthru
        _
      %p1497 = scmp.gt.s32.totalorder %s23, 0
      // Predicated region
      $region53: #{idm_vton_forward.3} parent=47 // pred_check
        %p1498 = pneg %p1497
      $region54: #{idm_vton_forward.3} parent=47 // pred_check_branch
        %1500 = sbr.rel (%p1498) target = $region56
      $region55: #{idm_vton_forward.3} parent=47 // pred_region
        %v1501 = vld [vmem:[%s435] sm:$0xf]
        %v1502 = vld [vmem:[%s435 + $0x4] sm:$0xf]
        %v1503 = vunpack.c.l.bf16 %v1501
        %v1504 = vunpack.c.l.bf16 %v1502
        %v1505 = vmul.f32 %v1503, %v657
        %v1506 = vmul.f32 %v1504, %v657
        %v1507 = vadd.f32 %v1505, %v695
        %v1508 = vadd.f32 %v1506, %v695
        %v1509 = vxor.u32 %v1507, 2147483648
        %v1510 = vxor.u32 %v1508, 2147483648
        %v1511 = vmul.f32 %v1509, 1.442695
        %v1512 = vpow.pop %v1511
        %v1513 = vmul.f32 %v1510, 1.442695
        %v1514 = vpow.pop %v1513
        %v1515 = vadd.f32 %v1512, 1.0
        %v1516 = vadd.f32 %v1514, 1.0
        %v1517 = vrcp.pop %v1515
        %v1518 = vmul.f32 1.0, %v1517
        %v1519 = vrcp.pop %v1516
        %v1520 = vmul.f32 1.0, %v1519
        %v1521 = vmul.f32 %v1507, %v1518
        %v1522 = vmul.f32 %v1508, %v1520
        %v1523 = vpack.c.bf16 %v1522, %v1521
        %v1525 = vunpack.c.l.b16 %v1523
        %v1526 = vunpack.c.h.b16 %v1523
        %v1527 = vpack.c.b16 %v1525, %v1525
        %v1528 = vpack.c.b16 %v1526, %v1526
        %v1530 = vshrl.u32 %v1527, 16
        %v1532 = vrot.slane %v1530, 7
        %v1533 = vshll.u32 %v1527, 16
        %v1535 = vor.u32 %v1532, %v1533
        %v1536 = vrot.slane %v1532, 4
        %v1538 = vshrl.u32 %v1528, 16
        %v1540 = vrot.slane %v1538, 7
        %v1541 = vshll.u32 %v1528, 16
        %v1543 = vor.u32 %v1540, %v1541
        %v1544 = vsel %vm1050, %v1536, %v1543
        %v1545 = vrot.slane %v1540, 4
        %v1549 = vld [vmem:[#allocation2] sm:$0xf]
        %v1550 = vsel %vm1373, %v1535, %v1549
        %1551 = vst [vmem:[#allocation2] sm:$0xf] %v1550
        %1552 = vst [vmem:[#allocation2 + $0x4] sm:$0xf] %v1544
        %v1553 = vld [vmem:[#allocation2 + $0x8] sm:$0x1]
        %v1554 = vsel %vm478, %v1545, %v1553
        %1555 = vst [vmem:[#allocation2 + $0x8] sm:$0x1] %v1554
      $region56: #{idm_vton_forward.3} parent=47 // pred_fallthru
        _
      // Predicated region
      $region57: #{idm_vton_forward.3} parent=47 // pred_check
        %p1556 = pneg %p1486
      $region58: #{idm_vton_forward.3} parent=47 // pred_check_branch
        %1558 = sbr.rel (%p1556) target = $region60
      $region59: #{idm_vton_forward.3} parent=47 // pred_region
        %s1559 = scalar_lea.vmem [#allocation2], 204
        %v1560 = vld [vmem:[%s1559] sm:$0xf]
        %v1561 = vsel %vm1373, 0, %v1560
        %1562 = vst [vmem:[%s1559] sm:$0xf] %v1561
        %1563 = vst [vmem:[%s1559 + $0x4] sm:$0xf] 0
        %v1564 = vld [vmem:[%s1559 + $0x8] sm:$0x1]
        %v1565 = vsel %vm478, 0, %v1564
        %1566 = vst [vmem:[%s1559 + $0x8] sm:$0x1] %v1565
      $region60: #{idm_vton_forward.3} parent=47 // pred_fallthru
        _
      %p1567 = scmp.lt.s32.totalorder %s23, 0
      // Predicated region
      $region61: #{idm_vton_forward.3} parent=47 // pred_check
        %p1568 = pneg %p1567
      $region62: #{idm_vton_forward.3} parent=47 // pred_check_branch
        %1570 = sbr.rel (%p1568) target = $region64
      $region63: #{idm_vton_forward.3} parent=47 // pred_region
        %v1571 = vld [vmem:[%s452] sm:$0xf]
        %v1572 = vld [vmem:[%s452 + $0x4] sm:$0xf]
        %v1573 = vunpack.c.l.bf16 %v1571
        %v1574 = vunpack.c.l.bf16 %v1572
        %v1575 = vmul.f32 %v1573, %v657
        %v1576 = vmul.f32 %v1574, %v657
        %v1577 = vadd.f32 %v1575, %v695
        %v1578 = vadd.f32 %v1576, %v695
        %v1579 = vxor.u32 %v1577, 2147483648
        %v1580 = vxor.u32 %v1578, 2147483648
        %v1581 = vmul.f32 %v1579, 1.442695
        %v1582 = vpow.pop %v1581
        %v1583 = vmul.f32 %v1580, 1.442695
        %v1584 = vpow.pop %v1583
        %v1585 = vadd.f32 %v1582, 1.0
        %v1586 = vadd.f32 %v1584, 1.0
        %v1587 = vrcp.pop %v1585
        %v1588 = vmul.f32 1.0, %v1587
        %v1589 = vrcp.pop %v1586
        %v1590 = vmul.f32 1.0, %v1589
        %v1591 = vmul.f32 %v1577, %v1588
        %v1592 = vmul.f32 %v1578, %v1590
        %v1593 = vpack.c.bf16 %v1592, %v1591
        %v1595 = vunpack.c.l.b16 %v1593
        %v1596 = vunpack.c.h.b16 %v1593
        %v1597 = vpack.c.b16 %v1595, %v1595
        %v1598 = vpack.c.b16 %v1596, %v1596
        %v1600 = vshrl.u32 %v1597, 16
        %v1602 = vrot.slane %v1600, 7
        %v1603 = vshll.u32 %v1597, 16
        %v1605 = vor.u32 %v1602, %v1603
        %v1606 = vrot.slane %v1602, 4
        %v1608 = vshrl.u32 %v1598, 16
        %v1610 = vrot.slane %v1608, 7
        %v1611 = vshll.u32 %v1598, 16
        %v1613 = vor.u32 %v1610, %v1611
        %v1614 = vsel %vm1050, %v1606, %v1613
        %v1615 = vrot.slane %v1610, 4
        %s1619 = scalar_lea.vmem [#allocation2], 204
        %v1620 = vld [vmem:[%s1619] sm:$0xf]
        %v1621 = vsel %vm1373, %v1605, %v1620
        %1622 = vst [vmem:[%s1619] sm:$0xf] %v1621
        %1623 = vst [vmem:[%s1619 + $0x4] sm:$0xf] %v1614
        %v1624 = vld [vmem:[%s1619 + $0x8] sm:$0x1]
        %v1625 = vsel %vm478, %v1615, %v1624
        %1626 = vst [vmem:[%s1619 + $0x8] sm:$0x1] %v1625
      $region64: #{idm_vton_forward.3} parent=47 // pred_fallthru
        _
      %v1627 = vld [vmem:[#allocation2] sm:$0xf]
      %v1628 = vld [vmem:[#allocation2 + $0x4] sm:$0xf]
      %v1629 = vld [vmem:[#allocation2 + $0x8] sm:$0x1]
      %v1630 = vld [vmem:[#allocation2 + $0xc] sm:$0xf]
      %v1631 = vld [vmem:[#allocation2 + $0x10] sm:$0xf]
      %v1632 = vld [vmem:[#allocation2 + $0x14] sm:$0x1]
      %v1633 = vld [vmem:[#allocation2 + $0x18] sm:$0xf]
      %v1634 = vld [vmem:[#allocation2 + $0x1c] sm:$0xf]
      %v1635 = vld [vmem:[#allocation2 + $0x20] sm:$0x1]
      %v1636 = vld [vmem:[#allocation2 + $0x24] sm:$0xf]
      %v1637 = vld [vmem:[#allocation2 + $0x28] sm:$0xf]
      %v1638 = vld [vmem:[#allocation2 + $0x2c] sm:$0x1]
      %v1639 = vld [vmem:[#allocation2 + $0x30] sm:$0xf]
      %v1640 = vld [vmem:[#allocation2 + $0x34] sm:$0xf]
      %v1641 = vld [vmem:[#allocation2 + $0x38] sm:$0x1]
      %v1642 = vld [vmem:[#allocation2 + $0x3c] sm:$0xf]
      %v1643 = vld [vmem:[#allocation2 + $0x40] sm:$0xf]
      %v1644 = vld [vmem:[#allocation2 + $0x44] sm:$0x1]
      %v1645 = vld [vmem:[#allocation2 + $0x48] sm:$0xf]
      %v1646 = vld [vmem:[#allocation2 + $0x4c] sm:$0xf]
      %v1647 = vld [vmem:[#allocation2 + $0x50] sm:$0x1]
      %v1648 = vld [vmem:[#allocation2 + $0x54] sm:$0xf]
      %v1649 = vld [vmem:[#allocation2 + $0x58] sm:$0xf]
      %v1650 = vld [vmem:[#allocation2 + $0x5c] sm:$0x1]
      %v1651 = vld [vmem:[#allocation2 + $0x60] sm:$0xf]
      %v1652 = vld [vmem:[#allocation2 + $0x64] sm:$0xf]
      %v1653 = vld [vmem:[#allocation2 + $0x68] sm:$0x1]
      %v1654 = vld [vmem:[#allocation2 + $0x6c] sm:$0xf]
      %v1655 = vld [vmem:[#allocation2 + $0x70] sm:$0xf]
      %v1656 = vld [vmem:[#allocation2 + $0x74] sm:$0x1]
      %v1657 = vld [vmem:[#allocation2 + $0x78] sm:$0xf]
      %v1658 = vld [vmem:[#allocation2 + $0x7c] sm:$0xf]
      %v1659 = vld [vmem:[#allocation2 + $0x80] sm:$0x1]
      %v1660 = vld [vmem:[#allocation2 + $0x84] sm:$0xf]
      %v1661 = vld [vmem:[#allocation2 + $0x88] sm:$0xf]
      %v1662 = vld [vmem:[#allocation2 + $0x8c] sm:$0x1]
      %v1663 = vld [vmem:[#allocation2 + $0x90] sm:$0xf]
      %v1664 = vld [vmem:[#allocation2 + $0x94] sm:$0xf]
      %v1665 = vld [vmem:[#allocation2 + $0x98] sm:$0x1]
      %v1666 = vld [vmem:[#allocation2 + $0x9c] sm:$0xf]
      %v1667 = vld [vmem:[#allocation2 + $0xa0] sm:$0xf]
      %v1668 = vld [vmem:[#allocation2 + $0xa4] sm:$0x1]
      %v1669 = vld [vmem:[#allocation2 + $0xa8] sm:$0xf]
      %v1670 = vld [vmem:[#allocation2 + $0xac] sm:$0xf]
      %v1671 = vld [vmem:[#allocation2 + $0xb0] sm:$0x1]
      %v1672 = vld [vmem:[#allocation2 + $0xb4] sm:$0xf]
      %v1673 = vld [vmem:[#allocation2 + $0xb8] sm:$0xf]
      %v1674 = vld [vmem:[#allocation2 + $0xbc] sm:$0x1]
      %v1675 = vld [vmem:[#allocation2 + $0xc0] sm:$0xf]
      %v1676 = vld [vmem:[#allocation2 + $0xc4] sm:$0xf]
      %v1677 = vld [vmem:[#allocation2 + $0xc8] sm:$0x1]
      %v1678 = vld [vmem:[#allocation2 + $0xcc] sm:$0xf]
      %v1679 = vld [vmem:[#allocation2 + $0xd0] sm:$0xf]
      %v1680 = vld [vmem:[#allocation2 + $0xd4] sm:$0x1]
      %v1717 = vunpack.c.l.b16 %v1627
      %v1718 = vunpack.c.l.b16 %v1628
      %v1719 = vunpack.c.l.b16 %v1630
      %v1720 = vunpack.c.l.b16 %v1631
      %v1721 = vunpack.c.l.b16 %v1633
      %v1722 = vunpack.c.l.b16 %v1634
      %v1723 = vunpack.c.l.b16 %v1636
      %v1724 = vunpack.c.l.b16 %v1637
      %v1725 = vunpack.c.l.b16 %v1639
      %v1726 = vunpack.c.l.b16 %v1640
      %v1727 = vunpack.c.l.b16 %v1642
      %v1728 = vunpack.c.l.b16 %v1643
      %v1729 = vunpack.c.l.b16 %v1645
      %v1730 = vunpack.c.l.b16 %v1646
      %v1731 = vunpack.c.l.b16 %v1648
      %v1732 = vunpack.c.l.b16 %v1649
      %v1733 = vunpack.c.l.b16 %v1651
      %v1734 = vunpack.c.l.b16 %v1652
      %v1735 = vunpack.c.l.b16 %v1654
      %v1736 = vunpack.c.l.b16 %v1655
      %v1737 = vunpack.c.l.b16 %v1657
      %v1738 = vunpack.c.l.b16 %v1658
      %v1739 = vunpack.c.l.b16 %v1660
      %v1740 = vunpack.c.l.b16 %v1661
      %v1741 = vunpack.c.l.b16 %v1663
      %v1742 = vunpack.c.l.b16 %v1664
      %v1743 = vunpack.c.l.b16 %v1666
      %v1744 = vunpack.c.l.b16 %v1667
      %v1745 = vunpack.c.l.b16 %v1669
      %v1746 = vunpack.c.l.b16 %v1670
      %v1747 = vunpack.c.l.b16 %v1672
      %v1748 = vunpack.c.l.b16 %v1673
      %v1749 = vunpack.c.l.b16 %v1675
      %v1750 = vunpack.c.l.b16 %v1676
      %v1751 = vunpack.c.l.b16 %v1678
      %v1752 = vunpack.c.l.b16 %v1679
      %v1753 = vpack.c.b16 %v1718, %v1717
      %v1754 = vpack.c.b16 %v1720, %v1719
      %v1755 = vpack.c.b16 %v1722, %v1721
      %v1756 = vpack.c.b16 %v1724, %v1723
      %v1757 = vpack.c.b16 %v1726, %v1725
      %v1758 = vpack.c.b16 %v1728, %v1727
      %v1759 = vpack.c.b16 %v1730, %v1729
      %v1760 = vpack.c.b16 %v1732, %v1731
      %v1761 = vpack.c.b16 %v1734, %v1733
      %v1762 = vpack.c.b16 %v1736, %v1735
      %v1763 = vpack.c.b16 %v1738, %v1737
      %v1764 = vpack.c.b16 %v1740, %v1739
      %v1765 = vpack.c.b16 %v1742, %v1741
      %v1766 = vpack.c.b16 %v1744, %v1743
      %v1767 = vpack.c.b16 %v1746, %v1745
      %v1768 = vpack.c.b16 %v1748, %v1747
      %v1769 = vpack.c.b16 %v1750, %v1749
      %v1770 = vpack.c.b16 %v1752, %v1751
      %v1807 = vunpack.c.l.b16 %v1629
      %v1808 = vunpack.c.l.b16 %v1632
      %v1809 = vunpack.c.l.b16 %v1635
      %v1810 = vunpack.c.l.b16 %v1638
      %v1811 = vunpack.c.l.b16 %v1641
      %v1812 = vunpack.c.l.b16 %v1644
      %v1813 = vunpack.c.l.b16 %v1647
      %v1814 = vunpack.c.l.b16 %v1650
      %v1815 = vunpack.c.l.b16 %v1653
      %v1816 = vunpack.c.l.b16 %v1656
      %v1817 = vunpack.c.l.b16 %v1659
      %v1818 = vunpack.c.l.b16 %v1662
      %v1819 = vunpack.c.l.b16 %v1665
      %v1820 = vunpack.c.l.b16 %v1668
      %v1821 = vunpack.c.l.b16 %v1671
      %v1822 = vunpack.c.l.b16 %v1674
      %v1823 = vunpack.c.l.b16 %v1677
      %v1824 = vunpack.c.l.b16 %v1680
      %v1825 = vpack.c.b16 %v1807, %v1807
      %v1826 = vpack.c.b16 %v1808, %v1808
      %v1827 = vpack.c.b16 %v1809, %v1809
      %v1828 = vpack.c.b16 %v1810, %v1810
      %v1829 = vpack.c.b16 %v1811, %v1811
      %v1830 = vpack.c.b16 %v1812, %v1812
      %v1831 = vpack.c.b16 %v1813, %v1813
      %v1832 = vpack.c.b16 %v1814, %v1814
      %v1833 = vpack.c.b16 %v1815, %v1815
      %v1834 = vpack.c.b16 %v1816, %v1816
      %v1835 = vpack.c.b16 %v1817, %v1817
      %v1836 = vpack.c.b16 %v1818, %v1818
      %v1837 = vpack.c.b16 %v1819, %v1819
      %v1838 = vpack.c.b16 %v1820, %v1820
      %v1839 = vpack.c.b16 %v1821, %v1821
      %v1840 = vpack.c.b16 %v1822, %v1822
      %v1841 = vpack.c.b16 %v1823, %v1823
      %v1842 = vpack.c.b16 %v1824, %v1824
      %vm1843 = vsmask.f32 7424
      %v1845 = vshrl.u32 %v1753, 16
      %v1847 = vshll.u32 %v1753, 16
      %v1849 = vrot.slane %v1847, 1
      %v1850 = vor.u32 %v1845, %v1849
      %v1852 = vshll.u32 %v1825, 16
      %v1854 = vrot.slane %v1852, 1
      %v1855 = vsel %vm1843, %v1850, %v1854
      %v1857 = vshrl.u32 %v1754, 16
      %v1859 = vshll.u32 %v1754, 16
      %v1861 = vrot.slane %v1859, 1
      %v1862 = vor.u32 %v1857, %v1861
      %v1864 = vshll.u32 %v1826, 16
      %v1866 = vrot.slane %v1864, 1
      %v1867 = vsel %vm1843, %v1862, %v1866
      %v1869 = vshrl.u32 %v1755, 16
      %v1871 = vshll.u32 %v1755, 16
      %v1873 = vrot.slane %v1871, 1
      %v1874 = vor.u32 %v1869, %v1873
      %v1876 = vshll.u32 %v1827, 16
      %v1878 = vrot.slane %v1876, 1
      %v1879 = vsel %vm1843, %v1874, %v1878
      %v1881 = vshrl.u32 %v1756, 16
      %v1883 = vshll.u32 %v1756, 16
      %v1885 = vrot.slane %v1883, 1
      %v1886 = vor.u32 %v1881, %v1885
      %v1888 = vshll.u32 %v1828, 16
      %v1890 = vrot.slane %v1888, 1
      %v1891 = vsel %vm1843, %v1886, %v1890
      %v1893 = vshrl.u32 %v1757, 16
      %v1895 = vshll.u32 %v1757, 16
      %v1897 = vrot.slane %v1895, 1
      %v1898 = vor.u32 %v1893, %v1897
      %v1900 = vshll.u32 %v1829, 16
      %v1902 = vrot.slane %v1900, 1
      %v1903 = vsel %vm1843, %v1898, %v1902
      %v1905 = vshrl.u32 %v1758, 16
      %v1907 = vshll.u32 %v1758, 16
      %v1909 = vrot.slane %v1907, 1
      %v1910 = vor.u32 %v1905, %v1909
      %v1912 = vshll.u32 %v1830, 16
      %v1914 = vrot.slane %v1912, 1
      %v1915 = vsel %vm1843, %v1910, %v1914
      %v1917 = vshrl.u32 %v1759, 16
      %v1919 = vshll.u32 %v1759, 16
      %v1921 = vrot.slane %v1919, 1
      %v1922 = vor.u32 %v1917, %v1921
      %v1924 = vshll.u32 %v1831, 16
      %v1926 = vrot.slane %v1924, 1
      %v1927 = vsel %vm1843, %v1922, %v1926
      %v1929 = vshrl.u32 %v1760, 16
      %v1931 = vshll.u32 %v1760, 16
      %v1933 = vrot.slane %v1931, 1
      %v1934 = vor.u32 %v1929, %v1933
      %v1936 = vshll.u32 %v1832, 16
      %v1938 = vrot.slane %v1936, 1
      %v1939 = vsel %vm1843, %v1934, %v1938
      %v1941 = vshrl.u32 %v1761, 16
      %v1943 = vshll.u32 %v1761, 16
      %v1945 = vrot.slane %v1943, 1
      %v1946 = vor.u32 %v1941, %v1945
      %v1948 = vshll.u32 %v1833, 16
      %v1950 = vrot.slane %v1948, 1
      %v1951 = vsel %vm1843, %v1946, %v1950
      %v1953 = vshrl.u32 %v1762, 16
      %v1955 = vshll.u32 %v1762, 16
      %v1957 = vrot.slane %v1955, 1
      %v1958 = vor.u32 %v1953, %v1957
      %v1960 = vshll.u32 %v1834, 16
      %v1962 = vrot.slane %v1960, 1
      %v1963 = vsel %vm1843, %v1958, %v1962
      %v1965 = vshrl.u32 %v1763, 16
      %v1967 = vshll.u32 %v1763, 16
      %v1969 = vrot.slane %v1967, 1
      %v1970 = vor.u32 %v1965, %v1969
      %v1972 = vshll.u32 %v1835, 16
      %v1974 = vrot.slane %v1972, 1
      %v1975 = vsel %vm1843, %v1970, %v1974
      %v1977 = vshrl.u32 %v1764, 16
      %v1979 = vshll.u32 %v1764, 16
      %v1981 = vrot.slane %v1979, 1
      %v1982 = vor.u32 %v1977, %v1981
      %v1984 = vshll.u32 %v1836, 16
      %v1986 = vrot.slane %v1984, 1
      %v1987 = vsel %vm1843, %v1982, %v1986
      %v1989 = vshrl.u32 %v1765, 16
      %v1991 = vshll.u32 %v1765, 16
      %v1993 = vrot.slane %v1991, 1
      %v1994 = vor.u32 %v1989, %v1993
      %v1996 = vshll.u32 %v1837, 16
      %v1998 = vrot.slane %v1996, 1
      %v1999 = vsel %vm1843, %v1994, %v1998
      %v2001 = vshrl.u32 %v1766, 16
      %v2003 = vshll.u32 %v1766, 16
      %v2005 = vrot.slane %v2003, 1
      %v2006 = vor.u32 %v2001, %v2005
      %v2008 = vshll.u32 %v1838, 16
      %v2010 = vrot.slane %v2008, 1
      %v2011 = vsel %vm1843, %v2006, %v2010
      %v2013 = vshrl.u32 %v1767, 16
      %v2015 = vshll.u32 %v1767, 16
      %v2017 = vrot.slane %v2015, 1
      %v2018 = vor.u32 %v2013, %v2017
      %v2020 = vshll.u32 %v1839, 16
      %v2022 = vrot.slane %v2020, 1
      %v2023 = vsel %vm1843, %v2018, %v2022
      %v2025 = vshrl.u32 %v1768, 16
      %v2027 = vshll.u32 %v1768, 16
      %v2029 = vrot.slane %v2027, 1
      %v2030 = vor.u32 %v2025, %v2029
      %v2032 = vshll.u32 %v1840, 16
      %v2034 = vrot.slane %v2032, 1
      %v2035 = vsel %vm1843, %v2030, %v2034
      %v2037 = vshrl.u32 %v1769, 16
      %v2039 = vshll.u32 %v1769, 16
      %v2041 = vrot.slane %v2039, 1
      %v2042 = vor.u32 %v2037, %v2041
      %v2044 = vshll.u32 %v1841, 16
      %v2046 = vrot.slane %v2044, 1
      %v2047 = vsel %vm1843, %v2042, %v2046
      %v2049 = vshrl.u32 %v1770, 16
      %v2051 = vshll.u32 %v1770, 16
      %v2053 = vrot.slane %v2051, 1
      %v2054 = vor.u32 %v2049, %v2053
      %v2056 = vshll.u32 %v1842, 16
      %v2058 = vrot.slane %v2056, 1
      %v2059 = vsel %vm1843, %v2054, %v2058
      %vm2078 = vcmask 1046528
      %v2079 = vrot.slane %v1753, 1
      %v2080 = vrot.slane %v1825, 1
      %v2081 = vsel %vm2078, %v2079, %v2080
      %v2082 = vrot.slane %v1754, 1
      %v2083 = vrot.slane %v1826, 1
      %v2084 = vsel %vm2078, %v2082, %v2083
      %v2085 = vrot.slane %v1755, 1
      %v2086 = vrot.slane %v1827, 1
      %v2087 = vsel %vm2078, %v2085, %v2086
      %v2088 = vrot.slane %v1756, 1
      %v2089 = vrot.slane %v1828, 1
      %v2090 = vsel %vm2078, %v2088, %v2089
      %v2091 = vrot.slane %v1757, 1
      %v2092 = vrot.slane %v1829, 1
      %v2093 = vsel %vm2078, %v2091, %v2092
      %v2094 = vrot.slane %v1758, 1
      %v2095 = vrot.slane %v1830, 1
      %v2096 = vsel %vm2078, %v2094, %v2095
      %v2097 = vrot.slane %v1759, 1
      %v2098 = vrot.slane %v1831, 1
      %v2099 = vsel %vm2078, %v2097, %v2098
      %v2100 = vrot.slane %v1760, 1
      %v2101 = vrot.slane %v1832, 1
      %v2102 = vsel %vm2078, %v2100, %v2101
      %v2103 = vrot.slane %v1761, 1
      %v2104 = vrot.slane %v1833, 1
      %v2105 = vsel %vm2078, %v2103, %v2104
      %v2106 = vrot.slane %v1762, 1
      %v2107 = vrot.slane %v1834, 1
      %v2108 = vsel %vm2078, %v2106, %v2107
      %v2109 = vrot.slane %v1763, 1
      %v2110 = vrot.slane %v1835, 1
      %v2111 = vsel %vm2078, %v2109, %v2110
      %v2112 = vrot.slane %v1764, 1
      %v2113 = vrot.slane %v1836, 1
      %v2114 = vsel %vm2078, %v2112, %v2113
      %v2115 = vrot.slane %v1765, 1
      %v2116 = vrot.slane %v1837, 1
      %v2117 = vsel %vm2078, %v2115, %v2116
      %v2118 = vrot.slane %v1766, 1
      %v2119 = vrot.slane %v1838, 1
      %v2120 = vsel %vm2078, %v2118, %v2119
      %v2121 = vrot.slane %v1767, 1
      %v2122 = vrot.slane %v1839, 1
      %v2123 = vsel %vm2078, %v2121, %v2122
      %v2124 = vrot.slane %v1768, 1
      %v2125 = vrot.slane %v1840, 1
      %v2126 = vsel %vm2078, %v2124, %v2125
      %v2127 = vrot.slane %v1769, 1
      %v2128 = vrot.slane %v1841, 1
      %v2129 = vsel %vm2078, %v2127, %v2128
      %v2130 = vrot.slane %v1770, 1
      %v2131 = vrot.slane %v1842, 1
      %v2132 = vsel %vm2078, %v2130, %v2131
      %v2151 = vld [vmem:[%s5] sm:$0xff]
      %v2152 = vld [vmem:[%s5 + $0x8] sm:$0xff]
      %v2153 = vld [vmem:[%s5 + $0x10] sm:$0x3]
      %v2154 = vld [vmem:[%s6] sm:$0x7]
      %2156 = vset.pattern.permute.xlu0 0
      %2157 = vperm.xlu0 %2156, %v2154
      %v2158 = vpop.permute.xlu0 %2157
      %v2163 = vcombine.high %v2151, %v2151
      %v2165 = vunpack.c.l.s4 1983009808
      %v2166 = vunpack.c.0.s8 %v2165
      %v2167 = vlaneseq
      %v2168 = vshrl.u32 %v2167, 7
      %v2169 = vsub.s32 %v2166, %v2168
      %v2170 = vrot.slane %v2151, %v2169
      %v2172 = vunpack.c.l.s4 1983009808
      %v2173 = vunpack.c.0.s8 %v2172
      %v2174 = vlaneseq
      %v2175 = vshrl.u32 %v2174, 7
      %v2176 = vsub.s32 %v2173, %v2175
      %v2177 = vrot.slane %v2163, %v2176
      %v2178 = vcombine.high %v2170, %v2170
      %v2179 = vcombine.high %v2177, %v2177
      %v2180 = vcombine.high %v2152, %v2152
      %v2182 = vunpack.c.l.s4 1983009808
      %v2183 = vunpack.c.0.s8 %v2182
      %v2184 = vlaneseq
      %v2185 = vshrl.u32 %v2184, 7
      %v2186 = vsub.s32 %v2183, %v2185
      %v2187 = vrot.slane %v2152, %v2186
      %v2189 = vunpack.c.l.s4 1983009808
      %v2190 = vunpack.c.0.s8 %v2189
      %v2191 = vlaneseq
      %v2192 = vshrl.u32 %v2191, 7
      %v2193 = vsub.s32 %v2190, %v2192
      %v2194 = vrot.slane %v2180, %v2193
      %v2195 = vcombine.high %v2187, %v2187
      %v2196 = vcombine.high %v2194, %v2194
      %v2198 = vunpack.c.l.s4 1983009808
      %v2199 = vunpack.c.0.s8 %v2198
      %v2200 = vlaneseq
      %v2201 = vshrl.u32 %v2200, 7
      %v2202 = vsub.s32 %v2199, %v2201
      %v2203 = vrot.slane %v2153, %v2202
      %2213 = vmatprep.subr.bf16.mxu0 %v1855
      %2214 = vmatpush1.bf16.xpose.msra.mxu0 %v1753
      %2215 = vmatprep.subr.bf16.mxu0 %v1867
      %2216 = vmatpush1.bf16.xpose.msra.mxu0 %v1754
      %2217 = vmatprep.subr.bf16.mxu0 %v1879
      %2218 = vmatpush1.bf16.xpose.msra.mxu0 %v1755
      %2219 = vmatprep.subr.bf16.mxu0 %v1891
      %2220 = vmatpush1.bf16.xpose.msra.mxu0 %v1756
      %2221 = vmatprep.subr.bf16.mxu0 %v1903
      %2222 = vmatpush1.bf16.xpose.msra.mxu0 %v1757
      %2223 = vmatprep.subr.bf16.mxu0 %v1915
      %2224 = vmatpush1.bf16.xpose.msra.mxu0 %v1758
      %2225 = vmatprep.subr.bf16.mxu0 %v1927
      %2226 = vmatpush1.bf16.xpose.msra.mxu0 %v1759
      %2227 = vmatprep.subr.bf16.mxu0 %v1939
      %2228 = vmatpush1.bf16.xpose.msra.mxu0 %v1760
      %2229 = vmatprep.subr.bf16.mxu0 %v1951
      %2230 = vmatpush1.bf16.xpose.msra.mxu0 %v1761
      %2231 = vmatprep.subr.bf16.mxu0 %v1963
      %2232 = vmatpush1.bf16.xpose.msra.mxu0 %v1762
      %2233 = vmatprep.subr.bf16.mxu0 %v1975
      %2234 = vmatpush1.bf16.xpose.msra.mxu0 %v1763
      %2235 = vmatprep.subr.bf16.mxu0 %v1987
      %2236 = vmatpush1.bf16.xpose.msra.mxu0 %v1764
      %2237 = vmatprep.subr.bf16.mxu0 %v1999
      %2238 = vmatpush1.bf16.xpose.msra.mxu0 %v1765
      %2239 = vmatprep.subr.bf16.mxu0 %v2011
      %2240 = vmatpush1.bf16.xpose.msra.mxu0 %v1766
      %2241 = vmatprep.subr.bf16.mxu0 %v2023
      %2242 = vmatpush1.bf16.xpose.msra.mxu0 %v1767
      %2243 = vmatprep.subr.bf16.mxu0 %v2035
      %2244 = vmatpush1.bf16.xpose.msra.mxu0 %v1768
      %2245 = vmatprep.mubr.bf16.mxu0 %v2178
      %2246 = vmatmul.mubr.bf16.gmra.mrb[0].mxu0 %v2170
      %v2247 = vpop.f32.mrb[0].mxu0
      %v2248 = vadd.f32 %v2158, %v2247
      %v2249 = vpop.f32.mrb[0].mxu0
      %v2250 = vadd.f32 %v2158, %v2249
      %v2251 = vpop.f32.mrb[0].mxu0
      %v2252 = vpop.f32.mrb[0].mxu0
      %2253 = vdwg.mxu0
      %2254 = vmatprep.subr.bf16.mxu0 %v1754
      %2255 = vmatpush1.bf16.xpose.msra.mxu0 %v2081
      %2256 = vmatprep.subr.bf16.mxu0 %v1755
      %2257 = vmatpush1.bf16.xpose.msra.mxu0 %v2084
      %2258 = vmatprep.subr.bf16.mxu0 %v1756
      %2259 = vmatpush1.bf16.xpose.msra.mxu0 %v2087
      %2260 = vmatprep.subr.bf16.mxu0 %v1757
      %2261 = vmatpush1.bf16.xpose.msra.mxu0 %v2090
      %2262 = vmatprep.subr.bf16.mxu0 %v1758
      %2263 = vmatpush1.bf16.xpose.msra.mxu0 %v2093
      %2264 = vmatprep.subr.bf16.mxu0 %v1759
      %2265 = vmatpush1.bf16.xpose.msra.mxu0 %v2096
      %2266 = vmatprep.subr.bf16.mxu0 %v1760
      %2267 = vmatpush1.bf16.xpose.msra.mxu0 %v2099
      %2268 = vmatprep.subr.bf16.mxu0 %v1761
      %2269 = vmatpush1.bf16.xpose.msra.mxu0 %v2102
      %2270 = vmatprep.subr.bf16.mxu0 %v1762
      %2271 = vmatpush1.bf16.xpose.msra.mxu0 %v2105
      %2272 = vmatprep.subr.bf16.mxu0 %v1763
      %2273 = vmatpush1.bf16.xpose.msra.mxu0 %v2108
      %2274 = vmatprep.subr.bf16.mxu0 %v1764
      %2275 = vmatpush1.bf16.xpose.msra.mxu0 %v2111
      %2276 = vmatprep.subr.bf16.mxu0 %v1765
      %2277 = vmatpush1.bf16.xpose.msra.mxu0 %v2114
      %2278 = vmatprep.subr.bf16.mxu0 %v1766
      %2279 = vmatpush1.bf16.xpose.msra.mxu0 %v2117
      %2280 = vmatprep.subr.bf16.mxu0 %v1767
      %2281 = vmatpush1.bf16.xpose.msra.mxu0 %v2120
      %2282 = vmatprep.subr.bf16.mxu0 %v1768
      %2283 = vmatpush1.bf16.xpose.msra.mxu0 %v2123
      %2284 = vmatprep.subr.bf16.mxu0 %v1769
      %2285 = vmatpush1.bf16.xpose.msra.mxu0 %v2126
      %2286 = vmatprep.mubr.bf16.mxu0 %v2179
      %2287 = vmatmul.mubr.bf16.gmra.mrb[0].mxu0 %v2177
      %v2288 = vpop.f32.mrb[0].mxu0
      %v2289 = vadd.f32 %v2248, %v2288
      %v2290 = vpop.f32.mrb[0].mxu0
      %v2291 = vadd.f32 %v2250, %v2290
      %v2292 = vpop.f32.mrb[0].mxu0
      %v2293 = vpop.f32.mrb[0].mxu0
      %2294 = vdwg.mxu0
      %2295 = vmatprep.subr.bf16.mxu0 %v2084
      %2296 = vmatpush1.bf16.xpose.msra.mxu0 %v1867
      %2297 = vmatprep.subr.bf16.mxu0 %v2087
      %2298 = vmatpush1.bf16.xpose.msra.mxu0 %v1879
      %2299 = vmatprep.subr.bf16.mxu0 %v2090
      %2300 = vmatpush1.bf16.xpose.msra.mxu0 %v1891
      %2301 = vmatprep.subr.bf16.mxu0 %v2093
      %2302 = vmatpush1.bf16.xpose.msra.mxu0 %v1903
      %2303 = vmatprep.subr.bf16.mxu0 %v2096
      %2304 = vmatpush1.bf16.xpose.msra.mxu0 %v1915
      %2305 = vmatprep.subr.bf16.mxu0 %v2099
      %2306 = vmatpush1.bf16.xpose.msra.mxu0 %v1927
      %2307 = vmatprep.subr.bf16.mxu0 %v2102
      %2308 = vmatpush1.bf16.xpose.msra.mxu0 %v1939
      %2309 = vmatprep.subr.bf16.mxu0 %v2105
      %2310 = vmatpush1.bf16.xpose.msra.mxu0 %v1951
      %2311 = vmatprep.subr.bf16.mxu0 %v2108
      %2312 = vmatpush1.bf16.xpose.msra.mxu0 %v1963
      %2313 = vmatprep.subr.bf16.mxu0 %v2111
      %2314 = vmatpush1.bf16.xpose.msra.mxu0 %v1975
      %2315 = vmatprep.subr.bf16.mxu0 %v2114
      %2316 = vmatpush1.bf16.xpose.msra.mxu0 %v1987
      %2317 = vmatprep.subr.bf16.mxu0 %v2117
      %2318 = vmatpush1.bf16.xpose.msra.mxu0 %v1999
      %2319 = vmatprep.subr.bf16.mxu0 %v2120
      %2320 = vmatpush1.bf16.xpose.msra.mxu0 %v2011
      %2321 = vmatprep.subr.bf16.mxu0 %v2123
      %2322 = vmatpush1.bf16.xpose.msra.mxu0 %v2023
      %2323 = vmatprep.subr.bf16.mxu0 %v2126
      %2324 = vmatpush1.bf16.xpose.msra.mxu0 %v2035
      %2325 = vmatprep.subr.bf16.mxu0 %v2129
      %2326 = vmatpush1.bf16.xpose.msra.mxu0 %v2047
      %2327 = vmatprep.mubr.bf16.mxu0 %v2195
      %2328 = vmatmul.mubr.bf16.gmra.mrb[0].mxu0 %v2187
      %v2329 = vpop.f32.mrb[0].mxu0
      %v2330 = vadd.f32 %v2289, %v2329
      %v2331 = vpop.f32.mrb[0].mxu0
      %v2332 = vadd.f32 %v2291, %v2331
      %v2333 = vpop.f32.mrb[0].mxu0
      %v2334 = vpop.f32.mrb[0].mxu0
      %2335 = vdwg.mxu0
      %2336 = vmatprep.subr.bf16.mxu0 %v1879
      %2337 = vmatpush1.bf16.xpose.msra.mxu0 %v1755
      %2338 = vmatprep.subr.bf16.mxu0 %v1891
      %2339 = vmatpush1.bf16.xpose.msra.mxu0 %v1756
      %2340 = vmatprep.subr.bf16.mxu0 %v1903
      %2341 = vmatpush1.bf16.xpose.msra.mxu0 %v1757
      %2342 = vmatprep.subr.bf16.mxu0 %v1915
      %2343 = vmatpush1.bf16.xpose.msra.mxu0 %v1758
      %2344 = vmatprep.subr.bf16.mxu0 %v1927
      %2345 = vmatpush1.bf16.xpose.msra.mxu0 %v1759
      %2346 = vmatprep.subr.bf16.mxu0 %v1939
      %2347 = vmatpush1.bf16.xpose.msra.mxu0 %v1760
      %2348 = vmatprep.subr.bf16.mxu0 %v1951
      %2349 = vmatpush1.bf16.xpose.msra.mxu0 %v1761
      %2350 = vmatprep.subr.bf16.mxu0 %v1963
      %2351 = vmatpush1.bf16.xpose.msra.mxu0 %v1762
      %2352 = vmatprep.subr.bf16.mxu0 %v1975
      %2353 = vmatpush1.bf16.xpose.msra.mxu0 %v1763
      %2354 = vmatprep.subr.bf16.mxu0 %v1987
      %2355 = vmatpush1.bf16.xpose.msra.mxu0 %v1764
      %2356 = vmatprep.subr.bf16.mxu0 %v1999
      %2357 = vmatpush1.bf16.xpose.msra.mxu0 %v1765
      %2358 = vmatprep.subr.bf16.mxu0 %v2011
      %2359 = vmatpush1.bf16.xpose.msra.mxu0 %v1766
      %2360 = vmatprep.subr.bf16.mxu0 %v2023
      %2361 = vmatpush1.bf16.xpose.msra.mxu0 %v1767
      %2362 = vmatprep.subr.bf16.mxu0 %v2035
      %2363 = vmatpush1.bf16.xpose.msra.mxu0 %v1768
      %2364 = vmatprep.subr.bf16.mxu0 %v2047
      %2365 = vmatpush1.bf16.xpose.msra.mxu0 %v1769
      %2366 = vmatprep.subr.bf16.mxu0 %v2059
      %2367 = vmatpush1.bf16.xpose.msra.mxu0 %v1770
      %2368 = vmatprep.mubr.bf16.mxu0 %v2196
      %2369 = vmatmul.mubr.bf16.gmra.mrb[0].mxu0 %v2194
      %v2370 = vpop.f32.mrb[0].mxu0
      %v2371 = vadd.f32 %v2330, %v2370
      %v2372 = vpop.f32.mrb[0].mxu0
      %v2373 = vadd.f32 %v2332, %v2372
      %v2374 = vpop.f32.mrb[0].mxu0
      %v2375 = vpop.f32.mrb[0].mxu0
      %2376 = vdwg.mxu0
      %2377 = vmatprep.subr.bf16.mxu0 0
      %2378 = vmatpush1.bf16.xpose.msra.mxu0 %v2087
      %2379 = vmatprep.subr.bf16.mxu0 0
      %2380 = vmatpush1.bf16.xpose.msra.mxu0 %v2090
      %2381 = vmatprep.subr.bf16.mxu0 0
      %2382 = vmatpush1.bf16.xpose.msra.mxu0 %v2093
      %2383 = vmatprep.subr.bf16.mxu0 0
      %2384 = vmatpush1.bf16.xpose.msra.mxu0 %v2096
      %2385 = vmatprep.subr.bf16.mxu0 0
      %2386 = vmatpush1.bf16.xpose.msra.mxu0 %v2099
      %2387 = vmatprep.subr.bf16.mxu0 0
      %2388 = vmatpush1.bf16.xpose.msra.mxu0 %v2102
      %2389 = vmatprep.subr.bf16.mxu0 0
      %2390 = vmatpush1.bf16.xpose.msra.mxu0 %v2105
      %2391 = vmatprep.subr.bf16.mxu0 0
      %2392 = vmatpush1.bf16.xpose.msra.mxu0 %v2108
      %2393 = vmatprep.subr.bf16.mxu0 0
      %2394 = vmatpush1.bf16.xpose.msra.mxu0 %v2111
      %2395 = vmatprep.subr.bf16.mxu0 0
      %2396 = vmatpush1.bf16.xpose.msra.mxu0 %v2114
      %2397 = vmatprep.subr.bf16.mxu0 0
      %2398 = vmatpush1.bf16.xpose.msra.mxu0 %v2117
      %2399 = vmatprep.subr.bf16.mxu0 0
      %2400 = vmatpush1.bf16.xpose.msra.mxu0 %v2120
      %2401 = vmatprep.subr.bf16.mxu0 0
      %2402 = vmatpush1.bf16.xpose.msra.mxu0 %v2123
      %2403 = vmatprep.subr.bf16.mxu0 0
      %2404 = vmatpush1.bf16.xpose.msra.mxu0 %v2126
      %2405 = vmatprep.subr.bf16.mxu0 0
      %2406 = vmatpush1.bf16.xpose.msra.mxu0 %v2129
      %2407 = vmatprep.subr.bf16.mxu0 0
      %2408 = vmatpush1.bf16.xpose.msra.mxu0 %v2132
      %2409 = vmatprep.mubr.bf16.mxu0 0
      %2410 = vmatmul.mubr.bf16.gmra.mrb[0].mxu0 %v2203
      %v2411 = vpop.f32.mrb[0].mxu0
      %v2412 = vadd.f32 %v2371, %v2411
      %v2413 = vpop.f32.mrb[0].mxu0
      %v2414 = vadd.f32 %v2373, %v2413
      %v2415 = vpop.f32.mrb[0].mxu0
      %v2416 = vpop.f32.mrb[0].mxu0
      %2417 = vdwg.mxu0
      %v2420 = vcombine.low %v2412, %v2414
      %2422 = vst [vmem:[%s471] sm:$0x77] %v2420
      %s2423 = smul.u32 2, %s23
      %p2424 = scmp.lt.s32.totalorder %s22, 1
      %s2425 = scalar_select %p2424, %s22, 1
      %p2426 = scmp.lt.s32.totalorder %s2423, 1
      %s2427 = scalar_select %p2426, %s2423, 1
      %s2428 = smul.addr %s2425, 2
      %s2429 = sadd.s32 %s2427, %s2428
      %s2430 = smul.addr %s2429, 4
      %s2431 = scalar_lea.vmem %s7, %s2430
      // Predicated region
      $region65: #{idm_vton_forward.3} parent=47 // pred_check
        %p2432 = pneg %p244
      $region66: #{idm_vton_forward.3} parent=47 // pred_check_branch
        %2434 = sbr.rel (%p2432) target = $region68
      $region67: #{idm_vton_forward.3} parent=47 // pred_region
        %s2435 = smul.u32 2, %s23
      $region68: #{idm_vton_forward.3} parent=47 // pred_fallthru
        _
    $region48: #{idm_vton_forward.3} parent=5 // pred_fallthru
      _
    %p2436 = scmp.le.s32.totalorder 2, %s13
    // Predicated region
    $region69: #{idm_vton_forward.3} parent=5 // pred_check
      %p2437 = pneg %p2436
    $region70: #{idm_vton_forward.3} parent=5 // pred_check_branch
      %2439 = sbr.rel (%p2437) target = $region72
    $region71: #{idm_vton_forward.3} parent=5 // pred_region
      %s2440 = ssub.s32 %s13, 2
      // Predicated region
      $region73: #{idm_vton_forward.3} parent=71 // pred_check
        %p2441 = pneg %p250
      $region74: #{idm_vton_forward.3} parent=71 // pred_check_branch
        %2443 = sbr.rel (%p2441) target = $region76
      $region75: #{idm_vton_forward.3} parent=71 // pred_region
        %s2444 = smul.u32 2, %s25
        %p2445 = scmp.lt.s32.totalorder %s24, 1
        %s2446 = scalar_select %p2445, %s24, 1
        %p2447 = scmp.lt.s32.totalorder %s2444, 1
        %s2448 = scalar_select %p2447, %s2444, 1
        %s2449 = smul.addr %s2446, 2
        %s2450 = sadd.s32 %s2448, %s2449
        %s2451 = smul.addr %s2450, 4
        %s2452 = scalar_lea.vmem %s7, %s2451
      $region76: #{idm_vton_forward.3} parent=71 // pred_fallthru
        _
    $region72: #{idm_vton_forward.3} parent=5 // pred_fallthru
      _
  $region6: #{idm_vton_forward.3} parent=0 // loop_footer
    %s17 = sadd.s32 1, %s13
  $region7: #{idm_vton_forward.3} parent=0 // loop_footer_branch
    %12 = sbr.rel target = $region3
  $region8: #{idm_vton_forward.3} parent=0 // loop_exit
    _

</llo_original>
